<compile_context>
chip_gen: v6e
topology: v6e:2x2x1
jax: 0.10.0
libtpu: 0.0.40
codegen_flags: <defaults>
</compile_context>

<pallas_src>
import functools
import math

import numpy as np
import jax
import jax.numpy as jnp
from jax import lax
from jax.experimental import pallas as pl
from jax.experimental.pallas import tpu as pltpu


def _round_up(x, m):
    return ((x + m - 1) // m) * m


# ----------------------------- fused Pallas kernel -----------------------------

def _qnet_kernel(p1_ref, w1_ref, b1_ref,
                 sel2_ref, w2_ref, b2_ref,
                 sel3_ref, w3_ref, b3_ref,
                 wh1_ref, bh1_ref,
                 w2h_ref, b2h_ref,
                 o_ref,
                 *, t2, p2, t3, p3, q3, c1, c2, c3, action_dim, atom_pad):
    f32 = jnp.float32
    bf16 = jnp.bfloat16

    def mm(a, b):
        return jnp.dot(a, b, preferred_element_type=f32)      # bf16 x bf16 -> f32 on MXU

    # ---- conv1: one matmul on this sample's pre-extracted bf16 patches ----
    h1 = jnp.maximum(mm(p1_ref[0], w1_ref[...]) + b1_ref[...], 0.0).astype(bf16)   # (S1, c1)

    # ---- conv2: per-sample one-hot gather (bf16 selection matmul) + per-tap accumulate
    g2 = mm(sel2_ref[...], h1).astype(bf16)                    # (t2*p2, c1), p2 8-aligned
    acc2 = jnp.zeros((p2, c2), f32)
    for t in range(t2):
        acc2 = acc2 + mm(g2[t * p2:(t + 1) * p2, :], w2_ref[t * c1:(t + 1) * c1, :])
    h2 = jnp.maximum(acc2 + b2_ref[...], 0.0).astype(bf16)     # (p2, c2)

    # ---- conv3 ----
    g3 = mm(sel3_ref[...], h2).astype(bf16)                    # (t3*p3, c2), p3 8-aligned
    acc3 = jnp.zeros((p3, c3), f32)
    for t in range(t3):
        acc3 = acc3 + mm(g3[t * p3:(t + 1) * p3, :], w3_ref[t * c2:(t + 1) * c2, :])
    h3 = jnp.maximum(acc3 + b3_ref[...], 0.0).astype(bf16)     # (p3, c3)

    # ---- dueling head layer 1: the NCHW flatten is folded in as q3 tiny matmuls ----
    acch = jnp.zeros((1, bh1_ref.shape[1]), f32)
    for q in range(q3):
        acch = acch + mm(h3[q:q + 1, :], wh1_ref[q * c3:(q + 1) * c3, :])
    hh = jnp.maximum(acch + bh1_ref[...], 0.0).astype(bf16)    # (1, l1+l2)

    # ---- fused head layer 2: blocks [A_0 .. A_{A-1} | V | mean_a A_a], 64-lane padded
    va = mm(hh, w2h_ref[...]) + b2h_ref[...]                   # (1, (A+2)*atom_pad)
    v_off = action_dim * atom_pad
    vm = va[:, v_off:v_off + atom_pad] - va[:, v_off + atom_pad:v_off + 2 * atom_pad]
    outs = []
    for a in range(action_dim):
        q = va[:, a * atom_pad:(a + 1) * atom_pad] + vm        # Q = V + A_a - mean_a A_a
        q = q - jnp.max(q, axis=-1, keepdims=True)
        e = jnp.exp(q)                                         # pad lanes: exp(-1e9) == 0
        outs.append(e / jnp.sum(e, axis=-1, keepdims=True))    # exact normalization

    o_ref[0] = jnp.concatenate(outs, axis=1)                   # lane-dense (1, A*atom_pad)


def qnet_pallas(patches, packed, cfg):
    n_batch = patches.shape[0]
    a_dim, ap = cfg["action_dim"], cfg["atom_pad"]

    args = (patches,
            packed["w1"], packed["b1"],
            packed["sel2"], packed["w2"], packed["b2"],
            packed["sel3"], packed["w3"], packed["b3"],
            packed["wh1"], packed["bh1"],
            packed["w2h"], packed["b2h"])

    def resident(a):
        nd = a.ndim
        return pl.BlockSpec(a.shape, lambda n, _nd=nd: (0,) * _nd)   # stays in VMEM

    in_specs = [pl.BlockSpec((1,) + patches.shape[1:], lambda n: (n, 0, 0))]
    in_specs += [resident(a) for a in args[1:]]

    kernel = functools.partial(
        _qnet_kernel,
        t2=cfg["t2"], p2=cfg["p2"], t3=cfg["t3"], p3=cfg["p3"], q3=cfg["q3"],
        c1=cfg["c1"], c2=cfg["c2"], c3=cfg["c3"],
        action_dim=a_dim, atom_pad=ap)

    return pl.pallas_call(
        kernel,
        grid=(n_batch,),
        out_shape=jax.ShapeDtypeStruct((n_batch, 1, a_dim * ap), jnp.float32),
        in_specs=in_specs,
        out_specs=pl.BlockSpec((1, 1, a_dim * ap), lambda n: (n, 0, 0)),
        compiler_params=pltpu.CompilerParams(dimension_semantics=("parallel",)),
    )(*args)


# ------------------------------ JAX glue -----------------------------------

def im2col_conv1(x, k, stride):
    """(N, C, H, W) -> per-sample patches (N, OH*OW, C*k*k); rows (oh, ow), cols (c, kh, kw)."""
    # TODO(synk): conv1 patch extraction stays as a small bf16 XLA gather fused into the
    # same jit; conv2/conv3 im2col happens inside the kernel via selection matmuls.
    n, c, h, w = x.shape
    oh = (h - k) // stride + 1
    ow = (w - k) // stride + 1
    i = (jnp.arange(oh) * stride)[:, None] + jnp.arange(k)[None, :]
    j = (jnp.arange(ow) * stride)[:, None] + jnp.arange(k)[None, :]
    p = x[:, :, i[:, :, None, None], j[None, None, :, :]]      # (N, C, OH, k, OW, k)
    p = p.transpose(0, 2, 4, 1, 3, 5).reshape(n, oh * ow, c * k * k)
    return p


def qnetwork_forward(x, packed, cfg):
    n = x.shape[0]
    patches = im2col_conv1(x, cfg["kernel_1"], cfg["stride_1"]).astype(jnp.bfloat16)
    out = qnet_pallas(patches, packed, cfg)                    # (N, 1, A*atom_pad)
    out = out.reshape(n, cfg["action_dim"], cfg["atom_pad"])[..., :cfg["n_atoms"]]
    return out


# --------------------- deterministic parameter setup -----------------------

def conv_params(key, cout, cin, kh, kw):
    k1, k2 = jax.random.split(key)
    r = 1.0 / math.sqrt(cin * kh * kw)
    w = jax.random.uniform(k1, (cout, cin, kh, kw), minval=-r, maxval=r, dtype=jnp.float32)
    b = jax.random.uniform(k2, (cout,), minval=-r, maxval=r, dtype=jnp.float32)
    return w, b


def noisy_linear_params(key, in_f, out_f, init_std):
    # Effective (mu + sigma * factorized_eps) weights, returned as (in, out) for x @ W.
    # TODO(synk): NoisyNet epsilon is frozen at parameter-build time (one noise sample
    # reused per forward), i.e. a fixed snapshot of the module after init_noise().
    k1, k2, k3, k4 = jax.random.split(key, 4)
    r = 1.0 / math.sqrt(in_f)
    w_mu = jax.random.uniform(k1, (out_f, in_f), minval=-r, maxval=r, dtype=jnp.float32)
    b_mu = jax.random.uniform(k2, (out_f,), minval=-r, maxval=r, dtype=jnp.float32)
    sigma = init_std / math.sqrt(in_f)

    def f(e):
        return jnp.sign(e) * jnp.sqrt(jnp.abs(e))

    eps_in = f(jax.random.normal(k3, (in_f,), dtype=jnp.float32))
    eps_out = f(jax.random.normal(k4, (out_f,), dtype=jnp.float32))
    W = (w_mu + sigma * jnp.outer(eps_out, eps_in)).T
    b = b_mu + sigma * eps_out
    return W.astype(jnp.float32), b.astype(jnp.float32)


def build_qnetwork(key, input_dim, action_dim, initial_std, *,
                   conv_channel_1=8, conv_channel_2=16, conv_channel_3=16,
                   kernel_1=8, kernel_2=4, kernel_3=3,
                   stride_1=4, stride_2=2, stride_3=1,
                   linear_1=32, linear_2=32, n_atoms=51):
    keys = jax.random.split(key, 7)
    raw = {}
    raw["c1_w"], raw["c1_b"] = conv_params(keys[0], conv_channel_1, input_dim[0], kernel_1, kernel_1)
    raw["c2_w"], raw["c2_b"] = conv_params(keys[1], conv_channel_2, conv_channel_1, kernel_2, kernel_2)
    raw["c3_w"], raw["c3_b"] = conv_params(keys[2], conv_channel_3, conv_channel_2, kernel_3, kernel_3)

    def csize(s, k, st):
        return (s - (k - 1) - 1) // st + 1

    oh1, ow1 = csize(input_dim[1], kernel_1, stride_1), csize(input_dim[2], kernel_1, stride_1)
    oh2, ow2 = csize(oh1, kernel_2, stride_2), csize(ow1, kernel_2, stride_2)
    oh3, ow3 = csize(oh2, kernel_3, stride_3), csize(ow2, kernel_3, stride_3)
    lin_in = oh3 * ow3 * conv_channel_3

    raw["v1_w"], raw["v1_b"] = noisy_linear_params(keys[3], lin_in, linear_1, initial_std)
    raw["v2_w"], raw["v2_b"] = noisy_linear_params(keys[4], linear_1, n_atoms, initial_std)
    raw["a1_w"], raw["a1_b"] = noisy_linear_params(keys[5], lin_in, linear_2, initial_std)
    raw["a2_w"], raw["a2_b"] = noisy_linear_params(keys[6], linear_2, action_dim * n_atoms, initial_std)

    c1, c2, c3 = conv_channel_1, conv_channel_2, conv_channel_3
    t2, t3 = kernel_2 * kernel_2, kernel_3 * kernel_3
    s1p, s2p, s3p = oh1 * ow1, oh2 * ow2, oh3 * ow3           # per-sample spatial sizes
    P2, P3 = _round_up(s2p, 8), _round_up(s3p, 8)             # 8-sublane aligned tap blocks
    atom_pad = _round_up(n_atoms, 64)
    L = linear_1 + linear_2
    bf16 = jnp.bfloat16

    # conv1 weight as a (Cin*K1*K1, C1) bf16 matmul operand (cols of patches are (c,kh,kw))
    w1p = raw["c1_w"].reshape(c1, -1).T.astype(bf16)
    b1p = raw["c1_b"].reshape(1, c1)

    # per-sample one-hot im2col selections + per-tap conv weight blocks (conv2 / conv3)
    c2w = np.asarray(raw["c2_w"])
    sel2 = np.zeros((t2 * P2, s1p), np.float32)
    w2p = np.zeros((t2 * c1, c2), np.float32)
    for kh in range(kernel_2):
        for kw in range(kernel_2):
            t = kh * kernel_2 + kw
            w2p[t * c1:(t + 1) * c1, :] = c2w[:, :, kh, kw].T
            for oh in range(oh2):
                for ow in range(ow2):
                    r = t * P2 + oh * ow2 + ow
                    src = (oh * stride_2 + kh) * ow1 + (ow * stride_2 + kw)
                    sel2[r, src] = 1.0

    c3w = np.asarray(raw["c3_w"])
    sel3 = np.zeros((t3 * P3, P2), np.float32)
    w3p = np.zeros((t3 * c2, c3), np.float32)
    for kh in range(kernel_3):
        for kw in range(kernel_3):
            t = kh * kernel_3 + kw
            w3p[t * c2:(t + 1) * c2, :] = c3w[:, :, kh, kw].T
            for oh in range(oh3):
                for ow in range(ow3):
                    r = t * P3 + oh * ow3 + ow
                    src = (oh * stride_3 + kh) * ow2 + (ow * stride_3 + kw)
                    sel3[r, src] = 1.0

    # head layer 1: flatten folded in -> rows reordered from PyTorch NCHW-flatten (c*9+q)
    # into per-spatial-row blocks (q, c); V and A first layers fused along the lane axis.
    v1 = np.asarray(raw["v1_w"])
    a1 = np.asarray(raw["a1_w"])
    wh1 = np.zeros((s3p * c3, L), np.float32)
    for q in range(s3p):
        for c in range(c3):
            wh1[q * c3 + c, :linear_1] = v1[c * s3p + q]
            wh1[q * c3 + c, linear_1:] = a1[c * s3p + q]
    bh1 = jnp.concatenate([raw["v1_b"], raw["a1_b"]]).reshape(1, L)

    # fused head layer 2: [A_0 .. A_{A-1} | V | mean_a A_a] with 64-lane-padded atom blocks
    v2 = np.asarray(raw["v2_w"])
    a2 = np.asarray(raw["a2_w"])
    v2b = np.asarray(raw["v2_b"])
    a2b = np.asarray(raw["a2_b"])
    w2h = np.zeros((L, (action_dim + 2) * atom_pad), np.float32)
    b2h = np.zeros((1, (action_dim + 2) * atom_pad), np.float32)
    for a in range(action_dim):
        w2h[linear_1:, a * atom_pad:a * atom_pad + n_atoms] = a2[:, a * n_atoms:(a + 1) * n_atoms]
        b2h[0, a * atom_pad:a * atom_pad + n_atoms] = a2b[a * n_atoms:(a + 1) * n_atoms]
        b2h[0, a * atom_pad + n_atoms:(a + 1) * atom_pad] = -1e9   # padded atoms -> prob 0
    v_off = action_dim * atom_pad
    w2h[:linear_1, v_off:v_off + n_atoms] = v2
    b2h[0, v_off:v_off + n_atoms] = v2b
    m_off = (action_dim + 1) * atom_pad
    w2h[linear_1:, m_off:m_off + n_atoms] = a2.reshape(linear_2, action_dim, n_atoms).mean(axis=1)
    b2h[0, m_off:m_off + n_atoms] = a2b.reshape(action_dim, n_atoms).mean(axis=0)

    packed = dict(
        w1=w1p, b1=b1p,
        sel2=jnp.asarray(sel2, bf16), w2=jnp.asarray(w2p, bf16), b2=raw["c2_b"].reshape(1, c2),
        sel3=jnp.asarray(sel3, bf16), w3=jnp.asarray(w3p, bf16), b3=raw["c3_b"].reshape(1, c3),
        wh1=jnp.asarray(wh1, bf16), bh1=bh1,
        w2h=jnp.asarray(w2h, bf16), b2h=jnp.asarray(b2h))

    cfg = dict(n_atoms=n_atoms, action_dim=action_dim, atom_pad=atom_pad,
               kernel_1=kernel_1, stride_1=stride_1,
               t2=t2, p2=P2, t3=t3, p3=P3, q3=s3p,
               c1=c1, c2=c2, c3=c3)

    return raw, packed, cfg, (stride_1, stride_2, stride_3)


# --------------------------- pure-JAX reference -----------------------------

def reference_forward(x, raw, action_dim, n_atoms, strides):
    hi = lax.Precision.HIGHEST
    y = x
    for name, s in (("c1", strides[0]), ("c2", strides[1]), ("c3", strides[2])):
        y = lax.conv_general_dilated(
            y, raw[name + "_w"], window_strides=(s, s), padding="VALID",
            dimension_numbers=("NCHW", "OIHW", "NCHW"), precision=hi)
        y = jnp.maximum(y + raw[name + "_b"][None, :, None, None], 0.0)
    xf = y.reshape(y.shape[0], -1)
    hv = jnp.maximum(jnp.dot(xf, raw["v1_w"], precision=hi) + raw["v1_b"], 0.0)
    V = (jnp.dot(hv, raw["v2_w"], precision=hi) + raw["v2_b"]).reshape(-1, 1, n_atoms)
    ha = jnp.maximum(jnp.dot(xf, raw["a1_w"], precision=hi) + raw["a1_b"], 0.0)
    A = (jnp.dot(ha, raw["a2_w"], precision=hi) + raw["a2_b"]).reshape(-1, action_dim, n_atoms)
    Q = V + A - A.mean(axis=1, keepdims=True)
    return jax.nn.softmax(Q, axis=-1)


# ---------------------------------- main ------------------------------------

if __name__ == "__main__":
    key = jax.random.PRNGKey(0)
    kp, kx = jax.random.split(key)

    N = 2
    input_dim = (4, 52, 52)        # (C, H, W) -> conv spatial sizes 12 -> 5 -> 3
    action_dim = 4
    n_atoms = 51
    initial_std = 0.5

    raw, packed, cfg, strides = build_qnetwork(
        kp, input_dim, action_dim, initial_std, n_atoms=n_atoms)
    x = jax.random.normal(kx, (N,) + input_dim, dtype=jnp.float32)

    fwd = jax.jit(functools.partial(qnetwork_forward, cfg=cfg))
    out = jax.block_until_ready(fwd(x, packed))

    assert out.shape == (N, action_dim, n_atoms), out.shape
    assert bool(jnp.all(jnp.isfinite(out)))
    sums = jnp.sum(out, axis=-1)
    assert bool(jnp.all(jnp.abs(sums - 1.0) < 1e-3)), sums

    ref = reference_forward(x, raw, action_dim, n_atoms, strides)
    max_err = float(jnp.max(jnp.abs(out - ref)))
    assert max_err < 5e-3, max_err

    print("KERNEL_OK")
</pallas_src>

<mosaic_0001>
module attributes {stable_mosaic.version = 11 : i64} {
  func.func @_qnet_kernel(%arg0: i32, %arg1: memref<1x144x256xbf16, #tpu.memory_space<vmem>>, %arg2: memref<256x8xbf16, #tpu.memory_space<vmem>>, %arg3: memref<1x8xf32, #tpu.memory_space<vmem>>, %arg4: memref<512x144xbf16, #tpu.memory_space<vmem>>, %arg5: memref<128x16xbf16, #tpu.memory_space<vmem>>, %arg6: memref<1x16xf32, #tpu.memory_space<vmem>>, %arg7: memref<144x32xbf16, #tpu.memory_space<vmem>>, %arg8: memref<144x16xbf16, #tpu.memory_space<vmem>>, %arg9: memref<1x16xf32, #tpu.memory_space<vmem>>, %arg10: memref<144x64xbf16, #tpu.memory_space<vmem>>, %arg11: memref<1x64xf32, #tpu.memory_space<vmem>>, %arg12: memref<64x384xbf16, #tpu.memory_space<vmem>>, %arg13: memref<1x384xf32, #tpu.memory_space<vmem>>, %arg14: memref<1x1x256xf32, #tpu.memory_space<vmem>>) attributes {dimension_semantics = [#tpu.dimension_semantics<parallel>], iteration_bounds = array<i64: 2>, scalar_prefetch = 0 : i64, scratch_operands = 0 : i64, tpu.core_type = #tpu.core_type<tc>, window_params = [{transform_indices = @transform_0, window_bounds = array<i64: 1, 144, 256>}, {pipeline_mode = #tpu.pipeline_mode<synchronous>, transform_indices = @transform_1, window_bounds = array<i64: 256, 8>}, {pipeline_mode = #tpu.pipeline_mode<synchronous>, transform_indices = @transform_2, window_bounds = array<i64: 1, 8>}, {pipeline_mode = #tpu.pipeline_mode<synchronous>, transform_indices = @transform_3, window_bounds = array<i64: 512, 144>}, {pipeline_mode = #tpu.pipeline_mode<synchronous>, transform_indices = @transform_4, window_bounds = array<i64: 128, 16>}, {pipeline_mode = #tpu.pipeline_mode<synchronous>, transform_indices = @transform_5, window_bounds = array<i64: 1, 16>}, {pipeline_mode = #tpu.pipeline_mode<synchronous>, transform_indices = @transform_6, window_bounds = array<i64: 144, 32>}, {pipeline_mode = #tpu.pipeline_mode<synchronous>, transform_indices = @transform_7, window_bounds = array<i64: 144, 16>}, {pipeline_mode = #tpu.pipeline_mode<synchronous>, transform_indices = @transform_8, window_bounds = array<i64: 1, 16>}, {pipeline_mode = #tpu.pipeline_mode<synchronous>, transform_indices = @transform_9, window_bounds = array<i64: 144, 64>}, {pipeline_mode = #tpu.pipeline_mode<synchronous>, transform_indices = @transform_10, window_bounds = array<i64: 1, 64>}, {pipeline_mode = #tpu.pipeline_mode<synchronous>, transform_indices = @transform_11, window_bounds = array<i64: 64, 384>}, {pipeline_mode = #tpu.pipeline_mode<synchronous>, transform_indices = @transform_12, window_bounds = array<i64: 1, 384>}, {transform_indices = @transform_13, window_bounds = array<i64: 1, 1, 256>}]} {
    %c0 = arith.constant 0 : index
    %c0_0 = arith.constant 0 : index
    %c0_1 = arith.constant 0 : index
    %0 = vector.load %arg1[%c0, %c0_0, %c0_1] : memref<1x144x256xbf16, #tpu.memory_space<vmem>>, vector<1x144x256xbf16>
    %1 = vector.shape_cast %0 : vector<1x144x256xbf16> to vector<144x256xbf16>
    %c0_2 = arith.constant 0 : index
    %c0_3 = arith.constant 0 : index
    %2 = vector.load %arg2[%c0_2, %c0_3] : memref<256x8xbf16, #tpu.memory_space<vmem>>, vector<256x8xbf16>
    %cst = arith.constant dense<0.000000e+00> : vector<144x8xf32>
    %3 = tpu.matmul %1, %2, %cst {dimension_numbers = #tpu.dot_dimension_numbers<[1], [0], [0], [1], [0, 0, 1, 1], [], []>} : vector<144x256xbf16>, vector<256x8xbf16>, vector<144x8xf32> -> vector<144x8xf32>
    %c0_4 = arith.constant 0 : index
    %c0_5 = arith.constant 0 : index
    %4 = vector.load %arg3[%c0_4, %c0_5] : memref<1x8xf32, #tpu.memory_space<vmem>>, vector<1x8xf32>
    %5 = vector.broadcast %4 : vector<1x8xf32> to vector<144x8xf32>
    %6 = arith.addf %3, %5 : vector<144x8xf32>
    %cst_6 = arith.constant 0.000000e+00 : f32
    %7 = vector.broadcast %cst_6 : f32 to vector<144x8xf32>
    %8 = arith.maximumf %6, %7 : vector<144x8xf32>
    %9 = arith.truncf %8 : vector<144x8xf32> to vector<144x8xbf16>
    %c0_7 = arith.constant 0 : index
    %c0_8 = arith.constant 0 : index
    %10 = vector.load %arg4[%c0_7, %c0_8] : memref<512x144xbf16, #tpu.memory_space<vmem>>, vector<512x144xbf16>
    %cst_9 = arith.constant dense<0.000000e+00> : vector<512x8xf32>
    %11 = tpu.matmul %10, %9, %cst_9 {dimension_numbers = #tpu.dot_dimension_numbers<[1], [0], [0], [1], [0, 0, 1, 1], [], []>} : vector<512x144xbf16>, vector<144x8xbf16>, vector<512x8xf32> -> vector<512x8xf32>
    %12 = arith.truncf %11 : vector<512x8xf32> to vector<512x8xbf16>
    %cst_10 = arith.constant 0.000000e+00 : f32
    %13 = vector.broadcast %cst_10 : f32 to vector<32x16xf32>
    %14 = vector.extract_strided_slice %12 {offsets = [0, 0], sizes = [32, 8], strides = [1, 1]} : vector<512x8xbf16> to vector<32x8xbf16>
    %c0_11 = arith.constant 0 : index
    %c0_12 = arith.constant 0 : index
    %15 = vector.load %arg5[%c0_11, %c0_12] : memref<128x16xbf16, #tpu.memory_space<vmem>>, vector<8x16xbf16>
    %cst_13 = arith.constant dense<0.000000e+00> : vector<32x16xf32>
    %16 = tpu.matmul %14, %15, %cst_13 {dimension_numbers = #tpu.dot_dimension_numbers<[1], [0], [0], [1], [0, 0, 1, 1], [], []>} : vector<32x8xbf16>, vector<8x16xbf16>, vector<32x16xf32> -> vector<32x16xf32>
    %17 = arith.addf %13, %16 : vector<32x16xf32>
    %18 = vector.extract_strided_slice %12 {offsets = [32, 0], sizes = [32, 8], strides = [1, 1]} : vector<512x8xbf16> to vector<32x8xbf16>
    %c8 = arith.constant 8 : index
    %c0_14 = arith.constant 0 : index
    %19 = vector.load %arg5[%c8, %c0_14] : memref<128x16xbf16, #tpu.memory_space<vmem>>, vector<8x16xbf16>
    %cst_15 = arith.constant dense<0.000000e+00> : vector<32x16xf32>
    %20 = tpu.matmul %18, %19, %cst_15 {dimension_numbers = #tpu.dot_dimension_numbers<[1], [0], [0], [1], [0, 0, 1, 1], [], []>} : vector<32x8xbf16>, vector<8x16xbf16>, vector<32x16xf32> -> vector<32x16xf32>
    %21 = arith.addf %17, %20 : vector<32x16xf32>
    %22 = vector.extract_strided_slice %12 {offsets = [64, 0], sizes = [32, 8], strides = [1, 1]} : vector<512x8xbf16> to vector<32x8xbf16>
    %c16 = arith.constant 16 : index
    %c0_16 = arith.constant 0 : index
    %23 = vector.load %arg5[%c16, %c0_16] : memref<128x16xbf16, #tpu.memory_space<vmem>>, vector<8x16xbf16>
    %cst_17 = arith.constant dense<0.000000e+00> : vector<32x16xf32>
    %24 = tpu.matmul %22, %23, %cst_17 {dimension_numbers = #tpu.dot_dimension_numbers<[1], [0], [0], [1], [0, 0, 1, 1], [], []>} : vector<32x8xbf16>, vector<8x16xbf16>, vector<32x16xf32> -> vector<32x16xf32>
    %25 = arith.addf %21, %24 : vector<32x16xf32>
    %26 = vector.extract_strided_slice %12 {offsets = [96, 0], sizes = [32, 8], strides = [1, 1]} : vector<512x8xbf16> to vector<32x8xbf16>
    %c24 = arith.constant 24 : index
    %c0_18 = arith.constant 0 : index
    %27 = vector.load %arg5[%c24, %c0_18] : memref<128x16xbf16, #tpu.memory_space<vmem>>, vector<8x16xbf16>
    %cst_19 = arith.constant dense<0.000000e+00> : vector<32x16xf32>
    %28 = tpu.matmul %26, %27, %cst_19 {dimension_numbers = #tpu.dot_dimension_numbers<[1], [0], [0], [1], [0, 0, 1, 1], [], []>} : vector<32x8xbf16>, vector<8x16xbf16>, vector<32x16xf32> -> vector<32x16xf32>
    %29 = arith.addf %25, %28 : vector<32x16xf32>
    %30 = vector.extract_strided_slice %12 {offsets = [128, 0], sizes = [32, 8], strides = [1, 1]} : vector<512x8xbf16> to vector<32x8xbf16>
    %c32 = arith.constant 32 : index
    %c0_20 = arith.constant 0 : index
    %31 = vector.load %arg5[%c32, %c0_20] : memref<128x16xbf16, #tpu.memory_space<vmem>>, vector<8x16xbf16>
    %cst_21 = arith.constant dense<0.000000e+00> : vector<32x16xf32>
    %32 = tpu.matmul %30, %31, %cst_21 {dimension_numbers = #tpu.dot_dimension_numbers<[1], [0], [0], [1], [0, 0, 1, 1], [], []>} : vector<32x8xbf16>, vector<8x16xbf16>, vector<32x16xf32> -> vector<32x16xf32>
    %33 = arith.addf %29, %32 : vector<32x16xf32>
    %34 = vector.extract_strided_slice %12 {offsets = [160, 0], sizes = [32, 8], strides = [1, 1]} : vector<512x8xbf16> to vector<32x8xbf16>
    %c40 = arith.constant 40 : index
    %c0_22 = arith.constant 0 : index
    %35 = vector.load %arg5[%c40, %c0_22] : memref<128x16xbf16, #tpu.memory_space<vmem>>, vector<8x16xbf16>
    %cst_23 = arith.constant dense<0.000000e+00> : vector<32x16xf32>
    %36 = tpu.matmul %34, %35, %cst_23 {dimension_numbers = #tpu.dot_dimension_numbers<[1], [0], [0], [1], [0, 0, 1, 1], [], []>} : vector<32x8xbf16>, vector<8x16xbf16>, vector<32x16xf32> -> vector<32x16xf32>
    %37 = arith.addf %33, %36 : vector<32x16xf32>
    %38 = vector.extract_strided_slice %12 {offsets = [192, 0], sizes = [32, 8], strides = [1, 1]} : vector<512x8xbf16> to vector<32x8xbf16>
    %c48 = arith.constant 48 : index
    %c0_24 = arith.constant 0 : index
    %39 = vector.load %arg5[%c48, %c0_24] : memref<128x16xbf16, #tpu.memory_space<vmem>>, vector<8x16xbf16>
    %cst_25 = arith.constant dense<0.000000e+00> : vector<32x16xf32>
    %40 = tpu.matmul %38, %39, %cst_25 {dimension_numbers = #tpu.dot_dimension_numbers<[1], [0], [0], [1], [0, 0, 1, 1], [], []>} : vector<32x8xbf16>, vector<8x16xbf16>, vector<32x16xf32> -> vector<32x16xf32>
    %41 = arith.addf %37, %40 : vector<32x16xf32>
    %42 = vector.extract_strided_slice %12 {offsets = [224, 0], sizes = [32, 8], strides = [1, 1]} : vector<512x8xbf16> to vector<32x8xbf16>
    %c56 = arith.constant 56 : index
    %c0_26 = arith.constant 0 : index
    %43 = vector.load %arg5[%c56, %c0_26] : memref<128x16xbf16, #tpu.memory_space<vmem>>, vector<8x16xbf16>
    %cst_27 = arith.constant dense<0.000000e+00> : vector<32x16xf32>
    %44 = tpu.matmul %42, %43, %cst_27 {dimension_numbers = #tpu.dot_dimension_numbers<[1], [0], [0], [1], [0, 0, 1, 1], [], []>} : vector<32x8xbf16>, vector<8x16xbf16>, vector<32x16xf32> -> vector<32x16xf32>
    %45 = arith.addf %41, %44 : vector<32x16xf32>
    %46 = vector.extract_strided_slice %12 {offsets = [256, 0], sizes = [32, 8], strides = [1, 1]} : vector<512x8xbf16> to vector<32x8xbf16>
    %c64 = arith.constant 64 : index
    %c0_28 = arith.constant 0 : index
    %47 = vector.load %arg5[%c64, %c0_28] : memref<128x16xbf16, #tpu.memory_space<vmem>>, vector<8x16xbf16>
    %cst_29 = arith.constant dense<0.000000e+00> : vector<32x16xf32>
    %48 = tpu.matmul %46, %47, %cst_29 {dimension_numbers = #tpu.dot_dimension_numbers<[1], [0], [0], [1], [0, 0, 1, 1], [], []>} : vector<32x8xbf16>, vector<8x16xbf16>, vector<32x16xf32> -> vector<32x16xf32>
    %49 = arith.addf %45, %48 : vector<32x16xf32>
    %50 = vector.extract_strided_slice %12 {offsets = [288, 0], sizes = [32, 8], strides = [1, 1]} : vector<512x8xbf16> to vector<32x8xbf16>
    %c72 = arith.constant 72 : index
    %c0_30 = arith.constant 0 : index
    %51 = vector.load %arg5[%c72, %c0_30] : memref<128x16xbf16, #tpu.memory_space<vmem>>, vector<8x16xbf16>
    %cst_31 = arith.constant dense<0.000000e+00> : vector<32x16xf32>
    %52 = tpu.matmul %50, %51, %cst_31 {dimension_numbers = #tpu.dot_dimension_numbers<[1], [0], [0], [1], [0, 0, 1, 1], [], []>} : vector<32x8xbf16>, vector<8x16xbf16>, vector<32x16xf32> -> vector<32x16xf32>
    %53 = arith.addf %49, %52 : vector<32x16xf32>
    %54 = vector.extract_strided_slice %12 {offsets = [320, 0], sizes = [32, 8], strides = [1, 1]} : vector<512x8xbf16> to vector<32x8xbf16>
    %c80 = arith.constant 80 : index
    %c0_32 = arith.constant 0 : index
    %55 = vector.load %arg5[%c80, %c0_32] : memref<128x16xbf16, #tpu.memory_space<vmem>>, vector<8x16xbf16>
    %cst_33 = arith.constant dense<0.000000e+00> : vector<32x16xf32>
    %56 = tpu.matmul %54, %55, %cst_33 {dimension_numbers = #tpu.dot_dimension_numbers<[1], [0], [0], [1], [0, 0, 1, 1], [], []>} : vector<32x8xbf16>, vector<8x16xbf16>, vector<32x16xf32> -> vector<32x16xf32>
    %57 = arith.addf %53, %56 : vector<32x16xf32>
    %58 = vector.extract_strided_slice %12 {offsets = [352, 0], sizes = [32, 8], strides = [1, 1]} : vector<512x8xbf16> to vector<32x8xbf16>
    %c88 = arith.constant 88 : index
    %c0_34 = arith.constant 0 : index
    %59 = vector.load %arg5[%c88, %c0_34] : memref<128x16xbf16, #tpu.memory_space<vmem>>, vector<8x16xbf16>
    %cst_35 = arith.constant dense<0.000000e+00> : vector<32x16xf32>
    %60 = tpu.matmul %58, %59, %cst_35 {dimension_numbers = #tpu.dot_dimension_numbers<[1], [0], [0], [1], [0, 0, 1, 1], [], []>} : vector<32x8xbf16>, vector<8x16xbf16>, vector<32x16xf32> -> vector<32x16xf32>
    %61 = arith.addf %57, %60 : vector<32x16xf32>
    %62 = vector.extract_strided_slice %12 {offsets = [384, 0], sizes = [32, 8], strides = [1, 1]} : vector<512x8xbf16> to vector<32x8xbf16>
    %c96 = arith.constant 96 : index
    %c0_36 = arith.constant 0 : index
    %63 = vector.load %arg5[%c96, %c0_36] : memref<128x16xbf16, #tpu.memory_space<vmem>>, vector<8x16xbf16>
    %cst_37 = arith.constant dense<0.000000e+00> : vector<32x16xf32>
    %64 = tpu.matmul %62, %63, %cst_37 {dimension_numbers = #tpu.dot_dimension_numbers<[1], [0], [0], [1], [0, 0, 1, 1], [], []>} : vector<32x8xbf16>, vector<8x16xbf16>, vector<32x16xf32> -> vector<32x16xf32>
    %65 = arith.addf %61, %64 : vector<32x16xf32>
    %66 = vector.extract_strided_slice %12 {offsets = [416, 0], sizes = [32, 8], strides = [1, 1]} : vector<512x8xbf16> to vector<32x8xbf16>
    %c104 = arith.constant 104 : index
    %c0_38 = arith.constant 0 : index
    %67 = vector.load %arg5[%c104, %c0_38] : memref<128x16xbf16, #tpu.memory_space<vmem>>, vector<8x16xbf16>
    %cst_39 = arith.constant dense<0.000000e+00> : vector<32x16xf32>
    %68 = tpu.matmul %66, %67, %cst_39 {dimension_numbers = #tpu.dot_dimension_numbers<[1], [0], [0], [1], [0, 0, 1, 1], [], []>} : vector<32x8xbf16>, vector<8x16xbf16>, vector<32x16xf32> -> vector<32x16xf32>
    %69 = arith.addf %65, %68 : vector<32x16xf32>
    %70 = vector.extract_strided_slice %12 {offsets = [448, 0], sizes = [32, 8], strides = [1, 1]} : vector<512x8xbf16> to vector<32x8xbf16>
    %c112 = arith.constant 112 : index
    %c0_40 = arith.constant 0 : index
    %71 = vector.load %arg5[%c112, %c0_40] : memref<128x16xbf16, #tpu.memory_space<vmem>>, vector<8x16xbf16>
    %cst_41 = arith.constant dense<0.000000e+00> : vector<32x16xf32>
    %72 = tpu.matmul %70, %71, %cst_41 {dimension_numbers = #tpu.dot_dimension_numbers<[1], [0], [0], [1], [0, 0, 1, 1], [], []>} : vector<32x8xbf16>, vector<8x16xbf16>, vector<32x16xf32> -> vector<32x16xf32>
    %73 = arith.addf %69, %72 : vector<32x16xf32>
    %74 = vector.extract_strided_slice %12 {offsets = [480, 0], sizes = [32, 8], strides = [1, 1]} : vector<512x8xbf16> to vector<32x8xbf16>
    %c120 = arith.constant 120 : index
    %c0_42 = arith.constant 0 : index
    %75 = vector.load %arg5[%c120, %c0_42] : memref<128x16xbf16, #tpu.memory_space<vmem>>, vector<8x16xbf16>
    %cst_43 = arith.constant dense<0.000000e+00> : vector<32x16xf32>
    %76 = tpu.matmul %74, %75, %cst_43 {dimension_numbers = #tpu.dot_dimension_numbers<[1], [0], [0], [1], [0, 0, 1, 1], [], []>} : vector<32x8xbf16>, vector<8x16xbf16>, vector<32x16xf32> -> vector<32x16xf32>
    %77 = arith.addf %73, %76 : vector<32x16xf32>
    %c0_44 = arith.constant 0 : index
    %c0_45 = arith.constant 0 : index
    %78 = vector.load %arg6[%c0_44, %c0_45] : memref<1x16xf32, #tpu.memory_space<vmem>>, vector<1x16xf32>
    %79 = vector.broadcast %78 : vector<1x16xf32> to vector<32x16xf32>
    %80 = arith.addf %77, %79 : vector<32x16xf32>
    %cst_46 = arith.constant 0.000000e+00 : f32
    %81 = vector.broadcast %cst_46 : f32 to vector<32x16xf32>
    %82 = arith.maximumf %80, %81 : vector<32x16xf32>
    %83 = arith.truncf %82 : vector<32x16xf32> to vector<32x16xbf16>
    %c0_47 = arith.constant 0 : index
    %c0_48 = arith.constant 0 : index
    %84 = vector.load %arg7[%c0_47, %c0_48] : memref<144x32xbf16, #tpu.memory_space<vmem>>, vector<144x32xbf16>
    %cst_49 = arith.constant dense<0.000000e+00> : vector<144x16xf32>
    %85 = tpu.matmul %84, %83, %cst_49 {dimension_numbers = #tpu.dot_dimension_numbers<[1], [0], [0], [1], [0, 0, 1, 1], [], []>} : vector<144x32xbf16>, vector<32x16xbf16>, vector<144x16xf32> -> vector<144x16xf32>
    %86 = arith.truncf %85 : vector<144x16xf32> to vector<144x16xbf16>
    %cst_50 = arith.constant 0.000000e+00 : f32
    %87 = vector.broadcast %cst_50 : f32 to vector<16x16xf32>
    %88 = vector.extract_strided_slice %86 {offsets = [0, 0], sizes = [16, 16], strides = [1, 1]} : vector<144x16xbf16> to vector<16x16xbf16>
    %c0_51 = arith.constant 0 : index
    %c0_52 = arith.constant 0 : index
    %89 = vector.load %arg8[%c0_51, %c0_52] : memref<144x16xbf16, #tpu.memory_space<vmem>>, vector<16x16xbf16>
    %cst_53 = arith.constant dense<0.000000e+00> : vector<16x16xf32>
    %90 = tpu.matmul %88, %89, %cst_53 {dimension_numbers = #tpu.dot_dimension_numbers<[1], [0], [0], [1], [0, 0, 1, 1], [], []>} : vector<16x16xbf16>, vector<16x16xbf16>, vector<16x16xf32> -> vector<16x16xf32>
    %91 = arith.addf %87, %90 : vector<16x16xf32>
    %92 = vector.extract_strided_slice %86 {offsets = [16, 0], sizes = [16, 16], strides = [1, 1]} : vector<144x16xbf16> to vector<16x16xbf16>
    %c16_54 = arith.constant 16 : index
    %c0_55 = arith.constant 0 : index
    %93 = vector.load %arg8[%c16_54, %c0_55] : memref<144x16xbf16, #tpu.memory_space<vmem>>, vector<16x16xbf16>
    %cst_56 = arith.constant dense<0.000000e+00> : vector<16x16xf32>
    %94 = tpu.matmul %92, %93, %cst_56 {dimension_numbers = #tpu.dot_dimension_numbers<[1], [0], [0], [1], [0, 0, 1, 1], [], []>} : vector<16x16xbf16>, vector<16x16xbf16>, vector<16x16xf32> -> vector<16x16xf32>
    %95 = arith.addf %91, %94 : vector<16x16xf32>
    %96 = vector.extract_strided_slice %86 {offsets = [32, 0], sizes = [16, 16], strides = [1, 1]} : vector<144x16xbf16> to vector<16x16xbf16>
    %c32_57 = arith.constant 32 : index
    %c0_58 = arith.constant 0 : index
    %97 = vector.load %arg8[%c32_57, %c0_58] : memref<144x16xbf16, #tpu.memory_space<vmem>>, vector<16x16xbf16>
    %cst_59 = arith.constant dense<0.000000e+00> : vector<16x16xf32>
    %98 = tpu.matmul %96, %97, %cst_59 {dimension_numbers = #tpu.dot_dimension_numbers<[1], [0], [0], [1], [0, 0, 1, 1], [], []>} : vector<16x16xbf16>, vector<16x16xbf16>, vector<16x16xf32> -> vector<16x16xf32>
    %99 = arith.addf %95, %98 : vector<16x16xf32>
    %100 = vector.extract_strided_slice %86 {offsets = [48, 0], sizes = [16, 16], strides = [1, 1]} : vector<144x16xbf16> to vector<16x16xbf16>
    %c48_60 = arith.constant 48 : index
    %c0_61 = arith.constant 0 : index
    %101 = vector.load %arg8[%c48_60, %c0_61] : memref<144x16xbf16, #tpu.memory_space<vmem>>, vector<16x16xbf16>
    %cst_62 = arith.constant dense<0.000000e+00> : vector<16x16xf32>
    %102 = tpu.matmul %100, %101, %cst_62 {dimension_numbers = #tpu.dot_dimension_numbers<[1], [0], [0], [1], [0, 0, 1, 1], [], []>} : vector<16x16xbf16>, vector<16x16xbf16>, vector<16x16xf32> -> vector<16x16xf32>
    %103 = arith.addf %99, %102 : vector<16x16xf32>
    %104 = vector.extract_strided_slice %86 {offsets = [64, 0], sizes = [16, 16], strides = [1, 1]} : vector<144x16xbf16> to vector<16x16xbf16>
    %c64_63 = arith.constant 64 : index
    %c0_64 = arith.constant 0 : index
    %105 = vector.load %arg8[%c64_63, %c0_64] : memref<144x16xbf16, #tpu.memory_space<vmem>>, vector<16x16xbf16>
    %cst_65 = arith.constant dense<0.000000e+00> : vector<16x16xf32>
    %106 = tpu.matmul %104, %105, %cst_65 {dimension_numbers = #tpu.dot_dimension_numbers<[1], [0], [0], [1], [0, 0, 1, 1], [], []>} : vector<16x16xbf16>, vector<16x16xbf16>, vector<16x16xf32> -> vector<16x16xf32>
    %107 = arith.addf %103, %106 : vector<16x16xf32>
    %108 = vector.extract_strided_slice %86 {offsets = [80, 0], sizes = [16, 16], strides = [1, 1]} : vector<144x16xbf16> to vector<16x16xbf16>
    %c80_66 = arith.constant 80 : index
    %c0_67 = arith.constant 0 : index
    %109 = vector.load %arg8[%c80_66, %c0_67] : memref<144x16xbf16, #tpu.memory_space<vmem>>, vector<16x16xbf16>
    %cst_68 = arith.constant dense<0.000000e+00> : vector<16x16xf32>
    %110 = tpu.matmul %108, %109, %cst_68 {dimension_numbers = #tpu.dot_dimension_numbers<[1], [0], [0], [1], [0, 0, 1, 1], [], []>} : vector<16x16xbf16>, vector<16x16xbf16>, vector<16x16xf32> -> vector<16x16xf32>
    %111 = arith.addf %107, %110 : vector<16x16xf32>
    %112 = vector.extract_strided_slice %86 {offsets = [96, 0], sizes = [16, 16], strides = [1, 1]} : vector<144x16xbf16> to vector<16x16xbf16>
    %c96_69 = arith.constant 96 : index
    %c0_70 = arith.constant 0 : index
    %113 = vector.load %arg8[%c96_69, %c0_70] : memref<144x16xbf16, #tpu.memory_space<vmem>>, vector<16x16xbf16>
    %cst_71 = arith.constant dense<0.000000e+00> : vector<16x16xf32>
    %114 = tpu.matmul %112, %113, %cst_71 {dimension_numbers = #tpu.dot_dimension_numbers<[1], [0], [0], [1], [0, 0, 1, 1], [], []>} : vector<16x16xbf16>, vector<16x16xbf16>, vector<16x16xf32> -> vector<16x16xf32>
    %115 = arith.addf %111, %114 : vector<16x16xf32>
    %116 = vector.extract_strided_slice %86 {offsets = [112, 0], sizes = [16, 16], strides = [1, 1]} : vector<144x16xbf16> to vector<16x16xbf16>
    %c112_72 = arith.constant 112 : index
    %c0_73 = arith.constant 0 : index
    %117 = vector.load %arg8[%c112_72, %c0_73] : memref<144x16xbf16, #tpu.memory_space<vmem>>, vector<16x16xbf16>
    %cst_74 = arith.constant dense<0.000000e+00> : vector<16x16xf32>
    %118 = tpu.matmul %116, %117, %cst_74 {dimension_numbers = #tpu.dot_dimension_numbers<[1], [0], [0], [1], [0, 0, 1, 1], [], []>} : vector<16x16xbf16>, vector<16x16xbf16>, vector<16x16xf32> -> vector<16x16xf32>
    %119 = arith.addf %115, %118 : vector<16x16xf32>
    %120 = vector.extract_strided_slice %86 {offsets = [128, 0], sizes = [16, 16], strides = [1, 1]} : vector<144x16xbf16> to vector<16x16xbf16>
    %c128 = arith.constant 128 : index
    %c0_75 = arith.constant 0 : index
    %121 = vector.load %arg8[%c128, %c0_75] : memref<144x16xbf16, #tpu.memory_space<vmem>>, vector<16x16xbf16>
    %cst_76 = arith.constant dense<0.000000e+00> : vector<16x16xf32>
    %122 = tpu.matmul %120, %121, %cst_76 {dimension_numbers = #tpu.dot_dimension_numbers<[1], [0], [0], [1], [0, 0, 1, 1], [], []>} : vector<16x16xbf16>, vector<16x16xbf16>, vector<16x16xf32> -> vector<16x16xf32>
    %123 = arith.addf %119, %122 : vector<16x16xf32>
    %c0_77 = arith.constant 0 : index
    %c0_78 = arith.constant 0 : index
    %124 = vector.load %arg9[%c0_77, %c0_78] : memref<1x16xf32, #tpu.memory_space<vmem>>, vector<1x16xf32>
    %125 = vector.broadcast %124 : vector<1x16xf32> to vector<16x16xf32>
    %126 = arith.addf %123, %125 : vector<16x16xf32>
    %cst_79 = arith.constant 0.000000e+00 : f32
    %127 = vector.broadcast %cst_79 : f32 to vector<16x16xf32>
    %128 = arith.maximumf %126, %127 : vector<16x16xf32>
    %129 = arith.truncf %128 : vector<16x16xf32> to vector<16x16xbf16>
    %cst_80 = arith.constant 0.000000e+00 : f32
    %130 = vector.broadcast %cst_80 : f32 to vector<1x64xf32>
    %131 = vector.extract_strided_slice %129 {offsets = [0, 0], sizes = [1, 16], strides = [1, 1]} : vector<16x16xbf16> to vector<1x16xbf16>
    %c0_81 = arith.constant 0 : index
    %c0_82 = arith.constant 0 : index
    %132 = vector.load %arg10[%c0_81, %c0_82] : memref<144x64xbf16, #tpu.memory_space<vmem>>, vector<16x64xbf16>
    %cst_83 = arith.constant dense<0.000000e+00> : vector<1x64xf32>
    %133 = tpu.matmul %131, %132, %cst_83 {dimension_numbers = #tpu.dot_dimension_numbers<[1], [0], [0], [1], [0, 0, 1, 1], [], []>} : vector<1x16xbf16>, vector<16x64xbf16>, vector<1x64xf32> -> vector<1x64xf32>
    %134 = arith.addf %130, %133 : vector<1x64xf32>
    %135 = vector.extract_strided_slice %129 {offsets = [1, 0], sizes = [1, 16], strides = [1, 1]} : vector<16x16xbf16> to vector<1x16xbf16>
    %c16_84 = arith.constant 16 : index
    %c0_85 = arith.constant 0 : index
    %136 = vector.load %arg10[%c16_84, %c0_85] : memref<144x64xbf16, #tpu.memory_space<vmem>>, vector<16x64xbf16>
    %cst_86 = arith.constant dense<0.000000e+00> : vector<1x64xf32>
    %137 = tpu.matmul %135, %136, %cst_86 {dimension_numbers = #tpu.dot_dimension_numbers<[1], [0], [0], [1], [0, 0, 1, 1], [], []>} : vector<1x16xbf16>, vector<16x64xbf16>, vector<1x64xf32> -> vector<1x64xf32>
    %138 = arith.addf %134, %137 : vector<1x64xf32>
    %139 = vector.extract_strided_slice %129 {offsets = [2, 0], sizes = [1, 16], strides = [1, 1]} : vector<16x16xbf16> to vector<1x16xbf16>
    %c32_87 = arith.constant 32 : index
    %c0_88 = arith.constant 0 : index
    %140 = vector.load %arg10[%c32_87, %c0_88] : memref<144x64xbf16, #tpu.memory_space<vmem>>, vector<16x64xbf16>
    %cst_89 = arith.constant dense<0.000000e+00> : vector<1x64xf32>
    %141 = tpu.matmul %139, %140, %cst_89 {dimension_numbers = #tpu.dot_dimension_numbers<[1], [0], [0], [1], [0, 0, 1, 1], [], []>} : vector<1x16xbf16>, vector<16x64xbf16>, vector<1x64xf32> -> vector<1x64xf32>
    %142 = arith.addf %138, %141 : vector<1x64xf32>
    %143 = vector.extract_strided_slice %129 {offsets = [3, 0], sizes = [1, 16], strides = [1, 1]} : vector<16x16xbf16> to vector<1x16xbf16>
    %c48_90 = arith.constant 48 : index
    %c0_91 = arith.constant 0 : index
    %144 = vector.load %arg10[%c48_90, %c0_91] : memref<144x64xbf16, #tpu.memory_space<vmem>>, vector<16x64xbf16>
    %cst_92 = arith.constant dense<0.000000e+00> : vector<1x64xf32>
    %145 = tpu.matmul %143, %144, %cst_92 {dimension_numbers = #tpu.dot_dimension_numbers<[1], [0], [0], [1], [0, 0, 1, 1], [], []>} : vector<1x16xbf16>, vector<16x64xbf16>, vector<1x64xf32> -> vector<1x64xf32>
    %146 = arith.addf %142, %145 : vector<1x64xf32>
    %147 = vector.extract_strided_slice %129 {offsets = [4, 0], sizes = [1, 16], strides = [1, 1]} : vector<16x16xbf16> to vector<1x16xbf16>
    %c64_93 = arith.constant 64 : index
    %c0_94 = arith.constant 0 : index
    %148 = vector.load %arg10[%c64_93, %c0_94] : memref<144x64xbf16, #tpu.memory_space<vmem>>, vector<16x64xbf16>
    %cst_95 = arith.constant dense<0.000000e+00> : vector<1x64xf32>
    %149 = tpu.matmul %147, %148, %cst_95 {dimension_numbers = #tpu.dot_dimension_numbers<[1], [0], [0], [1], [0, 0, 1, 1], [], []>} : vector<1x16xbf16>, vector<16x64xbf16>, vector<1x64xf32> -> vector<1x64xf32>
    %150 = arith.addf %146, %149 : vector<1x64xf32>
    %151 = vector.extract_strided_slice %129 {offsets = [5, 0], sizes = [1, 16], strides = [1, 1]} : vector<16x16xbf16> to vector<1x16xbf16>
    %c80_96 = arith.constant 80 : index
    %c0_97 = arith.constant 0 : index
    %152 = vector.load %arg10[%c80_96, %c0_97] : memref<144x64xbf16, #tpu.memory_space<vmem>>, vector<16x64xbf16>
    %cst_98 = arith.constant dense<0.000000e+00> : vector<1x64xf32>
    %153 = tpu.matmul %151, %152, %cst_98 {dimension_numbers = #tpu.dot_dimension_numbers<[1], [0], [0], [1], [0, 0, 1, 1], [], []>} : vector<1x16xbf16>, vector<16x64xbf16>, vector<1x64xf32> -> vector<1x64xf32>
    %154 = arith.addf %150, %153 : vector<1x64xf32>
    %155 = vector.extract_strided_slice %129 {offsets = [6, 0], sizes = [1, 16], strides = [1, 1]} : vector<16x16xbf16> to vector<1x16xbf16>
    %c96_99 = arith.constant 96 : index
    %c0_100 = arith.constant 0 : index
    %156 = vector.load %arg10[%c96_99, %c0_100] : memref<144x64xbf16, #tpu.memory_space<vmem>>, vector<16x64xbf16>
    %cst_101 = arith.constant dense<0.000000e+00> : vector<1x64xf32>
    %157 = tpu.matmul %155, %156, %cst_101 {dimension_numbers = #tpu.dot_dimension_numbers<[1], [0], [0], [1], [0, 0, 1, 1], [], []>} : vector<1x16xbf16>, vector<16x64xbf16>, vector<1x64xf32> -> vector<1x64xf32>
    %158 = arith.addf %154, %157 : vector<1x64xf32>
    %159 = vector.extract_strided_slice %129 {offsets = [7, 0], sizes = [1, 16], strides = [1, 1]} : vector<16x16xbf16> to vector<1x16xbf16>
    %c112_102 = arith.constant 112 : index
    %c0_103 = arith.constant 0 : index
    %160 = vector.load %arg10[%c112_102, %c0_103] : memref<144x64xbf16, #tpu.memory_space<vmem>>, vector<16x64xbf16>
    %cst_104 = arith.constant dense<0.000000e+00> : vector<1x64xf32>
    %161 = tpu.matmul %159, %160, %cst_104 {dimension_numbers = #tpu.dot_dimension_numbers<[1], [0], [0], [1], [0, 0, 1, 1], [], []>} : vector<1x16xbf16>, vector<16x64xbf16>, vector<1x64xf32> -> vector<1x64xf32>
    %162 = arith.addf %158, %161 : vector<1x64xf32>
    %163 = vector.extract_strided_slice %129 {offsets = [8, 0], sizes = [1, 16], strides = [1, 1]} : vector<16x16xbf16> to vector<1x16xbf16>
    %c128_105 = arith.constant 128 : index
    %c0_106 = arith.constant 0 : index
    %164 = vector.load %arg10[%c128_105, %c0_106] : memref<144x64xbf16, #tpu.memory_space<vmem>>, vector<16x64xbf16>
    %cst_107 = arith.constant dense<0.000000e+00> : vector<1x64xf32>
    %165 = tpu.matmul %163, %164, %cst_107 {dimension_numbers = #tpu.dot_dimension_numbers<[1], [0], [0], [1], [0, 0, 1, 1], [], []>} : vector<1x16xbf16>, vector<16x64xbf16>, vector<1x64xf32> -> vector<1x64xf32>
    %166 = arith.addf %162, %165 : vector<1x64xf32>
    %c0_108 = arith.constant 0 : index
    %c0_109 = arith.constant 0 : index
    %167 = vector.load %arg11[%c0_108, %c0_109] : memref<1x64xf32, #tpu.memory_space<vmem>>, vector<1x64xf32>
    %168 = arith.addf %166, %167 : vector<1x64xf32>
    %cst_110 = arith.constant 0.000000e+00 : f32
    %169 = vector.broadcast %cst_110 : f32 to vector<1x64xf32>
    %170 = arith.maximumf %168, %169 : vector<1x64xf32>
    %171 = arith.truncf %170 : vector<1x64xf32> to vector<1x64xbf16>
    %c0_111 = arith.constant 0 : index
    %c0_112 = arith.constant 0 : index
    %172 = vector.load %arg12[%c0_111, %c0_112] : memref<64x384xbf16, #tpu.memory_space<vmem>>, vector<64x384xbf16>
    %cst_113 = arith.constant dense<0.000000e+00> : vector<1x384xf32>
    %173 = tpu.matmul %171, %172, %cst_113 {dimension_numbers = #tpu.dot_dimension_numbers<[1], [0], [0], [1], [0, 0, 1, 1], [], []>} : vector<1x64xbf16>, vector<64x384xbf16>, vector<1x384xf32> -> vector<1x384xf32>
    %c0_114 = arith.constant 0 : index
    %c0_115 = arith.constant 0 : index
    %174 = vector.load %arg13[%c0_114, %c0_115] : memref<1x384xf32, #tpu.memory_space<vmem>>, vector<1x384xf32>
    %175 = arith.addf %173, %174 : vector<1x384xf32>
    %176 = vector.extract_strided_slice %175 {offsets = [0, 256], sizes = [1, 64], strides = [1, 1]} : vector<1x384xf32> to vector<1x64xf32>
    %177 = vector.extract_strided_slice %175 {offsets = [0, 320], sizes = [1, 64], strides = [1, 1]} : vector<1x384xf32> to vector<1x64xf32>
    %178 = arith.subf %176, %177 : vector<1x64xf32>
    %179 = vector.extract_strided_slice %175 {offsets = [0, 0], sizes = [1, 64], strides = [1, 1]} : vector<1x384xf32> to vector<1x64xf32>
    %180 = arith.addf %179, %178 : vector<1x64xf32>
    %cst_116 = arith.constant dense<0xFF800000> : vector<1xf32>
    %181 = vector.multi_reduction <maximumf>, %180, %cst_116 [1] : vector<1x64xf32> to vector<1xf32>
    %182 = vector.shape_cast %181 : vector<1xf32> to vector<1x1xf32>
    %183 = vector.broadcast %182 : vector<1x1xf32> to vector<1x64xf32>
    %184 = arith.subf %180, %183 : vector<1x64xf32>
    %185 = math.exp %184 : vector<1x64xf32>
    %cst_117 = arith.constant dense<0.000000e+00> : vector<1xf32>
    %186 = vector.multi_reduction <add>, %185, %cst_117 [1] : vector<1x64xf32> to vector<1xf32>
    %187 = vector.shape_cast %186 : vector<1xf32> to vector<1x1xf32>
    %188 = vector.broadcast %187 : vector<1x1xf32> to vector<1x64xf32>
    %189 = arith.divf %185, %188 : vector<1x64xf32>
    %190 = vector.extract_strided_slice %175 {offsets = [0, 64], sizes = [1, 64], strides = [1, 1]} : vector<1x384xf32> to vector<1x64xf32>
    %191 = arith.addf %190, %178 : vector<1x64xf32>
    %cst_118 = arith.constant dense<0xFF800000> : vector<1xf32>
    %192 = vector.multi_reduction <maximumf>, %191, %cst_118 [1] : vector<1x64xf32> to vector<1xf32>
    %193 = vector.shape_cast %192 : vector<1xf32> to vector<1x1xf32>
    %194 = vector.broadcast %193 : vector<1x1xf32> to vector<1x64xf32>
    %195 = arith.subf %191, %194 : vector<1x64xf32>
    %196 = math.exp %195 : vector<1x64xf32>
    %cst_119 = arith.constant dense<0.000000e+00> : vector<1xf32>
    %197 = vector.multi_reduction <add>, %196, %cst_119 [1] : vector<1x64xf32> to vector<1xf32>
    %198 = vector.shape_cast %197 : vector<1xf32> to vector<1x1xf32>
    %199 = vector.broadcast %198 : vector<1x1xf32> to vector<1x64xf32>
    %200 = arith.divf %196, %199 : vector<1x64xf32>
    %201 = vector.extract_strided_slice %175 {offsets = [0, 128], sizes = [1, 64], strides = [1, 1]} : vector<1x384xf32> to vector<1x64xf32>
    %202 = arith.addf %201, %178 : vector<1x64xf32>
    %cst_120 = arith.constant dense<0xFF800000> : vector<1xf32>
    %203 = vector.multi_reduction <maximumf>, %202, %cst_120 [1] : vector<1x64xf32> to vector<1xf32>
    %204 = vector.shape_cast %203 : vector<1xf32> to vector<1x1xf32>
    %205 = vector.broadcast %204 : vector<1x1xf32> to vector<1x64xf32>
    %206 = arith.subf %202, %205 : vector<1x64xf32>
    %207 = math.exp %206 : vector<1x64xf32>
    %cst_121 = arith.constant dense<0.000000e+00> : vector<1xf32>
    %208 = vector.multi_reduction <add>, %207, %cst_121 [1] : vector<1x64xf32> to vector<1xf32>
    %209 = vector.shape_cast %208 : vector<1xf32> to vector<1x1xf32>
    %210 = vector.broadcast %209 : vector<1x1xf32> to vector<1x64xf32>
    %211 = arith.divf %207, %210 : vector<1x64xf32>
    %212 = vector.extract_strided_slice %175 {offsets = [0, 192], sizes = [1, 64], strides = [1, 1]} : vector<1x384xf32> to vector<1x64xf32>
    %213 = arith.addf %212, %178 : vector<1x64xf32>
    %cst_122 = arith.constant dense<0xFF800000> : vector<1xf32>
    %214 = vector.multi_reduction <maximumf>, %213, %cst_122 [1] : vector<1x64xf32> to vector<1xf32>
    %215 = vector.shape_cast %214 : vector<1xf32> to vector<1x1xf32>
    %216 = vector.broadcast %215 : vector<1x1xf32> to vector<1x64xf32>
    %217 = arith.subf %213, %216 : vector<1x64xf32>
    %218 = math.exp %217 : vector<1x64xf32>
    %cst_123 = arith.constant dense<0.000000e+00> : vector<1xf32>
    %219 = vector.multi_reduction <add>, %218, %cst_123 [1] : vector<1x64xf32> to vector<1xf32>
    %220 = vector.shape_cast %219 : vector<1xf32> to vector<1x1xf32>
    %221 = vector.broadcast %220 : vector<1x1xf32> to vector<1x64xf32>
    %222 = arith.divf %218, %221 : vector<1x64xf32>
    %223 = tpu.concatenate %189, %200, %211, %222 in 1 : vector<1x64xf32>, vector<1x64xf32>, vector<1x64xf32>, vector<1x64xf32> -> vector<1x256xf32>
    %c0_124 = arith.constant 0 : index
    %c0_125 = arith.constant 0 : index
    %c0_126 = arith.constant 0 : index
    %224 = vector.load %arg14[%c0_124, %c0_125, %c0_126] : memref<1x1x256xf32, #tpu.memory_space<vmem>>, vector<1x1x256xf32>
    %225 = vector.shape_cast %224 : vector<1x1x256xf32> to vector<1x256xf32>
    %226 = vector.shape_cast %223 : vector<1x256xf32> to vector<1x1x256xf32>
    tpu.vector_store %arg14[%c0_124, %c0_125, %c0_126], %226 {strides = array<i32>} : memref<1x1x256xf32, #tpu.memory_space<vmem>>, vector<1x1x256xf32>,
    return
  }
  func.func @transform_0(%arg0: i32) -> (i32, i32, i32) {
    %c0_i32 = arith.constant 0 : i32
    %c0_i32_0 = arith.constant 0 : i32
    %c0_i32_1 = arith.constant 0 : i32
    return %arg0, %c0_i32, %c0_i32_0 : i32, i32, i32
  }
  func.func @transform_1(%arg0: i32) -> (i32, i32) {
    %c0_i32 = arith.constant 0 : i32
    %c0_i32_0 = arith.constant 0 : i32
    %c0_i32_1 = arith.constant 0 : i32
    return %c0_i32, %c0_i32_0 : i32, i32
  }
  func.func @transform_2(%arg0: i32) -> (i32, i32) {
    %c0_i32 = arith.constant 0 : i32
    %c0_i32_0 = arith.constant 0 : i32
    %c0_i32_1 = arith.constant 0 : i32
    return %c0_i32, %c0_i32_0 : i32, i32
  }
  func.func @transform_3(%arg0: i32) -> (i32, i32) {
    %c0_i32 = arith.constant 0 : i32
    %c0_i32_0 = arith.constant 0 : i32
    %c0_i32_1 = arith.constant 0 : i32
    return %c0_i32, %c0_i32_0 : i32, i32
  }
  func.func @transform_4(%arg0: i32) -> (i32, i32) {
    %c0_i32 = arith.constant 0 : i32
    %c0_i32_0 = arith.constant 0 : i32
    %c0_i32_1 = arith.constant 0 : i32
    return %c0_i32, %c0_i32_0 : i32, i32
  }
  func.func @transform_5(%arg0: i32) -> (i32, i32) {
    %c0_i32 = arith.constant 0 : i32
    %c0_i32_0 = arith.constant 0 : i32
    %c0_i32_1 = arith.constant 0 : i32
    return %c0_i32, %c0_i32_0 : i32, i32
  }
  func.func @transform_6(%arg0: i32) -> (i32, i32) {
    %c0_i32 = arith.constant 0 : i32
    %c0_i32_0 = arith.constant 0 : i32
    %c0_i32_1 = arith.constant 0 : i32
    return %c0_i32, %c0_i32_0 : i32, i32
  }
  func.func @transform_7(%arg0: i32) -> (i32, i32) {
    %c0_i32 = arith.constant 0 : i32
    %c0_i32_0 = arith.constant 0 : i32
    %c0_i32_1 = arith.constant 0 : i32
    return %c0_i32, %c0_i32_0 : i32, i32
  }
  func.func @transform_8(%arg0: i32) -> (i32, i32) {
    %c0_i32 = arith.constant 0 : i32
    %c0_i32_0 = arith.constant 0 : i32
    %c0_i32_1 = arith.constant 0 : i32
    return %c0_i32, %c0_i32_0 : i32, i32
  }
  func.func @transform_9(%arg0: i32) -> (i32, i32) {
    %c0_i32 = arith.constant 0 : i32
    %c0_i32_0 = arith.constant 0 : i32
    %c0_i32_1 = arith.constant 0 : i32
    return %c0_i32, %c0_i32_0 : i32, i32
  }
  func.func @transform_10(%arg0: i32) -> (i32, i32) {
    %c0_i32 = arith.constant 0 : i32
    %c0_i32_0 = arith.constant 0 : i32
    %c0_i32_1 = arith.constant 0 : i32
    return %c0_i32, %c0_i32_0 : i32, i32
  }
  func.func @transform_11(%arg0: i32) -> (i32, i32) {
    %c0_i32 = arith.constant 0 : i32
    %c0_i32_0 = arith.constant 0 : i32
    %c0_i32_1 = arith.constant 0 : i32
    return %c0_i32, %c0_i32_0 : i32, i32
  }
  func.func @transform_12(%arg0: i32) -> (i32, i32) {
    %c0_i32 = arith.constant 0 : i32
    %c0_i32_0 = arith.constant 0 : i32
    %c0_i32_1 = arith.constant 0 : i32
    return %c0_i32, %c0_i32_0 : i32, i32
  }
  func.func @transform_13(%arg0: i32) -> (i32, i32, i32) {
    %c0_i32 = arith.constant 0 : i32
    %c0_i32_0 = arith.constant 0 : i32
    %c0_i32_1 = arith.constant 0 : i32
    return %arg0, %c0_i32, %c0_i32_0 : i32, i32, i32
  }
}

</mosaic_0001>

<llo_original>
// kernel: qnetwork_forward.1
$region0: #{qnetwork_forward.1}
  #allocation0 [shape = 'u32[]', space=smem, size = 0x4, offset = 0x4, fixed_abs, tag = 'smem constant byte address 0x4 - core index']
  #allocation1 [shape = 'u32[144,128]{1,0:T(1,128)}', space=vmem, size = 0x12000, scoped, tag = 'internal scratch']
  %s0 = inlined_call_operand.vmem [shape: bf16[2,144,256], index: 0, kind: input, shape index: {}]
  %s1 = inlined_call_operand.vmem [shape: bf16[256,8], index: 1, kind: input, shape index: {}]
  %s2 = inlined_call_operand.vmem [shape: f32[1,8], index: 2, kind: input, shape index: {}]
  %s3 = inlined_call_operand.vmem [shape: bf16[512,144], index: 3, kind: input, shape index: {}]
  %s4 = inlined_call_operand.vmem [shape: bf16[128,16], index: 4, kind: input, shape index: {}]
  %s5 = inlined_call_operand.vmem [shape: f32[1,16], index: 5, kind: input, shape index: {}]
  %s6 = inlined_call_operand.vmem [shape: bf16[144,32], index: 6, kind: input, shape index: {}]
  %s7 = inlined_call_operand.vmem [shape: bf16[144,16], index: 7, kind: input, shape index: {}]
  %s8 = inlined_call_operand.vmem [shape: f32[1,16], index: 8, kind: input, shape index: {}]
  %s9 = inlined_call_operand.vmem [shape: bf16[144,64], index: 9, kind: input, shape index: {}]
  %s10 = inlined_call_operand.vmem [shape: f32[1,64], index: 10, kind: input, shape index: {}]
  %s11 = inlined_call_operand.vmem [shape: bf16[64,384], index: 11, kind: input, shape index: {}]
  %s12 = inlined_call_operand.vmem [shape: f32[1,384], index: 12, kind: input, shape index: {}]
  %s13 = inlined_call_operand.vmem [shape: f32[2,1,256], index: 13, kind: output, shape index: {}]
  %s14 = sld [smem:[#allocation0]]
  $region85: #{qnetwork_forward.1} parent=0
    _
  %s16 = ssub.s32 1, %s14
  %s17 = scalar_select 0, %s16, %s14
  loop: start=0, step=1, limit=4
  $region2: #{qnetwork_forward.1} parent=0 // loop_pre_header
    _
  $region3: #{qnetwork_forward.1} parent=0 // loop_header
    %s19 = sphi 0, %s23
    %p20 = scmp.ge.s32.totalorder %s19, 4
    %s29 = sphi 0, %s31
    %s32 = sphi 0, %s29
    %s33 = sphi 0, %s32
    %s49 = sphi 0, %s33
    %s53 = sphi 0, %s53
    %s55 = sphi 0, %s53
    %s56 = sphi 0, %s55
    %s70 = sphi 0, %s56
    %s74 = sphi 0, %s74
    %s76 = sphi 0, %s74
    %s77 = sphi 0, %s76
    %s91 = sphi 0, %s77
    %s95 = sphi 0, %s95
    %s97 = sphi 0, %s95
    %s98 = sphi 0, %s97
    %s112 = sphi 0, %s98
    %s116 = sphi 0, %s116
    %s118 = sphi 0, %s116
    %s119 = sphi 0, %s118
    %s133 = sphi 0, %s119
    %s137 = sphi 0, %s137
    %s139 = sphi 0, %s137
    %s140 = sphi 0, %s139
    %s154 = sphi 0, %s140
    %s158 = sphi 0, %s158
    %s160 = sphi 0, %s158
    %s161 = sphi 0, %s160
    %s175 = sphi 0, %s161
    %s179 = sphi 0, %s179
    %s181 = sphi 0, %s179
    %s182 = sphi 0, %s181
    %s196 = sphi 0, %s182
    %s200 = sphi 0, %s200
    %s202 = sphi 0, %s200
    %s203 = sphi 0, %s202
    %s217 = sphi 0, %s203
    %s221 = sphi 0, %s221
    %s223 = sphi 0, %s221
    %s224 = sphi 0, %s223
    %s238 = sphi 0, %s224
    %s242 = sphi 0, %s242
    %s244 = sphi 0, %s242
    %s245 = sphi 0, %s244
    %s259 = sphi 0, %s245
    %s263 = sphi 0, %s263
    %s265 = sphi 0, %s263
    %s266 = sphi 0, %s265
    %s280 = sphi 0, %s266
    %s284 = sphi 0, %s284
    %s286 = sphi 0, %s284
    %s287 = sphi 0, %s286
    %s301 = sphi 0, %s287
    %s307 = sphi 0, %s309
    %s310 = sphi 0, %s307
    %s311 = sphi 0, %s310
    %s327 = sphi 0, %s311
  $region4: #{qnetwork_forward.1} parent=0 // loop_header_branch
    %22 = sbr.rel (%p20) target = $region8
  $region5: #{qnetwork_forward.1} parent=0 // loop_body
    %s24 = ssub.s32 %s19, 1
    %s25 = ssub.s32 %s19, 2
    %s26 = sadd.s32 %s19, 1
    %s27 = ssub.s32 %s19, %s26
    %p28 = scmp.eq.s32.totalorder %s27, 0
    %s30 = sadd.s32 %s29, 1
    %s31 = scalar_select %p28, %s29, %s30
    %p34 = pneg %p28
    %p35 = scmp.eq.s32.totalorder %s19, 1
    %p36 = por %p34, %p35
    %p37 = scmp.ne.s32.totalorder %s29, %s32
    %p38 = scmp.eq.s32.totalorder %s19, 0
    %p39 = por %p37, %p38
    %p40 = scmp.ne.s32.totalorder %s29, %s32
    %p41 = scmp.eq.s32.totalorder %s24, 1
    %p42 = por %p40, %p41
    %p43 = scmp.ne.s32.totalorder %s32, %s33
    %p44 = scmp.eq.s32.totalorder %s24, 0
    %p45 = por %p43, %p44
    %p46 = scmp.ne.s32.totalorder %s32, %s33
    %p47 = scmp.eq.s32.totalorder %s25, 1
    %p48 = por %p46, %p47
    %p50 = scmp.ne.s32.totalorder %s33, %s49
    %p51 = scmp.eq.s32.totalorder %s25, 0
    %p52 = por %p50, %p51
    %s54 = sadd.s32 %s53, 1
    %p57 = scmp.eq.s32.totalorder %s19, 1
    %p58 = scmp.ne.s32.totalorder %s53, %s55
    %p59 = scmp.eq.s32.totalorder %s19, 0
    %p60 = por %p58, %p59
    %p61 = scmp.ne.s32.totalorder %s53, %s55
    %p62 = scmp.eq.s32.totalorder %s24, 1
    %p63 = por %p61, %p62
    %p64 = scmp.ne.s32.totalorder %s55, %s56
    %p65 = scmp.eq.s32.totalorder %s24, 0
    %p66 = por %p64, %p65
    %p67 = scmp.ne.s32.totalorder %s55, %s56
    %p68 = scmp.eq.s32.totalorder %s25, 1
    %p69 = por %p67, %p68
    %p71 = scmp.ne.s32.totalorder %s56, %s70
    %p72 = scmp.eq.s32.totalorder %s25, 0
    %p73 = por %p71, %p72
    %s75 = sadd.s32 %s74, 1
    %p78 = scmp.eq.s32.totalorder %s19, 1
    %p79 = scmp.ne.s32.totalorder %s74, %s76
    %p80 = scmp.eq.s32.totalorder %s19, 0
    %p81 = por %p79, %p80
    %p82 = scmp.ne.s32.totalorder %s74, %s76
    %p83 = scmp.eq.s32.totalorder %s24, 1
    %p84 = por %p82, %p83
    %p85 = scmp.ne.s32.totalorder %s76, %s77
    %p86 = scmp.eq.s32.totalorder %s24, 0
    %p87 = por %p85, %p86
    %p88 = scmp.ne.s32.totalorder %s76, %s77
    %p89 = scmp.eq.s32.totalorder %s25, 1
    %p90 = por %p88, %p89
    %p92 = scmp.ne.s32.totalorder %s77, %s91
    %p93 = scmp.eq.s32.totalorder %s25, 0
    %p94 = por %p92, %p93
    %s96 = sadd.s32 %s95, 1
    %p99 = scmp.eq.s32.totalorder %s19, 1
    %p100 = scmp.ne.s32.totalorder %s95, %s97
    %p101 = scmp.eq.s32.totalorder %s19, 0
    %p102 = por %p100, %p101
    %p103 = scmp.ne.s32.totalorder %s95, %s97
    %p104 = scmp.eq.s32.totalorder %s24, 1
    %p105 = por %p103, %p104
    %p106 = scmp.ne.s32.totalorder %s97, %s98
    %p107 = scmp.eq.s32.totalorder %s24, 0
    %p108 = por %p106, %p107
    %p109 = scmp.ne.s32.totalorder %s97, %s98
    %p110 = scmp.eq.s32.totalorder %s25, 1
    %p111 = por %p109, %p110
    %p113 = scmp.ne.s32.totalorder %s98, %s112
    %p114 = scmp.eq.s32.totalorder %s25, 0
    %p115 = por %p113, %p114
    %s117 = sadd.s32 %s116, 1
    %p120 = scmp.eq.s32.totalorder %s19, 1
    %p121 = scmp.ne.s32.totalorder %s116, %s118
    %p122 = scmp.eq.s32.totalorder %s19, 0
    %p123 = por %p121, %p122
    %p124 = scmp.ne.s32.totalorder %s116, %s118
    %p125 = scmp.eq.s32.totalorder %s24, 1
    %p126 = por %p124, %p125
    %p127 = scmp.ne.s32.totalorder %s118, %s119
    %p128 = scmp.eq.s32.totalorder %s24, 0
    %p129 = por %p127, %p128
    %p130 = scmp.ne.s32.totalorder %s118, %s119
    %p131 = scmp.eq.s32.totalorder %s25, 1
    %p132 = por %p130, %p131
    %p134 = scmp.ne.s32.totalorder %s119, %s133
    %p135 = scmp.eq.s32.totalorder %s25, 0
    %p136 = por %p134, %p135
    %s138 = sadd.s32 %s137, 1
    %p141 = scmp.eq.s32.totalorder %s19, 1
    %p142 = scmp.ne.s32.totalorder %s137, %s139
    %p143 = scmp.eq.s32.totalorder %s19, 0
    %p144 = por %p142, %p143
    %p145 = scmp.ne.s32.totalorder %s137, %s139
    %p146 = scmp.eq.s32.totalorder %s24, 1
    %p147 = por %p145, %p146
    %p148 = scmp.ne.s32.totalorder %s139, %s140
    %p149 = scmp.eq.s32.totalorder %s24, 0
    %p150 = por %p148, %p149
    %p151 = scmp.ne.s32.totalorder %s139, %s140
    %p152 = scmp.eq.s32.totalorder %s25, 1
    %p153 = por %p151, %p152
    %p155 = scmp.ne.s32.totalorder %s140, %s154
    %p156 = scmp.eq.s32.totalorder %s25, 0
    %p157 = por %p155, %p156
    %s159 = sadd.s32 %s158, 1
    %p162 = scmp.eq.s32.totalorder %s19, 1
    %p163 = scmp.ne.s32.totalorder %s158, %s160
    %p164 = scmp.eq.s32.totalorder %s19, 0
    %p165 = por %p163, %p164
    %p166 = scmp.ne.s32.totalorder %s158, %s160
    %p167 = scmp.eq.s32.totalorder %s24, 1
    %p168 = por %p166, %p167
    %p169 = scmp.ne.s32.totalorder %s160, %s161
    %p170 = scmp.eq.s32.totalorder %s24, 0
    %p171 = por %p169, %p170
    %p172 = scmp.ne.s32.totalorder %s160, %s161
    %p173 = scmp.eq.s32.totalorder %s25, 1
    %p174 = por %p172, %p173
    %p176 = scmp.ne.s32.totalorder %s161, %s175
    %p177 = scmp.eq.s32.totalorder %s25, 0
    %p178 = por %p176, %p177
    %s180 = sadd.s32 %s179, 1
    %p183 = scmp.eq.s32.totalorder %s19, 1
    %p184 = scmp.ne.s32.totalorder %s179, %s181
    %p185 = scmp.eq.s32.totalorder %s19, 0
    %p186 = por %p184, %p185
    %p187 = scmp.ne.s32.totalorder %s179, %s181
    %p188 = scmp.eq.s32.totalorder %s24, 1
    %p189 = por %p187, %p188
    %p190 = scmp.ne.s32.totalorder %s181, %s182
    %p191 = scmp.eq.s32.totalorder %s24, 0
    %p192 = por %p190, %p191
    %p193 = scmp.ne.s32.totalorder %s181, %s182
    %p194 = scmp.eq.s32.totalorder %s25, 1
    %p195 = por %p193, %p194
    %p197 = scmp.ne.s32.totalorder %s182, %s196
    %p198 = scmp.eq.s32.totalorder %s25, 0
    %p199 = por %p197, %p198
    %s201 = sadd.s32 %s200, 1
    %p204 = scmp.eq.s32.totalorder %s19, 1
    %p205 = scmp.ne.s32.totalorder %s200, %s202
    %p206 = scmp.eq.s32.totalorder %s19, 0
    %p207 = por %p205, %p206
    %p208 = scmp.ne.s32.totalorder %s200, %s202
    %p209 = scmp.eq.s32.totalorder %s24, 1
    %p210 = por %p208, %p209
    %p211 = scmp.ne.s32.totalorder %s202, %s203
    %p212 = scmp.eq.s32.totalorder %s24, 0
    %p213 = por %p211, %p212
    %p214 = scmp.ne.s32.totalorder %s202, %s203
    %p215 = scmp.eq.s32.totalorder %s25, 1
    %p216 = por %p214, %p215
    %p218 = scmp.ne.s32.totalorder %s203, %s217
    %p219 = scmp.eq.s32.totalorder %s25, 0
    %p220 = por %p218, %p219
    %s222 = sadd.s32 %s221, 1
    %p225 = scmp.eq.s32.totalorder %s19, 1
    %p226 = scmp.ne.s32.totalorder %s221, %s223
    %p227 = scmp.eq.s32.totalorder %s19, 0
    %p228 = por %p226, %p227
    %p229 = scmp.ne.s32.totalorder %s221, %s223
    %p230 = scmp.eq.s32.totalorder %s24, 1
    %p231 = por %p229, %p230
    %p232 = scmp.ne.s32.totalorder %s223, %s224
    %p233 = scmp.eq.s32.totalorder %s24, 0
    %p234 = por %p232, %p233
    %p235 = scmp.ne.s32.totalorder %s223, %s224
    %p236 = scmp.eq.s32.totalorder %s25, 1
    %p237 = por %p235, %p236
    %p239 = scmp.ne.s32.totalorder %s224, %s238
    %p240 = scmp.eq.s32.totalorder %s25, 0
    %p241 = por %p239, %p240
    %s243 = sadd.s32 %s242, 1
    %p246 = scmp.eq.s32.totalorder %s19, 1
    %p247 = scmp.ne.s32.totalorder %s242, %s244
    %p248 = scmp.eq.s32.totalorder %s19, 0
    %p249 = por %p247, %p248
    %p250 = scmp.ne.s32.totalorder %s242, %s244
    %p251 = scmp.eq.s32.totalorder %s24, 1
    %p252 = por %p250, %p251
    %p253 = scmp.ne.s32.totalorder %s244, %s245
    %p254 = scmp.eq.s32.totalorder %s24, 0
    %p255 = por %p253, %p254
    %p256 = scmp.ne.s32.totalorder %s244, %s245
    %p257 = scmp.eq.s32.totalorder %s25, 1
    %p258 = por %p256, %p257
    %p260 = scmp.ne.s32.totalorder %s245, %s259
    %p261 = scmp.eq.s32.totalorder %s25, 0
    %p262 = por %p260, %p261
    %s264 = sadd.s32 %s263, 1
    %p267 = scmp.eq.s32.totalorder %s19, 1
    %p268 = scmp.ne.s32.totalorder %s263, %s265
    %p269 = scmp.eq.s32.totalorder %s19, 0
    %p270 = por %p268, %p269
    %p271 = scmp.ne.s32.totalorder %s263, %s265
    %p272 = scmp.eq.s32.totalorder %s24, 1
    %p273 = por %p271, %p272
    %p274 = scmp.ne.s32.totalorder %s265, %s266
    %p275 = scmp.eq.s32.totalorder %s24, 0
    %p276 = por %p274, %p275
    %p277 = scmp.ne.s32.totalorder %s265, %s266
    %p278 = scmp.eq.s32.totalorder %s25, 1
    %p279 = por %p277, %p278
    %p281 = scmp.ne.s32.totalorder %s266, %s280
    %p282 = scmp.eq.s32.totalorder %s25, 0
    %p283 = por %p281, %p282
    %s285 = sadd.s32 %s284, 1
    %p288 = scmp.eq.s32.totalorder %s19, 1
    %p289 = scmp.ne.s32.totalorder %s284, %s286
    %p290 = scmp.eq.s32.totalorder %s19, 0
    %p291 = por %p289, %p290
    %p292 = scmp.ne.s32.totalorder %s284, %s286
    %p293 = scmp.eq.s32.totalorder %s24, 1
    %p294 = por %p292, %p293
    %p295 = scmp.ne.s32.totalorder %s286, %s287
    %p296 = scmp.eq.s32.totalorder %s24, 0
    %p297 = por %p295, %p296
    %p298 = scmp.ne.s32.totalorder %s286, %s287
    %p299 = scmp.eq.s32.totalorder %s25, 1
    %p300 = por %p298, %p299
    %p302 = scmp.ne.s32.totalorder %s287, %s301
    %p303 = scmp.eq.s32.totalorder %s25, 0
    %p304 = por %p302, %p303
    %s305 = ssub.s32 %s19, %s26
    %p306 = scmp.eq.s32.totalorder %s305, 0
    %s308 = sadd.s32 %s307, 1
    %s309 = scalar_select %p306, %s307, %s308
    %p312 = pneg %p306
    %p313 = scmp.eq.s32.totalorder %s19, 1
    %p314 = por %p312, %p313
    %p315 = scmp.ne.s32.totalorder %s307, %s310
    %p316 = scmp.eq.s32.totalorder %s19, 0
    %p317 = por %p315, %p316
    %p318 = scmp.ne.s32.totalorder %s307, %s310
    %p319 = scmp.eq.s32.totalorder %s24, 1
    %p320 = por %p318, %p319
    %p321 = scmp.ne.s32.totalorder %s310, %s311
    %p322 = scmp.eq.s32.totalorder %s24, 0
    %p323 = por %p321, %p322
    %p324 = scmp.ne.s32.totalorder %s310, %s311
    %p325 = scmp.eq.s32.totalorder %s25, 1
    %p326 = por %p324, %p325
    %p328 = scmp.ne.s32.totalorder %s311, %s327
    %p329 = scmp.eq.s32.totalorder %s25, 0
    %p330 = por %p328, %p329
    %p331 = scmp.le.s32.totalorder 1, %s19
    %p332 = scmp.lt.s32.totalorder %s19, 3
    %p333 = pnand %p331, %p332
    %p334 = pneg %p333
    // Predicated region
    $region9: #{qnetwork_forward.1} parent=5 // pred_check
      _
    $region10: #{qnetwork_forward.1} parent=5 // pred_check_branch
      %336 = sbr.rel (%p333) target = $region12
    $region11: #{qnetwork_forward.1} parent=5 // pred_region
      %s337 = ssub.s32 %s19, 1
      // Predicated region
      $region13: #{qnetwork_forward.1} parent=11 // pred_check
        %p338 = pneg %p66
      $region14: #{qnetwork_forward.1} parent=11 // pred_check_branch
        %340 = sbr.rel (%p338) target = $region16
      $region15: #{qnetwork_forward.1} parent=11 // pred_region
        _
      $region16: #{qnetwork_forward.1} parent=11 // pred_fallthru
        _
      // Predicated region
      $region17: #{qnetwork_forward.1} parent=11 // pred_check
        %p341 = pneg %p87
      $region18: #{qnetwork_forward.1} parent=11 // pred_check_branch
        %343 = sbr.rel (%p341) target = $region20
      $region19: #{qnetwork_forward.1} parent=11 // pred_region
        _
      $region20: #{qnetwork_forward.1} parent=11 // pred_fallthru
        _
      // Predicated region
      $region21: #{qnetwork_forward.1} parent=11 // pred_check
        %p344 = pneg %p108
      $region22: #{qnetwork_forward.1} parent=11 // pred_check_branch
        %346 = sbr.rel (%p344) target = $region24
      $region23: #{qnetwork_forward.1} parent=11 // pred_region
        _
      $region24: #{qnetwork_forward.1} parent=11 // pred_fallthru
        _
      // Predicated region
      $region25: #{qnetwork_forward.1} parent=11 // pred_check
        %p347 = pneg %p129
      $region26: #{qnetwork_forward.1} parent=11 // pred_check_branch
        %349 = sbr.rel (%p347) target = $region28
      $region27: #{qnetwork_forward.1} parent=11 // pred_region
        _
      $region28: #{qnetwork_forward.1} parent=11 // pred_fallthru
        _
      // Predicated region
      $region29: #{qnetwork_forward.1} parent=11 // pred_check
        %p350 = pneg %p150
      $region30: #{qnetwork_forward.1} parent=11 // pred_check_branch
        %352 = sbr.rel (%p350) target = $region32
      $region31: #{qnetwork_forward.1} parent=11 // pred_region
        _
      $region32: #{qnetwork_forward.1} parent=11 // pred_fallthru
        _
      // Predicated region
      $region33: #{qnetwork_forward.1} parent=11 // pred_check
        %p353 = pneg %p171
      $region34: #{qnetwork_forward.1} parent=11 // pred_check_branch
        %355 = sbr.rel (%p353) target = $region36
      $region35: #{qnetwork_forward.1} parent=11 // pred_region
        _
      $region36: #{qnetwork_forward.1} parent=11 // pred_fallthru
        _
      // Predicated region
      $region37: #{qnetwork_forward.1} parent=11 // pred_check
        %p356 = pneg %p192
      $region38: #{qnetwork_forward.1} parent=11 // pred_check_branch
        %358 = sbr.rel (%p356) target = $region40
      $region39: #{qnetwork_forward.1} parent=11 // pred_region
        _
      $region40: #{qnetwork_forward.1} parent=11 // pred_fallthru
        _
      // Predicated region
      $region41: #{qnetwork_forward.1} parent=11 // pred_check
        %p359 = pneg %p213
      $region42: #{qnetwork_forward.1} parent=11 // pred_check_branch
        %361 = sbr.rel (%p359) target = $region44
      $region43: #{qnetwork_forward.1} parent=11 // pred_region
        _
      $region44: #{qnetwork_forward.1} parent=11 // pred_fallthru
        _
      // Predicated region
      $region45: #{qnetwork_forward.1} parent=11 // pred_check
        %p362 = pneg %p234
      $region46: #{qnetwork_forward.1} parent=11 // pred_check_branch
        %364 = sbr.rel (%p362) target = $region48
      $region47: #{qnetwork_forward.1} parent=11 // pred_region
        _
      $region48: #{qnetwork_forward.1} parent=11 // pred_fallthru
        _
      // Predicated region
      $region49: #{qnetwork_forward.1} parent=11 // pred_check
        %p365 = pneg %p255
      $region50: #{qnetwork_forward.1} parent=11 // pred_check_branch
        %367 = sbr.rel (%p365) target = $region52
      $region51: #{qnetwork_forward.1} parent=11 // pred_region
        _
      $region52: #{qnetwork_forward.1} parent=11 // pred_fallthru
        _
      // Predicated region
      $region53: #{qnetwork_forward.1} parent=11 // pred_check
        %p368 = pneg %p276
      $region54: #{qnetwork_forward.1} parent=11 // pred_check_branch
        %370 = sbr.rel (%p368) target = $region56
      $region55: #{qnetwork_forward.1} parent=11 // pred_region
        _
      $region56: #{qnetwork_forward.1} parent=11 // pred_fallthru
        _
      // Predicated region
      $region57: #{qnetwork_forward.1} parent=11 // pred_check
        %p371 = pneg %p297
      $region58: #{qnetwork_forward.1} parent=11 // pred_check_branch
        %373 = sbr.rel (%p371) target = $region60
      $region59: #{qnetwork_forward.1} parent=11 // pred_region
        _
      $region60: #{qnetwork_forward.1} parent=11 // pred_fallthru
        _
    $region12: #{qnetwork_forward.1} parent=5 // pred_fallthru
      _
    %p374 = scmp.lt.s32.totalorder %s19, 2
    // Predicated region
    $region61: #{qnetwork_forward.1} parent=5 // pred_check
      %p375 = pneg %p374
    $region62: #{qnetwork_forward.1} parent=5 // pred_check_branch
      %377 = sbr.rel (%p375) target = $region64
    $region63: #{qnetwork_forward.1} parent=5 // pred_region
      // Predicated region
      $region65: #{qnetwork_forward.1} parent=63 // pred_check
        %p378 = pneg %p39
      $region66: #{qnetwork_forward.1} parent=63 // pred_check_branch
        %380 = sbr.rel (%p378) target = $region68
      $region67: #{qnetwork_forward.1} parent=63 // pred_region
        %p381 = scmp.lt.s32.totalorder %s19, 1
        %s382 = scalar_select %p381, %s19, 1
        %s383 = smul.addr %s382, 36
        %s384 = smul.addr %s383, 4
        %s385 = scalar_lea.vmem %s0, %s384
      $region68: #{qnetwork_forward.1} parent=63 // pred_fallthru
        _
    $region64: #{qnetwork_forward.1} parent=5 // pred_fallthru
      _
    %p386 = scmp.le.s32.totalorder 1, %s19
    %p387 = scmp.lt.s32.totalorder %s19, 3
    %p388 = pnand %p386, %p387
    %p389 = pneg %p388
    // Predicated region
    $region69: #{qnetwork_forward.1} parent=5 // pred_check
      _
    $region70: #{qnetwork_forward.1} parent=5 // pred_check_branch
      %391 = sbr.rel (%p388) target = $region72
    $region71: #{qnetwork_forward.1} parent=5 // pred_region
      %s392 = ssub.s32 %s19, 1
      %p393 = scmp.lt.s32.totalorder %s24, 1
      %s394 = scalar_select %p393, %s24, 1
      %s395 = smul.addr %s394, 36
      %s396 = smul.addr %s395, 4
      %s397 = scalar_lea.vmem %s0, %s396
      %p398 = pneg %p45
      %p399 = pneg %p42
      %p400 = pneg %p66
      %p401 = pneg %p63
      %p402 = pneg %p87
      %p403 = pneg %p84
      %p404 = pneg %p108
      %p405 = pneg %p105
      %p406 = pneg %p129
      %p407 = pneg %p126
      %p408 = pneg %p150
      %p409 = pneg %p147
      %p410 = pneg %p171
      %p411 = pneg %p168
      %p412 = pneg %p192
      %p413 = pneg %p189
      %p414 = pneg %p213
      %p415 = pneg %p210
      %p416 = pneg %p234
      %p417 = pneg %p231
      %p418 = pneg %p255
      %p419 = pneg %p252
      %p420 = pneg %p276
      %p421 = pneg %p273
      %p422 = pneg %p297
      %p423 = pneg %p294
      %p424 = pneg %p323
      %p425 = pneg %p320
      %p426 = scmp.lt.s32.totalorder %s24, 1
      %s427 = scalar_select %p426, %s24, 1
      %s428 = smul.addr %s427, 2
      %s429 = scalar_lea.vmem %s13, %s428
      %p430 = scmp.lt.s32.totalorder %s24, 1
      %s431 = scalar_select %p430, %s24, 1
      %s432 = smul.addr %s431, 36
      %s433 = smul.addr %s432, 4
      %s434 = scalar_lea.vmem %s0, %s433
      %p435 = scmp.lt.s32.totalorder %s24, 1
      %s436 = scalar_select %p435, %s24, 1
      %s437 = smul.addr %s436, 2
      %s438 = scalar_lea.vmem %s13, %s437
      %v440 = vld [vmem:[%s434] sm:$0xff]
      %v441 = vld [vmem:[%s434 + $0x8] sm:$0xff]
      %v442 = vld [vmem:[%s434 + $0x10] sm:$0xff]
      %v443 = vld [vmem:[%s434 + $0x18] sm:$0xff]
      %v444 = vld [vmem:[%s434 + $0x20] sm:$0xff]
      %v445 = vld [vmem:[%s434 + $0x28] sm:$0xff]
      %v446 = vld [vmem:[%s434 + $0x30] sm:$0xff]
      %v447 = vld [vmem:[%s434 + $0x38] sm:$0xff]
      %v448 = vld [vmem:[%s434 + $0x40] sm:$0xff]
      %v449 = vld [vmem:[%s434 + $0x48] sm:$0xff]
      %v450 = vld [vmem:[%s434 + $0x50] sm:$0xff]
      %v451 = vld [vmem:[%s434 + $0x58] sm:$0xff]
      %v452 = vld [vmem:[%s434 + $0x60] sm:$0xff]
      %v453 = vld [vmem:[%s434 + $0x68] sm:$0xff]
      %v454 = vld [vmem:[%s434 + $0x70] sm:$0xff]
      %v455 = vld [vmem:[%s434 + $0x78] sm:$0xff]
      %v456 = vld [vmem:[%s434 + $0x80] sm:$0xff]
      %v457 = vld [vmem:[%s434 + $0x88] sm:$0xff]
      %v458 = vld [vmem:[%s1] sm:$0xf]
      %v459 = vld [vmem:[%s1 + $0x4] sm:$0xf]
      %v460 = vld [vmem:[%s1 + $0x8] sm:$0xf]
      %v461 = vld [vmem:[%s1 + $0xc] sm:$0xf]
      %v462 = vld [vmem:[%s1 + $0x10] sm:$0xf]
      %v463 = vld [vmem:[%s1 + $0x14] sm:$0xf]
      %v464 = vld [vmem:[%s1 + $0x18] sm:$0xf]
      %v465 = vld [vmem:[%s1 + $0x1c] sm:$0xf]
      %v466 = vld [vmem:[%s1 + $0x20] sm:$0xf]
      %v467 = vld [vmem:[%s1 + $0x24] sm:$0xf]
      %v468 = vld [vmem:[%s1 + $0x28] sm:$0xf]
      %v469 = vld [vmem:[%s1 + $0x2c] sm:$0xf]
      %v470 = vld [vmem:[%s1 + $0x30] sm:$0xf]
      %v471 = vld [vmem:[%s1 + $0x34] sm:$0xf]
      %v472 = vld [vmem:[%s1 + $0x38] sm:$0xf]
      %v473 = vld [vmem:[%s1 + $0x3c] sm:$0xf]
      %v474 = vld [vmem:[%s1 + $0x40] sm:$0xf]
      %v475 = vld [vmem:[%s1 + $0x44] sm:$0xf]
      %v476 = vld [vmem:[%s1 + $0x48] sm:$0xf]
      %v477 = vld [vmem:[%s1 + $0x4c] sm:$0xf]
      %v478 = vld [vmem:[%s1 + $0x50] sm:$0xf]
      %v479 = vld [vmem:[%s1 + $0x54] sm:$0xf]
      %v480 = vld [vmem:[%s1 + $0x58] sm:$0xf]
      %v481 = vld [vmem:[%s1 + $0x5c] sm:$0xf]
      %v482 = vld [vmem:[%s1 + $0x60] sm:$0xf]
      %v483 = vld [vmem:[%s1 + $0x64] sm:$0xf]
      %v484 = vld [vmem:[%s1 + $0x68] sm:$0xf]
      %v485 = vld [vmem:[%s1 + $0x6c] sm:$0xf]
      %v486 = vld [vmem:[%s1 + $0x70] sm:$0xf]
      %v487 = vld [vmem:[%s1 + $0x74] sm:$0xf]
      %v488 = vld [vmem:[%s1 + $0x78] sm:$0xf]
      %v489 = vld [vmem:[%s1 + $0x7c] sm:$0xf]
      %v490 = vld [vmem:[%s2] sm:$0x1]
      %v492 = vlaneseq
      %v493 = vshrl.u32 %v492, 7
      %v494 = vsub.s32 0, %v493
      %v495 = vrot.slane %v490, %v494
      %v515 = vunpack.c.l.b16 %v440
      %v516 = vunpack.c.h.b16 %v440
      %v517 = vunpack.c.l.b16 %v441
      %v518 = vunpack.c.h.b16 %v441
      %v519 = vunpack.c.l.b16 %v442
      %v520 = vunpack.c.h.b16 %v442
      %v521 = vunpack.c.l.b16 %v443
      %v522 = vunpack.c.h.b16 %v443
      %v523 = vunpack.c.l.b16 %v444
      %v524 = vunpack.c.h.b16 %v444
      %v525 = vunpack.c.l.b16 %v445
      %v526 = vunpack.c.h.b16 %v445
      %v527 = vunpack.c.l.b16 %v446
      %v528 = vunpack.c.h.b16 %v446
      %v529 = vunpack.c.l.b16 %v447
      %v530 = vunpack.c.h.b16 %v447
      %v531 = vunpack.c.l.b16 %v448
      %v532 = vunpack.c.h.b16 %v448
      %v533 = vunpack.c.l.b16 %v449
      %v534 = vunpack.c.h.b16 %v449
      %v535 = vunpack.c.l.b16 %v450
      %v536 = vunpack.c.h.b16 %v450
      %v537 = vunpack.c.l.b16 %v451
      %v538 = vunpack.c.h.b16 %v451
      %v539 = vunpack.c.l.b16 %v452
      %v540 = vunpack.c.h.b16 %v452
      %v541 = vunpack.c.l.b16 %v453
      %v542 = vunpack.c.h.b16 %v453
      %v543 = vunpack.c.l.b16 %v454
      %v544 = vunpack.c.h.b16 %v454
      %v545 = vunpack.c.l.b16 %v455
      %v546 = vunpack.c.h.b16 %v455
      %v547 = vunpack.c.l.b16 %v456
      %v548 = vunpack.c.h.b16 %v456
      %v549 = vunpack.c.l.b16 %v457
      %v550 = vunpack.c.h.b16 %v457
      %v551 = vpack.c.b16 %v517, %v515
      %v552 = vpack.c.b16 %v518, %v516
      %v553 = vpack.c.b16 %v521, %v519
      %v554 = vpack.c.b16 %v522, %v520
      %v555 = vpack.c.b16 %v525, %v523
      %v556 = vpack.c.b16 %v526, %v524
      %v557 = vpack.c.b16 %v529, %v527
      %v558 = vpack.c.b16 %v530, %v528
      %v559 = vpack.c.b16 %v533, %v531
      %v560 = vpack.c.b16 %v534, %v532
      %v561 = vpack.c.b16 %v537, %v535
      %v562 = vpack.c.b16 %v538, %v536
      %v563 = vpack.c.b16 %v541, %v539
      %v564 = vpack.c.b16 %v542, %v540
      %v565 = vpack.c.b16 %v545, %v543
      %v566 = vpack.c.b16 %v546, %v544
      %v567 = vpack.c.b16 %v549, %v547
      %v568 = vpack.c.b16 %v550, %v548
      %v619 = vunpack.c.l.b16 %v458
      %v620 = vunpack.c.l.b16 %v459
      %v621 = vunpack.c.l.b16 %v460
      %v622 = vunpack.c.l.b16 %v461
      %v623 = vunpack.c.l.b16 %v462
      %v624 = vunpack.c.l.b16 %v463
      %v625 = vunpack.c.l.b16 %v464
      %v626 = vunpack.c.l.b16 %v465
      %v627 = vunpack.c.l.b16 %v466
      %v628 = vunpack.c.l.b16 %v467
      %v629 = vunpack.c.l.b16 %v468
      %v630 = vunpack.c.l.b16 %v469
      %v631 = vunpack.c.l.b16 %v470
      %v632 = vunpack.c.l.b16 %v471
      %v633 = vunpack.c.l.b16 %v472
      %v634 = vunpack.c.l.b16 %v473
      %v635 = vunpack.c.l.b16 %v474
      %v636 = vunpack.c.l.b16 %v475
      %v637 = vunpack.c.l.b16 %v476
      %v638 = vunpack.c.l.b16 %v477
      %v639 = vunpack.c.l.b16 %v478
      %v640 = vunpack.c.l.b16 %v479
      %v641 = vunpack.c.l.b16 %v480
      %v642 = vunpack.c.l.b16 %v481
      %v643 = vunpack.c.l.b16 %v482
      %v644 = vunpack.c.l.b16 %v483
      %v645 = vunpack.c.l.b16 %v484
      %v646 = vunpack.c.l.b16 %v485
      %v647 = vunpack.c.l.b16 %v486
      %v648 = vunpack.c.l.b16 %v487
      %v649 = vunpack.c.l.b16 %v488
      %v650 = vunpack.c.l.b16 %v489
      %v651 = vpack.c.b16 %v620, %v619
      %v652 = vpack.c.b16 %v622, %v621
      %v653 = vpack.c.b16 %v624, %v623
      %v654 = vpack.c.b16 %v626, %v625
      %v655 = vpack.c.b16 %v628, %v627
      %v656 = vpack.c.b16 %v630, %v629
      %v657 = vpack.c.b16 %v632, %v631
      %v658 = vpack.c.b16 %v634, %v633
      %v659 = vpack.c.b16 %v636, %v635
      %v660 = vpack.c.b16 %v638, %v637
      %v661 = vpack.c.b16 %v640, %v639
      %v662 = vpack.c.b16 %v642, %v641
      %v663 = vpack.c.b16 %v644, %v643
      %v664 = vpack.c.b16 %v646, %v645
      %v665 = vpack.c.b16 %v648, %v647
      %v666 = vpack.c.b16 %v650, %v649
      %683 = vmatprep.subr.bf16.mxu0 0
      %684 = vmatpush1.bf16.msra.mxu0 %v658
      %685 = vmatprep.subr.bf16.mxu0 0
      %686 = vmatpush1.bf16.msra.mxu0 %v657
      %687 = vmatprep.subr.bf16.mxu0 0
      %688 = vmatpush1.bf16.msra.mxu0 %v656
      %689 = vmatprep.subr.bf16.mxu0 0
      %690 = vmatpush1.bf16.msra.mxu0 %v655
      %691 = vmatprep.subr.bf16.mxu0 0
      %692 = vmatpush1.bf16.msra.mxu0 %v654
      %693 = vmatprep.subr.bf16.mxu0 0
      %694 = vmatpush1.bf16.msra.mxu0 %v653
      %695 = vmatprep.subr.bf16.mxu0 0
      %696 = vmatpush1.bf16.msra.mxu0 %v652
      %697 = vmatprep.subr.bf16.mxu0 0
      %698 = vmatpush1.bf16.msra.mxu0 %v651
      %699 = vmatprep.subr.bf16.mxu0 0
      %700 = vmatpush2.bf16.msra.mxu0 %v666
      %701 = vmatprep.subr.bf16.mxu0 0
      %702 = vmatpush2.bf16.msra.mxu0 %v665
      %703 = vmatprep.subr.bf16.mxu0 0
      %704 = vmatpush2.bf16.msra.mxu0 %v664
      %705 = vmatprep.subr.bf16.mxu0 0
      %706 = vmatpush2.bf16.msra.mxu0 %v663
      %707 = vmatprep.subr.bf16.mxu0 0
      %708 = vmatpush2.bf16.msra.mxu0 %v662
      %709 = vmatprep.subr.bf16.mxu0 0
      %710 = vmatpush2.bf16.msra.mxu0 %v661
      %711 = vmatprep.subr.bf16.mxu0 0
      %712 = vmatpush2.bf16.msra.mxu0 %v660
      %713 = vmatprep.subr.bf16.mxu0 0
      %714 = vmatpush2.bf16.msra.mxu0 %v659
      %715 = vmatprep.mubr.bf16.mxu0 %v552
      %716 = vmatmul.mubr.bf16.gmra.mxu0 %v551
      %v717 = vpop.f32.mrf.mxu0
      %v718 = vadd.f32 %v495, %v717
      %v719 = vpop.f32.mrf.mxu0
      %v720 = vpop.f32.mrf.mxu0
      %v721 = vadd.f32 %v495, %v720
      %v722 = vpop.f32.mrf.mxu0
      %723 = vmatprep.mubr.bf16.mxu0 %v554
      %724 = vmatmul.mubr.bf16.gmra.mxu0 %v553
      %v725 = vpop.f32.mrf.mxu0
      %v726 = vadd.f32 %v495, %v725
      %v727 = vpop.f32.mrf.mxu0
      %v728 = vpop.f32.mrf.mxu0
      %v729 = vadd.f32 %v495, %v728
      %v730 = vpop.f32.mrf.mxu0
      %731 = vmatprep.mubr.bf16.mxu0 %v556
      %732 = vmatmul.mubr.bf16.gmra.mxu0 %v555
      %v733 = vpop.f32.mrf.mxu0
      %v734 = vadd.f32 %v495, %v733
      %v735 = vpop.f32.mrf.mxu0
      %v736 = vpop.f32.mrf.mxu0
      %v737 = vadd.f32 %v495, %v736
      %v738 = vpop.f32.mrf.mxu0
      %739 = vmatprep.mubr.bf16.mxu0 %v558
      %740 = vmatmul.mubr.bf16.gmra.mxu0 %v557
      %v741 = vpop.f32.mrf.mxu0
      %v742 = vadd.f32 %v495, %v741
      %v743 = vpop.f32.mrf.mxu0
      %v744 = vpop.f32.mrf.mxu0
      %v745 = vadd.f32 %v495, %v744
      %v746 = vpop.f32.mrf.mxu0
      %747 = vmatprep.mubr.bf16.mxu0 %v560
      %748 = vmatmul.mubr.bf16.gmra.mxu0 %v559
      %v749 = vpop.f32.mrf.mxu0
      %v750 = vadd.f32 %v495, %v749
      %v751 = vpop.f32.mrf.mxu0
      %v752 = vpop.f32.mrf.mxu0
      %v753 = vadd.f32 %v495, %v752
      %v754 = vpop.f32.mrf.mxu0
      %755 = vmatprep.mubr.bf16.mxu0 %v562
      %756 = vmatmul.mubr.bf16.gmra.mxu0 %v561
      %v757 = vpop.f32.mrf.mxu0
      %v758 = vadd.f32 %v495, %v757
      %v759 = vpop.f32.mrf.mxu0
      %v760 = vpop.f32.mrf.mxu0
      %v761 = vadd.f32 %v495, %v760
      %v762 = vpop.f32.mrf.mxu0
      %763 = vmatprep.mubr.bf16.mxu0 %v564
      %764 = vmatmul.mubr.bf16.gmra.mxu0 %v563
      %v765 = vpop.f32.mrf.mxu0
      %v766 = vadd.f32 %v495, %v765
      %v767 = vpop.f32.mrf.mxu0
      %v768 = vpop.f32.mrf.mxu0
      %v769 = vadd.f32 %v495, %v768
      %v770 = vpop.f32.mrf.mxu0
      %771 = vmatprep.mubr.bf16.mxu0 %v566
      %772 = vmatmul.mubr.bf16.gmra.mxu0 %v565
      %v773 = vpop.f32.mrf.mxu0
      %v774 = vadd.f32 %v495, %v773
      %v775 = vpop.f32.mrf.mxu0
      %v776 = vpop.f32.mrf.mxu0
      %v777 = vadd.f32 %v495, %v776
      %v778 = vpop.f32.mrf.mxu0
      %779 = vmatprep.mubr.bf16.mxu0 %v568
      %780 = vmatmul.mubr.bf16.gmra.mxu0 %v567
      %v781 = vpop.f32.mrf.mxu0
      %v782 = vadd.f32 %v495, %v781
      %v783 = vpop.f32.mrf.mxu0
      %v784 = vpop.f32.mrf.mxu0
      %v785 = vadd.f32 %v495, %v784
      %v786 = vpop.f32.mrf.mxu0
      %787 = vdwg.mxu0
      %v788 = vmax.f32 %v718, 0.0
      %v789 = vmax.f32 %v721, 0.0
      %v790 = vmax.f32 %v726, 0.0
      %v791 = vmax.f32 %v729, 0.0
      %v792 = vmax.f32 %v734, 0.0
      %v793 = vmax.f32 %v737, 0.0
      %v794 = vmax.f32 %v742, 0.0
      %v795 = vmax.f32 %v745, 0.0
      %v796 = vmax.f32 %v750, 0.0
      %v797 = vmax.f32 %v753, 0.0
      %v798 = vmax.f32 %v758, 0.0
      %v799 = vmax.f32 %v761, 0.0
      %v800 = vmax.f32 %v766, 0.0
      %v801 = vmax.f32 %v769, 0.0
      %v802 = vmax.f32 %v774, 0.0
      %v803 = vmax.f32 %v777, 0.0
      %v804 = vmax.f32 %v782, 0.0
      %v805 = vmax.f32 %v785, 0.0
      %v806 = vpack.c.bf16 %v789, %v788
      %v807 = vpack.c.bf16 %v791, %v790
      %v808 = vpack.c.bf16 %v793, %v792
      %v809 = vpack.c.bf16 %v795, %v794
      %v810 = vpack.c.bf16 %v797, %v796
      %v811 = vpack.c.bf16 %v799, %v798
      %v812 = vpack.c.bf16 %v801, %v800
      %v813 = vpack.c.bf16 %v803, %v802
      %v814 = vpack.c.bf16 %v805, %v804
      %v815 = vld [vmem:[%s3] sm:$0xff]
      %v816 = vld [vmem:[%s3 + $0x8] sm:$0xff]
      %v817 = vld [vmem:[%s3 + $0x10] sm:$0xff]
      %v818 = vld [vmem:[%s3 + $0x18] sm:$0xff]
      %v819 = vld [vmem:[%s3 + $0x20] sm:$0xff]
      %v820 = vld [vmem:[%s3 + $0x28] sm:$0xff]
      %v821 = vld [vmem:[%s3 + $0x30] sm:$0xff]
      %v822 = vld [vmem:[%s3 + $0x38] sm:$0xff]
      %v823 = vld [vmem:[%s3 + $0x40] sm:$0xff]
      %v824 = vld [vmem:[%s3 + $0x48] sm:$0xff]
      %v825 = vld [vmem:[%s3 + $0x50] sm:$0xff]
      %v826 = vld [vmem:[%s3 + $0x58] sm:$0xff]
      %v827 = vld [vmem:[%s3 + $0x60] sm:$0xff]
      %v828 = vld [vmem:[%s3 + $0x68] sm:$0xff]
      %v829 = vld [vmem:[%s3 + $0x70] sm:$0xff]
      %v830 = vld [vmem:[%s3 + $0x78] sm:$0xff]
      %v831 = vld [vmem:[%s3 + $0x80] sm:$0xff]
      %v832 = vld [vmem:[%s3 + $0x88] sm:$0xff]
      %v833 = vld [vmem:[%s3 + $0x90] sm:$0xff]
      %v834 = vld [vmem:[%s3 + $0x98] sm:$0xff]
      %v835 = vld [vmem:[%s3 + $0xa0] sm:$0xff]
      %v836 = vld [vmem:[%s3 + $0xa8] sm:$0xff]
      %v837 = vld [vmem:[%s3 + $0xb0] sm:$0xff]
      %v838 = vld [vmem:[%s3 + $0xb8] sm:$0xff]
      %v839 = vld [vmem:[%s3 + $0xc0] sm:$0xff]
      %v840 = vld [vmem:[%s3 + $0xc8] sm:$0xff]
      %v841 = vld [vmem:[%s3 + $0xd0] sm:$0xff]
      %v842 = vld [vmem:[%s3 + $0xd8] sm:$0xff]
      %v843 = vld [vmem:[%s3 + $0xe0] sm:$0xff]
      %v844 = vld [vmem:[%s3 + $0xe8] sm:$0xff]
      %v845 = vld [vmem:[%s3 + $0xf0] sm:$0xff]
      %v846 = vld [vmem:[%s3 + $0xf8] sm:$0xff]
      %v847 = vld [vmem:[%s3 + $0x100] sm:$0xff]
      %v848 = vld [vmem:[%s3 + $0x108] sm:$0xff]
      %v849 = vld [vmem:[%s3 + $0x110] sm:$0xff]
      %v850 = vld [vmem:[%s3 + $0x118] sm:$0xff]
      %v851 = vld [vmem:[%s3 + $0x120] sm:$0xff]
      %v852 = vld [vmem:[%s3 + $0x128] sm:$0xff]
      %v853 = vld [vmem:[%s3 + $0x130] sm:$0xff]
      %v854 = vld [vmem:[%s3 + $0x138] sm:$0xff]
      %v855 = vld [vmem:[%s3 + $0x140] sm:$0xff]
      %v856 = vld [vmem:[%s3 + $0x148] sm:$0xff]
      %v857 = vld [vmem:[%s3 + $0x150] sm:$0xff]
      %v858 = vld [vmem:[%s3 + $0x158] sm:$0xff]
      %v859 = vld [vmem:[%s3 + $0x160] sm:$0xff]
      %v860 = vld [vmem:[%s3 + $0x168] sm:$0xff]
      %v861 = vld [vmem:[%s3 + $0x170] sm:$0xff]
      %v862 = vld [vmem:[%s3 + $0x178] sm:$0xff]
      %v863 = vld [vmem:[%s3 + $0x180] sm:$0xff]
      %v864 = vld [vmem:[%s3 + $0x188] sm:$0xff]
      %v865 = vld [vmem:[%s3 + $0x190] sm:$0xff]
      %v866 = vld [vmem:[%s3 + $0x198] sm:$0xff]
      %v867 = vld [vmem:[%s3 + $0x1a0] sm:$0xff]
      %v868 = vld [vmem:[%s3 + $0x1a8] sm:$0xff]
      %v869 = vld [vmem:[%s3 + $0x1b0] sm:$0xff]
      %v870 = vld [vmem:[%s3 + $0x1b8] sm:$0xff]
      %v871 = vld [vmem:[%s3 + $0x1c0] sm:$0xff]
      %v872 = vld [vmem:[%s3 + $0x1c8] sm:$0xff]
      %v873 = vld [vmem:[%s3 + $0x1d0] sm:$0xff]
      %v874 = vld [vmem:[%s3 + $0x1d8] sm:$0xff]
      %v875 = vld [vmem:[%s3 + $0x1e0] sm:$0xff]
      %v876 = vld [vmem:[%s3 + $0x1e8] sm:$0xff]
      %v877 = vld [vmem:[%s3 + $0x1f0] sm:$0xff]
      %v878 = vld [vmem:[%s3 + $0x1f8] sm:$0xff]
      %v943 = vunpack.c.l.b16 %v815
      %v944 = vunpack.c.h.b16 %v815
      %v945 = vunpack.c.l.b16 %v816
      %v946 = vunpack.c.h.b16 %v816
      %v947 = vunpack.c.l.b16 %v817
      %v948 = vunpack.c.h.b16 %v817
      %v949 = vunpack.c.l.b16 %v818
      %v950 = vunpack.c.h.b16 %v818
      %v951 = vunpack.c.l.b16 %v819
      %v952 = vunpack.c.h.b16 %v819
      %v953 = vunpack.c.l.b16 %v820
      %v954 = vunpack.c.h.b16 %v820
      %v955 = vunpack.c.l.b16 %v821
      %v956 = vunpack.c.h.b16 %v821
      %v957 = vunpack.c.l.b16 %v822
      %v958 = vunpack.c.h.b16 %v822
      %v959 = vunpack.c.l.b16 %v823
      %v960 = vunpack.c.h.b16 %v823
      %v961 = vunpack.c.l.b16 %v824
      %v962 = vunpack.c.h.b16 %v824
      %v963 = vunpack.c.l.b16 %v825
      %v964 = vunpack.c.h.b16 %v825
      %v965 = vunpack.c.l.b16 %v826
      %v966 = vunpack.c.h.b16 %v826
      %v967 = vunpack.c.l.b16 %v827
      %v968 = vunpack.c.h.b16 %v827
      %v969 = vunpack.c.l.b16 %v828
      %v970 = vunpack.c.h.b16 %v828
      %v971 = vunpack.c.l.b16 %v829
      %v972 = vunpack.c.h.b16 %v829
      %v973 = vunpack.c.l.b16 %v830
      %v974 = vunpack.c.h.b16 %v830
      %v975 = vunpack.c.l.b16 %v831
      %v976 = vunpack.c.h.b16 %v831
      %v977 = vunpack.c.l.b16 %v832
      %v978 = vunpack.c.h.b16 %v832
      %v979 = vunpack.c.l.b16 %v833
      %v980 = vunpack.c.h.b16 %v833
      %v981 = vunpack.c.l.b16 %v834
      %v982 = vunpack.c.h.b16 %v834
      %v983 = vunpack.c.l.b16 %v835
      %v984 = vunpack.c.h.b16 %v835
      %v985 = vunpack.c.l.b16 %v836
      %v986 = vunpack.c.h.b16 %v836
      %v987 = vunpack.c.l.b16 %v837
      %v988 = vunpack.c.h.b16 %v837
      %v989 = vunpack.c.l.b16 %v838
      %v990 = vunpack.c.h.b16 %v838
      %v991 = vunpack.c.l.b16 %v839
      %v992 = vunpack.c.h.b16 %v839
      %v993 = vunpack.c.l.b16 %v840
      %v994 = vunpack.c.h.b16 %v840
      %v995 = vunpack.c.l.b16 %v841
      %v996 = vunpack.c.h.b16 %v841
      %v997 = vunpack.c.l.b16 %v842
      %v998 = vunpack.c.h.b16 %v842
      %v999 = vunpack.c.l.b16 %v843
      %v1000 = vunpack.c.h.b16 %v843
      %v1001 = vunpack.c.l.b16 %v844
      %v1002 = vunpack.c.h.b16 %v844
      %v1003 = vunpack.c.l.b16 %v845
      %v1004 = vunpack.c.h.b16 %v845
      %v1005 = vunpack.c.l.b16 %v846
      %v1006 = vunpack.c.h.b16 %v846
      %v1007 = vunpack.c.l.b16 %v847
      %v1008 = vunpack.c.h.b16 %v847
      %v1009 = vunpack.c.l.b16 %v848
      %v1010 = vunpack.c.h.b16 %v848
      %v1011 = vunpack.c.l.b16 %v849
      %v1012 = vunpack.c.h.b16 %v849
      %v1013 = vunpack.c.l.b16 %v850
      %v1014 = vunpack.c.h.b16 %v850
      %v1015 = vunpack.c.l.b16 %v851
      %v1016 = vunpack.c.h.b16 %v851
      %v1017 = vunpack.c.l.b16 %v852
      %v1018 = vunpack.c.h.b16 %v852
      %v1019 = vunpack.c.l.b16 %v853
      %v1020 = vunpack.c.h.b16 %v853
      %v1021 = vunpack.c.l.b16 %v854
      %v1022 = vunpack.c.h.b16 %v854
      %v1023 = vunpack.c.l.b16 %v855
      %v1024 = vunpack.c.h.b16 %v855
      %v1025 = vunpack.c.l.b16 %v856
      %v1026 = vunpack.c.h.b16 %v856
      %v1027 = vunpack.c.l.b16 %v857
      %v1028 = vunpack.c.h.b16 %v857
      %v1029 = vunpack.c.l.b16 %v858
      %v1030 = vunpack.c.h.b16 %v858
      %v1031 = vunpack.c.l.b16 %v859
      %v1032 = vunpack.c.h.b16 %v859
      %v1033 = vunpack.c.l.b16 %v860
      %v1034 = vunpack.c.h.b16 %v860
      %v1035 = vunpack.c.l.b16 %v861
      %v1036 = vunpack.c.h.b16 %v861
      %v1037 = vunpack.c.l.b16 %v862
      %v1038 = vunpack.c.h.b16 %v862
      %v1039 = vunpack.c.l.b16 %v863
      %v1040 = vunpack.c.h.b16 %v863
      %v1041 = vunpack.c.l.b16 %v864
      %v1042 = vunpack.c.h.b16 %v864
      %v1043 = vunpack.c.l.b16 %v865
      %v1044 = vunpack.c.h.b16 %v865
      %v1045 = vunpack.c.l.b16 %v866
      %v1046 = vunpack.c.h.b16 %v866
      %v1047 = vunpack.c.l.b16 %v867
      %v1048 = vunpack.c.h.b16 %v867
      %v1049 = vunpack.c.l.b16 %v868
      %v1050 = vunpack.c.h.b16 %v868
      %v1051 = vunpack.c.l.b16 %v869
      %v1052 = vunpack.c.h.b16 %v869
      %v1053 = vunpack.c.l.b16 %v870
      %v1054 = vunpack.c.h.b16 %v870
      %v1055 = vunpack.c.l.b16 %v871
      %v1056 = vunpack.c.h.b16 %v871
      %v1057 = vunpack.c.l.b16 %v872
      %v1058 = vunpack.c.h.b16 %v872
      %v1059 = vunpack.c.l.b16 %v873
      %v1060 = vunpack.c.h.b16 %v873
      %v1061 = vunpack.c.l.b16 %v874
      %v1062 = vunpack.c.h.b16 %v874
      %v1063 = vunpack.c.l.b16 %v875
      %v1064 = vunpack.c.h.b16 %v875
      %v1065 = vunpack.c.l.b16 %v876
      %v1066 = vunpack.c.h.b16 %v876
      %v1067 = vunpack.c.l.b16 %v877
      %v1068 = vunpack.c.h.b16 %v877
      %v1069 = vunpack.c.l.b16 %v878
      %v1070 = vunpack.c.h.b16 %v878
      %v1071 = vpack.c.b16 %v945, %v943
      %v1072 = vpack.c.b16 %v946, %v944
      %v1073 = vpack.c.b16 %v949, %v947
      %v1074 = vpack.c.b16 %v950, %v948
      %v1075 = vpack.c.b16 %v953, %v951
      %v1076 = vpack.c.b16 %v954, %v952
      %v1077 = vpack.c.b16 %v957, %v955
      %v1078 = vpack.c.b16 %v958, %v956
      %v1079 = vpack.c.b16 %v961, %v959
      %v1080 = vpack.c.b16 %v962, %v960
      %v1081 = vpack.c.b16 %v965, %v963
      %v1082 = vpack.c.b16 %v966, %v964
      %v1083 = vpack.c.b16 %v969, %v967
      %v1084 = vpack.c.b16 %v970, %v968
      %v1085 = vpack.c.b16 %v973, %v971
      %v1086 = vpack.c.b16 %v974, %v972
      %v1087 = vpack.c.b16 %v977, %v975
      %v1088 = vpack.c.b16 %v978, %v976
      %v1089 = vpack.c.b16 %v981, %v979
      %v1090 = vpack.c.b16 %v982, %v980
      %v1091 = vpack.c.b16 %v985, %v983
      %v1092 = vpack.c.b16 %v986, %v984
      %v1093 = vpack.c.b16 %v989, %v987
      %v1094 = vpack.c.b16 %v990, %v988
      %v1095 = vpack.c.b16 %v993, %v991
      %v1096 = vpack.c.b16 %v994, %v992
      %v1097 = vpack.c.b16 %v997, %v995
      %v1098 = vpack.c.b16 %v998, %v996
      %v1099 = vpack.c.b16 %v1001, %v999
      %v1100 = vpack.c.b16 %v1002, %v1000
      %v1101 = vpack.c.b16 %v1005, %v1003
      %v1102 = vpack.c.b16 %v1006, %v1004
      %v1103 = vpack.c.b16 %v1009, %v1007
      %v1104 = vpack.c.b16 %v1010, %v1008
      %v1105 = vpack.c.b16 %v1013, %v1011
      %v1106 = vpack.c.b16 %v1014, %v1012
      %v1107 = vpack.c.b16 %v1017, %v1015
      %v1108 = vpack.c.b16 %v1018, %v1016
      %v1109 = vpack.c.b16 %v1021, %v1019
      %v1110 = vpack.c.b16 %v1022, %v1020
      %v1111 = vpack.c.b16 %v1025, %v1023
      %v1112 = vpack.c.b16 %v1026, %v1024
      %v1113 = vpack.c.b16 %v1029, %v1027
      %v1114 = vpack.c.b16 %v1030, %v1028
      %v1115 = vpack.c.b16 %v1033, %v1031
      %v1116 = vpack.c.b16 %v1034, %v1032
      %v1117 = vpack.c.b16 %v1037, %v1035
      %v1118 = vpack.c.b16 %v1038, %v1036
      %v1119 = vpack.c.b16 %v1041, %v1039
      %v1120 = vpack.c.b16 %v1042, %v1040
      %v1121 = vpack.c.b16 %v1045, %v1043
      %v1122 = vpack.c.b16 %v1046, %v1044
      %v1123 = vpack.c.b16 %v1049, %v1047
      %v1124 = vpack.c.b16 %v1050, %v1048
      %v1125 = vpack.c.b16 %v1053, %v1051
      %v1126 = vpack.c.b16 %v1054, %v1052
      %v1127 = vpack.c.b16 %v1057, %v1055
      %v1128 = vpack.c.b16 %v1058, %v1056
      %v1129 = vpack.c.b16 %v1061, %v1059
      %v1130 = vpack.c.b16 %v1062, %v1060
      %v1131 = vpack.c.b16 %v1065, %v1063
      %v1132 = vpack.c.b16 %v1066, %v1064
      %v1133 = vpack.c.b16 %v1069, %v1067
      %v1134 = vpack.c.b16 %v1070, %v1068
      %vm1167 = vcmask 130048
      %v1169 = vsel %vm1167, %v1072, 0
      %v1172 = vsel %vm1167, %v1074, 0
      %v1175 = vsel %vm1167, %v1076, 0
      %v1178 = vsel %vm1167, %v1078, 0
      %v1181 = vsel %vm1167, %v1080, 0
      %v1184 = vsel %vm1167, %v1082, 0
      %v1187 = vsel %vm1167, %v1084, 0
      %v1190 = vsel %vm1167, %v1086, 0
      %v1193 = vsel %vm1167, %v1088, 0
      %v1196 = vsel %vm1167, %v1090, 0
      %v1199 = vsel %vm1167, %v1092, 0
      %v1202 = vsel %vm1167, %v1094, 0
      %v1205 = vsel %vm1167, %v1096, 0
      %v1208 = vsel %vm1167, %v1098, 0
      %v1211 = vsel %vm1167, %v1100, 0
      %v1214 = vsel %vm1167, %v1102, 0
      %v1217 = vsel %vm1167, %v1104, 0
      %v1220 = vsel %vm1167, %v1106, 0
      %v1223 = vsel %vm1167, %v1108, 0
      %v1226 = vsel %vm1167, %v1110, 0
      %v1229 = vsel %vm1167, %v1112, 0
      %v1232 = vsel %vm1167, %v1114, 0
      %v1235 = vsel %vm1167, %v1116, 0
      %v1238 = vsel %vm1167, %v1118, 0
      %v1241 = vsel %vm1167, %v1120, 0
      %v1244 = vsel %vm1167, %v1122, 0
      %v1247 = vsel %vm1167, %v1124, 0
      %v1250 = vsel %vm1167, %v1126, 0
      %v1253 = vsel %vm1167, %v1128, 0
      %v1256 = vsel %vm1167, %v1130, 0
      %v1259 = vsel %vm1167, %v1132, 0
      %v1262 = vsel %vm1167, %v1134, 0
      %1264 = vmatprep.subr.bf16.mxu0 0
      %1265 = vmatpush1.bf16.msra.mxu0 %v813
      %1266 = vmatprep.subr.bf16.mxu0 0
      %1267 = vmatpush1.bf16.msra.mxu0 %v812
      %1268 = vmatprep.subr.bf16.mxu0 0
      %1269 = vmatpush1.bf16.msra.mxu0 %v811
      %1270 = vmatprep.subr.bf16.mxu0 0
      %1271 = vmatpush1.bf16.msra.mxu0 %v810
      %1272 = vmatprep.subr.bf16.mxu0 0
      %1273 = vmatpush1.bf16.msra.mxu0 %v809
      %1274 = vmatprep.subr.bf16.mxu0 0
      %1275 = vmatpush1.bf16.msra.mxu0 %v808
      %1276 = vmatprep.subr.bf16.mxu0 0
      %1277 = vmatpush1.bf16.msra.mxu0 %v807
      %1278 = vmatprep.subr.bf16.mxu0 0
      %1279 = vmatpush1.bf16.msra.mxu0 %v806
      %1280 = vmatprep.subr.bf16.mxu0 0
      %1281 = vmatpush2.bf16.msra.mxu0 0
      %1282 = vmatprep.subr.bf16.mxu0 0
      %1283 = vmatpush2.bf16.msra.mxu0 0
      %1284 = vmatprep.subr.bf16.mxu0 0
      %1285 = vmatpush2.bf16.msra.mxu0 0
      %1286 = vmatprep.subr.bf16.mxu0 0
      %1287 = vmatpush2.bf16.msra.mxu0 0
      %1288 = vmatprep.subr.bf16.mxu0 0
      %1289 = vmatpush2.bf16.msra.mxu0 0
      %1290 = vmatprep.subr.bf16.mxu0 0
      %1291 = vmatpush2.bf16.msra.mxu0 0
      %1292 = vmatprep.subr.bf16.mxu0 0
      %1293 = vmatpush2.bf16.msra.mxu0 0
      %1294 = vmatprep.subr.bf16.mxu0 0
      %1295 = vmatpush2.bf16.msra.mxu0 %v814
      %1296 = vmatprep.mubr.bf16.mxu0 %v1169
      %1297 = vmatmul.mubr.bf16.gmra.mxu0 %v1071
      %v1298 = vpop.f32.mrf.mxu0
      %v1299 = vadd.f32 0.0, %v1298
      %v1300 = vpop.f32.mrf.mxu0
      %v1301 = vpop.f32.mrf.mxu0
      %v1302 = vadd.f32 0.0, %v1301
      %v1303 = vpop.f32.mrf.mxu0
      %1304 = vmatprep.mubr.bf16.mxu0 %v1172
      %1305 = vmatmul.mubr.bf16.gmra.mxu0 %v1073
      %v1306 = vpop.f32.mrf.mxu0
      %v1307 = vadd.f32 0.0, %v1306
      %v1308 = vpop.f32.mrf.mxu0
      %v1309 = vpop.f32.mrf.mxu0
      %v1310 = vadd.f32 0.0, %v1309
      %v1311 = vpop.f32.mrf.mxu0
      %1312 = vmatprep.mubr.bf16.mxu0 %v1175
      %1313 = vmatmul.mubr.bf16.gmra.mxu0 %v1075
      %v1314 = vpop.f32.mrf.mxu0
      %v1315 = vadd.f32 0.0, %v1314
      %v1316 = vpop.f32.mrf.mxu0
      %v1317 = vpop.f32.mrf.mxu0
      %v1318 = vadd.f32 0.0, %v1317
      %v1319 = vpop.f32.mrf.mxu0
      %1320 = vmatprep.mubr.bf16.mxu0 %v1178
      %1321 = vmatmul.mubr.bf16.gmra.mxu0 %v1077
      %v1322 = vpop.f32.mrf.mxu0
      %v1323 = vadd.f32 0.0, %v1322
      %v1324 = vpop.f32.mrf.mxu0
      %v1325 = vpop.f32.mrf.mxu0
      %v1326 = vadd.f32 0.0, %v1325
      %v1327 = vpop.f32.mrf.mxu0
      %1328 = vmatprep.mubr.bf16.mxu0 %v1181
      %1329 = vmatmul.mubr.bf16.gmra.mxu0 %v1079
      %v1330 = vpop.f32.mrf.mxu0
      %v1331 = vadd.f32 0.0, %v1330
      %v1332 = vpop.f32.mrf.mxu0
      %v1333 = vpop.f32.mrf.mxu0
      %v1334 = vadd.f32 0.0, %v1333
      %v1335 = vpop.f32.mrf.mxu0
      %1336 = vmatprep.mubr.bf16.mxu0 %v1184
      %1337 = vmatmul.mubr.bf16.gmra.mxu0 %v1081
      %v1338 = vpop.f32.mrf.mxu0
      %v1339 = vadd.f32 0.0, %v1338
      %v1340 = vpop.f32.mrf.mxu0
      %v1341 = vpop.f32.mrf.mxu0
      %v1342 = vadd.f32 0.0, %v1341
      %v1343 = vpop.f32.mrf.mxu0
      %1344 = vmatprep.mubr.bf16.mxu0 %v1187
      %1345 = vmatmul.mubr.bf16.gmra.mxu0 %v1083
      %v1346 = vpop.f32.mrf.mxu0
      %v1347 = vadd.f32 0.0, %v1346
      %v1348 = vpop.f32.mrf.mxu0
      %v1349 = vpop.f32.mrf.mxu0
      %v1350 = vadd.f32 0.0, %v1349
      %v1351 = vpop.f32.mrf.mxu0
      %1352 = vmatprep.mubr.bf16.mxu0 %v1190
      %1353 = vmatmul.mubr.bf16.gmra.mxu0 %v1085
      %v1354 = vpop.f32.mrf.mxu0
      %v1355 = vadd.f32 0.0, %v1354
      %v1356 = vpop.f32.mrf.mxu0
      %v1357 = vpop.f32.mrf.mxu0
      %v1358 = vadd.f32 0.0, %v1357
      %v1359 = vpop.f32.mrf.mxu0
      %1360 = vmatprep.mubr.bf16.mxu0 %v1193
      %1361 = vmatmul.mubr.bf16.gmra.mxu0 %v1087
      %v1362 = vpop.f32.mrf.mxu0
      %v1363 = vadd.f32 0.0, %v1362
      %v1364 = vpop.f32.mrf.mxu0
      %v1365 = vpop.f32.mrf.mxu0
      %v1366 = vadd.f32 0.0, %v1365
      %v1367 = vpop.f32.mrf.mxu0
      %1368 = vmatprep.mubr.bf16.mxu0 %v1196
      %1369 = vmatmul.mubr.bf16.gmra.mxu0 %v1089
      %v1370 = vpop.f32.mrf.mxu0
      %v1371 = vadd.f32 0.0, %v1370
      %v1372 = vpop.f32.mrf.mxu0
      %v1373 = vpop.f32.mrf.mxu0
      %v1374 = vadd.f32 0.0, %v1373
      %v1375 = vpop.f32.mrf.mxu0
      %1376 = vmatprep.mubr.bf16.mxu0 %v1199
      %1377 = vmatmul.mubr.bf16.gmra.mxu0 %v1091
      %v1378 = vpop.f32.mrf.mxu0
      %v1379 = vadd.f32 0.0, %v1378
      %v1380 = vpop.f32.mrf.mxu0
      %v1381 = vpop.f32.mrf.mxu0
      %v1382 = vadd.f32 0.0, %v1381
      %v1383 = vpop.f32.mrf.mxu0
      %1384 = vmatprep.mubr.bf16.mxu0 %v1202
      %1385 = vmatmul.mubr.bf16.gmra.mxu0 %v1093
      %v1386 = vpop.f32.mrf.mxu0
      %v1387 = vadd.f32 0.0, %v1386
      %v1388 = vpop.f32.mrf.mxu0
      %v1389 = vpop.f32.mrf.mxu0
      %v1390 = vadd.f32 0.0, %v1389
      %v1391 = vpop.f32.mrf.mxu0
      %1392 = vmatprep.mubr.bf16.mxu0 %v1205
      %1393 = vmatmul.mubr.bf16.gmra.mxu0 %v1095
      %v1394 = vpop.f32.mrf.mxu0
      %v1395 = vadd.f32 0.0, %v1394
      %v1396 = vpop.f32.mrf.mxu0
      %v1397 = vpop.f32.mrf.mxu0
      %v1398 = vadd.f32 0.0, %v1397
      %v1399 = vpop.f32.mrf.mxu0
      %1400 = vmatprep.mubr.bf16.mxu0 %v1208
      %1401 = vmatmul.mubr.bf16.gmra.mxu0 %v1097
      %v1402 = vpop.f32.mrf.mxu0
      %v1403 = vadd.f32 0.0, %v1402
      %v1404 = vpop.f32.mrf.mxu0
      %v1405 = vpop.f32.mrf.mxu0
      %v1406 = vadd.f32 0.0, %v1405
      %v1407 = vpop.f32.mrf.mxu0
      %1408 = vmatprep.mubr.bf16.mxu0 %v1211
      %1409 = vmatmul.mubr.bf16.gmra.mxu0 %v1099
      %v1410 = vpop.f32.mrf.mxu0
      %v1411 = vadd.f32 0.0, %v1410
      %v1412 = vpop.f32.mrf.mxu0
      %v1413 = vpop.f32.mrf.mxu0
      %v1414 = vadd.f32 0.0, %v1413
      %v1415 = vpop.f32.mrf.mxu0
      %1416 = vmatprep.mubr.bf16.mxu0 %v1214
      %1417 = vmatmul.mubr.bf16.gmra.mxu0 %v1101
      %v1418 = vpop.f32.mrf.mxu0
      %v1419 = vadd.f32 0.0, %v1418
      %v1420 = vpop.f32.mrf.mxu0
      %v1421 = vpop.f32.mrf.mxu0
      %v1422 = vadd.f32 0.0, %v1421
      %v1423 = vpop.f32.mrf.mxu0
      %1424 = vmatprep.mubr.bf16.mxu0 %v1217
      %1425 = vmatmul.mubr.bf16.gmra.mxu0 %v1103
      %v1426 = vpop.f32.mrf.mxu0
      %v1427 = vadd.f32 0.0, %v1426
      %v1428 = vpop.f32.mrf.mxu0
      %v1429 = vpop.f32.mrf.mxu0
      %v1430 = vadd.f32 0.0, %v1429
      %v1431 = vpop.f32.mrf.mxu0
      %1432 = vmatprep.mubr.bf16.mxu0 %v1220
      %1433 = vmatmul.mubr.bf16.gmra.mxu0 %v1105
      %v1434 = vpop.f32.mrf.mxu0
      %v1435 = vadd.f32 0.0, %v1434
      %v1436 = vpop.f32.mrf.mxu0
      %v1437 = vpop.f32.mrf.mxu0
      %v1438 = vadd.f32 0.0, %v1437
      %v1439 = vpop.f32.mrf.mxu0
      %1440 = vmatprep.mubr.bf16.mxu0 %v1223
      %1441 = vmatmul.mubr.bf16.gmra.mxu0 %v1107
      %v1442 = vpop.f32.mrf.mxu0
      %v1443 = vadd.f32 0.0, %v1442
      %v1444 = vpop.f32.mrf.mxu0
      %v1445 = vpop.f32.mrf.mxu0
      %v1446 = vadd.f32 0.0, %v1445
      %v1447 = vpop.f32.mrf.mxu0
      %1448 = vmatprep.mubr.bf16.mxu0 %v1226
      %1449 = vmatmul.mubr.bf16.gmra.mxu0 %v1109
      %v1450 = vpop.f32.mrf.mxu0
      %v1451 = vadd.f32 0.0, %v1450
      %v1452 = vpop.f32.mrf.mxu0
      %v1453 = vpop.f32.mrf.mxu0
      %v1454 = vadd.f32 0.0, %v1453
      %v1455 = vpop.f32.mrf.mxu0
      %1456 = vmatprep.mubr.bf16.mxu0 %v1229
      %1457 = vmatmul.mubr.bf16.gmra.mxu0 %v1111
      %v1458 = vpop.f32.mrf.mxu0
      %v1459 = vadd.f32 0.0, %v1458
      %v1460 = vpop.f32.mrf.mxu0
      %v1461 = vpop.f32.mrf.mxu0
      %v1462 = vadd.f32 0.0, %v1461
      %v1463 = vpop.f32.mrf.mxu0
      %1464 = vmatprep.mubr.bf16.mxu0 %v1232
      %1465 = vmatmul.mubr.bf16.gmra.mxu0 %v1113
      %v1466 = vpop.f32.mrf.mxu0
      %v1467 = vadd.f32 0.0, %v1466
      %v1468 = vpop.f32.mrf.mxu0
      %v1469 = vpop.f32.mrf.mxu0
      %v1470 = vadd.f32 0.0, %v1469
      %v1471 = vpop.f32.mrf.mxu0
      %1472 = vmatprep.mubr.bf16.mxu0 %v1235
      %1473 = vmatmul.mubr.bf16.gmra.mxu0 %v1115
      %v1474 = vpop.f32.mrf.mxu0
      %v1475 = vadd.f32 0.0, %v1474
      %v1476 = vpop.f32.mrf.mxu0
      %v1477 = vpop.f32.mrf.mxu0
      %v1478 = vadd.f32 0.0, %v1477
      %v1479 = vpop.f32.mrf.mxu0
      %1480 = vmatprep.mubr.bf16.mxu0 %v1238
      %1481 = vmatmul.mubr.bf16.gmra.mxu0 %v1117
      %v1482 = vpop.f32.mrf.mxu0
      %v1483 = vadd.f32 0.0, %v1482
      %v1484 = vpop.f32.mrf.mxu0
      %v1485 = vpop.f32.mrf.mxu0
      %v1486 = vadd.f32 0.0, %v1485
      %v1487 = vpop.f32.mrf.mxu0
      %1488 = vmatprep.mubr.bf16.mxu0 %v1241
      %1489 = vmatmul.mubr.bf16.gmra.mxu0 %v1119
      %v1490 = vpop.f32.mrf.mxu0
      %v1491 = vadd.f32 0.0, %v1490
      %v1492 = vpop.f32.mrf.mxu0
      %v1493 = vpop.f32.mrf.mxu0
      %v1494 = vadd.f32 0.0, %v1493
      %v1495 = vpop.f32.mrf.mxu0
      %1496 = vmatprep.mubr.bf16.mxu0 %v1244
      %1497 = vmatmul.mubr.bf16.gmra.mxu0 %v1121
      %v1498 = vpop.f32.mrf.mxu0
      %v1499 = vadd.f32 0.0, %v1498
      %v1500 = vpop.f32.mrf.mxu0
      %v1501 = vpop.f32.mrf.mxu0
      %v1502 = vadd.f32 0.0, %v1501
      %v1503 = vpop.f32.mrf.mxu0
      %1504 = vmatprep.mubr.bf16.mxu0 %v1247
      %1505 = vmatmul.mubr.bf16.gmra.mxu0 %v1123
      %v1506 = vpop.f32.mrf.mxu0
      %v1507 = vadd.f32 0.0, %v1506
      %v1508 = vpop.f32.mrf.mxu0
      %v1509 = vpop.f32.mrf.mxu0
      %v1510 = vadd.f32 0.0, %v1509
      %v1511 = vpop.f32.mrf.mxu0
      %1512 = vmatprep.mubr.bf16.mxu0 %v1250
      %1513 = vmatmul.mubr.bf16.gmra.mxu0 %v1125
      %v1514 = vpop.f32.mrf.mxu0
      %v1515 = vadd.f32 0.0, %v1514
      %v1516 = vpop.f32.mrf.mxu0
      %v1517 = vpop.f32.mrf.mxu0
      %v1518 = vadd.f32 0.0, %v1517
      %v1519 = vpop.f32.mrf.mxu0
      %1520 = vmatprep.mubr.bf16.mxu0 %v1253
      %1521 = vmatmul.mubr.bf16.gmra.mxu0 %v1127
      %v1522 = vpop.f32.mrf.mxu0
      %v1523 = vadd.f32 0.0, %v1522
      %v1524 = vpop.f32.mrf.mxu0
      %v1525 = vpop.f32.mrf.mxu0
      %v1526 = vadd.f32 0.0, %v1525
      %v1527 = vpop.f32.mrf.mxu0
      %1528 = vmatprep.mubr.bf16.mxu0 %v1256
      %1529 = vmatmul.mubr.bf16.gmra.mxu0 %v1129
      %v1530 = vpop.f32.mrf.mxu0
      %v1531 = vadd.f32 0.0, %v1530
      %v1532 = vpop.f32.mrf.mxu0
      %v1533 = vpop.f32.mrf.mxu0
      %v1534 = vadd.f32 0.0, %v1533
      %v1535 = vpop.f32.mrf.mxu0
      %1536 = vmatprep.mubr.bf16.mxu0 %v1259
      %1537 = vmatmul.mubr.bf16.gmra.mxu0 %v1131
      %v1538 = vpop.f32.mrf.mxu0
      %v1539 = vadd.f32 0.0, %v1538
      %v1540 = vpop.f32.mrf.mxu0
      %v1541 = vpop.f32.mrf.mxu0
      %v1542 = vadd.f32 0.0, %v1541
      %v1543 = vpop.f32.mrf.mxu0
      %1544 = vmatprep.mubr.bf16.mxu0 %v1262
      %1545 = vmatmul.mubr.bf16.gmra.mxu0 %v1133
      %v1546 = vpop.f32.mrf.mxu0
      %v1547 = vadd.f32 0.0, %v1546
      %v1548 = vpop.f32.mrf.mxu0
      %v1549 = vpop.f32.mrf.mxu0
      %v1550 = vadd.f32 0.0, %v1549
      %v1551 = vpop.f32.mrf.mxu0
      %1552 = vdwg.mxu0
      %v1553 = vpack.c.bf16 %v1302, %v1299
      %v1554 = vpack.c.bf16 %v1310, %v1307
      %v1555 = vpack.c.bf16 %v1318, %v1315
      %v1556 = vpack.c.bf16 %v1326, %v1323
      %v1557 = vpack.c.bf16 %v1334, %v1331
      %v1558 = vpack.c.bf16 %v1342, %v1339
      %v1559 = vpack.c.bf16 %v1350, %v1347
      %v1560 = vpack.c.bf16 %v1358, %v1355
      %v1561 = vpack.c.bf16 %v1366, %v1363
      %v1562 = vpack.c.bf16 %v1374, %v1371
      %v1563 = vpack.c.bf16 %v1382, %v1379
      %v1564 = vpack.c.bf16 %v1390, %v1387
      %v1565 = vpack.c.bf16 %v1398, %v1395
      %v1566 = vpack.c.bf16 %v1406, %v1403
      %v1567 = vpack.c.bf16 %v1414, %v1411
      %v1568 = vpack.c.bf16 %v1422, %v1419
      %v1569 = vpack.c.bf16 %v1430, %v1427
      %v1570 = vpack.c.bf16 %v1438, %v1435
      %v1571 = vpack.c.bf16 %v1446, %v1443
      %v1572 = vpack.c.bf16 %v1454, %v1451
      %v1573 = vpack.c.bf16 %v1462, %v1459
      %v1574 = vpack.c.bf16 %v1470, %v1467
      %v1575 = vpack.c.bf16 %v1478, %v1475
      %v1576 = vpack.c.bf16 %v1486, %v1483
      %v1577 = vpack.c.bf16 %v1494, %v1491
      %v1578 = vpack.c.bf16 %v1502, %v1499
      %v1579 = vpack.c.bf16 %v1510, %v1507
      %v1580 = vpack.c.bf16 %v1518, %v1515
      %v1581 = vpack.c.bf16 %v1526, %v1523
      %v1582 = vpack.c.bf16 %v1534, %v1531
      %v1583 = vpack.c.bf16 %v1542, %v1539
      %v1584 = vpack.c.bf16 %v1550, %v1547
      %v1585 = vld [vmem:[%s4] sm:$0xf]
      %v1586 = vld [vmem:[%s4 + $0x4] sm:$0xf]
      %vm1587 = vcmask 64512
      %v1589 = vsel %vm1587, %v1555, 0
      %v1592 = vsel %vm1587, %v1556, 0
      %vm1594 = vcmask 1043456
      %v1596 = vsel %vm1594, %v1586, 0
      %1598 = vmatprep.subr.bf16.mxu0 0
      %1599 = vmatpush1.bf16.msra.mxu0 0
      %1600 = vmatprep.subr.bf16.mxu0 0
      %1601 = vmatpush1.bf16.msra.mxu0 0
      %1602 = vmatprep.subr.bf16.mxu0 0
      %1603 = vmatpush1.bf16.msra.mxu0 0
      %1604 = vmatprep.subr.bf16.mxu0 0
      %1605 = vmatpush1.bf16.msra.mxu0 0
      %1606 = vmatprep.subr.bf16.mxu0 0
      %1607 = vmatpush1.bf16.msra.mxu0 0
      %1608 = vmatprep.subr.bf16.mxu0 0
      %1609 = vmatpush1.bf16.msra.mxu0 0
      %1610 = vmatprep.subr.bf16.mxu0 0
      %1611 = vmatpush1.bf16.msra.mxu0 0
      %1612 = vmatprep.subr.bf16.mxu0 0
      %1613 = vmatpush1.bf16.msra.mxu0 %v1596
      %1614 = vmatprep.subr.bf16.mxu0 0
      %1615 = vmatpush2.bf16.msra.mxu0 0
      %1616 = vmatprep.subr.bf16.mxu0 0
      %1617 = vmatpush2.bf16.msra.mxu0 0
      %1618 = vmatprep.subr.bf16.mxu0 0
      %1619 = vmatpush2.bf16.msra.mxu0 0
      %1620 = vmatprep.subr.bf16.mxu0 0
      %1621 = vmatpush2.bf16.msra.mxu0 0
      %1622 = vmatprep.subr.bf16.mxu0 0
      %1623 = vmatpush2.bf16.msra.mxu0 0
      %1624 = vmatprep.subr.bf16.mxu0 0
      %1625 = vmatpush2.bf16.msra.mxu0 0
      %1626 = vmatprep.subr.bf16.mxu0 0
      %1627 = vmatpush2.bf16.msra.mxu0 0
      %1628 = vmatprep.subr.bf16.mxu0 0
      %1629 = vmatpush2.bf16.msra.mxu0 0
      %1630 = vmatprep.mubr.bf16.mxu0 0
      %1631 = vmatmul.mubr.bf16.gmra.mxu0 %v1589
      %v1632 = vpop.f32.mrf.mxu0
      %v1633 = vadd.f32 0.0, %v1632
      %v1634 = vpop.f32.mrf.mxu0
      %v1635 = vpop.f32.mrf.mxu0
      %v1636 = vadd.f32 0.0, %v1635
      %v1637 = vpop.f32.mrf.mxu0
      %1638 = vmatprep.mubr.bf16.mxu0 0
      %1639 = vmatmul.mubr.bf16.gmra.mxu0 %v1592
      %v1640 = vpop.f32.mrf.mxu0
      %v1641 = vadd.f32 0.0, %v1640
      %v1642 = vpop.f32.mrf.mxu0
      %v1643 = vpop.f32.mrf.mxu0
      %v1644 = vadd.f32 0.0, %v1643
      %v1645 = vpop.f32.mrf.mxu0
      %1646 = vdwg.mxu0
      %v1648 = vsel %vm1587, %v1553, 0
      %v1651 = vsel %vm1587, %v1554, 0
      %v1654 = vsel %vm1594, %v1585, 0
      %1656 = vmatprep.subr.bf16.mxu0 0
      %1657 = vmatpush1.bf16.msra.mxu0 0
      %1658 = vmatprep.subr.bf16.mxu0 0
      %1659 = vmatpush1.bf16.msra.mxu0 0
      %1660 = vmatprep.subr.bf16.mxu0 0
      %1661 = vmatpush1.bf16.msra.mxu0 0
      %1662 = vmatprep.subr.bf16.mxu0 0
      %1663 = vmatpush1.bf16.msra.mxu0 0
      %1664 = vmatprep.subr.bf16.mxu0 0
      %1665 = vmatpush1.bf16.msra.mxu0 0
      %1666 = vmatprep.subr.bf16.mxu0 0
      %1667 = vmatpush1.bf16.msra.mxu0 0
      %1668 = vmatprep.subr.bf16.mxu0 0
      %1669 = vmatpush1.bf16.msra.mxu0 0
      %1670 = vmatprep.subr.bf16.mxu0 0
      %1671 = vmatpush1.bf16.msra.mxu0 %v1654
      %1672 = vmatprep.subr.bf16.mxu0 0
      %1673 = vmatpush2.bf16.msra.mxu0 0
      %1674 = vmatprep.subr.bf16.mxu0 0
      %1675 = vmatpush2.bf16.msra.mxu0 0
      %1676 = vmatprep.subr.bf16.mxu0 0
      %1677 = vmatpush2.bf16.msra.mxu0 0
      %1678 = vmatprep.subr.bf16.mxu0 0
      %1679 = vmatpush2.bf16.msra.mxu0 0
      %1680 = vmatprep.subr.bf16.mxu0 0
      %1681 = vmatpush2.bf16.msra.mxu0 0
      %1682 = vmatprep.subr.bf16.mxu0 0
      %1683 = vmatpush2.bf16.msra.mxu0 0
      %1684 = vmatprep.subr.bf16.mxu0 0
      %1685 = vmatpush2.bf16.msra.mxu0 0
      %1686 = vmatprep.subr.bf16.mxu0 0
      %1687 = vmatpush2.bf16.msra.mxu0 0
      %1688 = vmatprep.mubr.bf16.mxu0 0
      %1689 = vmatmul.mubr.bf16.gmra.mxu0 %v1648
      %v1690 = vpop.f32.mrf.mxu0
      %v1691 = vadd.f32 %v1633, %v1690
      %v1692 = vpop.f32.mrf.mxu0
      %v1693 = vpop.f32.mrf.mxu0
      %v1694 = vadd.f32 %v1636, %v1693
      %v1695 = vpop.f32.mrf.mxu0
      %1696 = vmatprep.mubr.bf16.mxu0 0
      %1697 = vmatmul.mubr.bf16.gmra.mxu0 %v1651
      %v1698 = vpop.f32.mrf.mxu0
      %v1699 = vadd.f32 %v1641, %v1698
      %v1700 = vpop.f32.mrf.mxu0
      %v1701 = vpop.f32.mrf.mxu0
      %v1702 = vadd.f32 %v1644, %v1701
      %v1703 = vpop.f32.mrf.mxu0
      %1704 = vdwg.mxu0
      %v1705 = vld [vmem:[%s4 + $0x8] sm:$0xf]
      %v1707 = vsel %vm1587, %v1557, 0
      %v1710 = vsel %vm1587, %v1558, 0
      %v1713 = vsel %vm1594, %v1705, 0
      %1715 = vmatprep.subr.bf16.mxu0 0
      %1716 = vmatpush1.bf16.msra.mxu0 0
      %1717 = vmatprep.subr.bf16.mxu0 0
      %1718 = vmatpush1.bf16.msra.mxu0 0
      %1719 = vmatprep.subr.bf16.mxu0 0
      %1720 = vmatpush1.bf16.msra.mxu0 0
      %1721 = vmatprep.subr.bf16.mxu0 0
      %1722 = vmatpush1.bf16.msra.mxu0 0
      %1723 = vmatprep.subr.bf16.mxu0 0
      %1724 = vmatpush1.bf16.msra.mxu0 0
      %1725 = vmatprep.subr.bf16.mxu0 0
      %1726 = vmatpush1.bf16.msra.mxu0 0
      %1727 = vmatprep.subr.bf16.mxu0 0
      %1728 = vmatpush1.bf16.msra.mxu0 0
      %1729 = vmatprep.subr.bf16.mxu0 0
      %1730 = vmatpush1.bf16.msra.mxu0 %v1713
      %1731 = vmatprep.subr.bf16.mxu0 0
      %1732 = vmatpush2.bf16.msra.mxu0 0
      %1733 = vmatprep.subr.bf16.mxu0 0
      %1734 = vmatpush2.bf16.msra.mxu0 0
      %1735 = vmatprep.subr.bf16.mxu0 0
      %1736 = vmatpush2.bf16.msra.mxu0 0
      %1737 = vmatprep.subr.bf16.mxu0 0
      %1738 = vmatpush2.bf16.msra.mxu0 0
      %1739 = vmatprep.subr.bf16.mxu0 0
      %1740 = vmatpush2.bf16.msra.mxu0 0
      %1741 = vmatprep.subr.bf16.mxu0 0
      %1742 = vmatpush2.bf16.msra.mxu0 0
      %1743 = vmatprep.subr.bf16.mxu0 0
      %1744 = vmatpush2.bf16.msra.mxu0 0
      %1745 = vmatprep.subr.bf16.mxu0 0
      %1746 = vmatpush2.bf16.msra.mxu0 0
      %1747 = vmatprep.mubr.bf16.mxu0 0
      %1748 = vmatmul.mubr.bf16.gmra.mxu0 %v1707
      %v1749 = vpop.f32.mrf.mxu0
      %v1750 = vadd.f32 0.0, %v1749
      %v1751 = vpop.f32.mrf.mxu0
      %v1752 = vpop.f32.mrf.mxu0
      %v1753 = vadd.f32 0.0, %v1752
      %v1754 = vpop.f32.mrf.mxu0
      %1755 = vmatprep.mubr.bf16.mxu0 0
      %1756 = vmatmul.mubr.bf16.gmra.mxu0 %v1710
      %v1757 = vpop.f32.mrf.mxu0
      %v1758 = vadd.f32 0.0, %v1757
      %v1759 = vpop.f32.mrf.mxu0
      %v1760 = vpop.f32.mrf.mxu0
      %v1761 = vadd.f32 0.0, %v1760
      %v1762 = vpop.f32.mrf.mxu0
      %1763 = vdwg.mxu0
      %v1764 = vadd.f32 %v1691, %v1750
      %v1765 = vadd.f32 %v1694, %v1753
      %v1766 = vadd.f32 %v1699, %v1758
      %v1767 = vadd.f32 %v1702, %v1761
      %v1768 = vld [vmem:[%s4 + $0xc] sm:$0xf]
      %v1770 = vsel %vm1587, %v1559, 0
      %v1773 = vsel %vm1587, %v1560, 0
      %v1776 = vsel %vm1594, %v1768, 0
      %1778 = vmatprep.subr.bf16.mxu0 0
      %1779 = vmatpush1.bf16.msra.mxu0 0
      %1780 = vmatprep.subr.bf16.mxu0 0
      %1781 = vmatpush1.bf16.msra.mxu0 0
      %1782 = vmatprep.subr.bf16.mxu0 0
      %1783 = vmatpush1.bf16.msra.mxu0 0
      %1784 = vmatprep.subr.bf16.mxu0 0
      %1785 = vmatpush1.bf16.msra.mxu0 0
      %1786 = vmatprep.subr.bf16.mxu0 0
      %1787 = vmatpush1.bf16.msra.mxu0 0
      %1788 = vmatprep.subr.bf16.mxu0 0
      %1789 = vmatpush1.bf16.msra.mxu0 0
      %1790 = vmatprep.subr.bf16.mxu0 0
      %1791 = vmatpush1.bf16.msra.mxu0 0
      %1792 = vmatprep.subr.bf16.mxu0 0
      %1793 = vmatpush1.bf16.msra.mxu0 %v1776
      %1794 = vmatprep.subr.bf16.mxu0 0
      %1795 = vmatpush2.bf16.msra.mxu0 0
      %1796 = vmatprep.subr.bf16.mxu0 0
      %1797 = vmatpush2.bf16.msra.mxu0 0
      %1798 = vmatprep.subr.bf16.mxu0 0
      %1799 = vmatpush2.bf16.msra.mxu0 0
      %1800 = vmatprep.subr.bf16.mxu0 0
      %1801 = vmatpush2.bf16.msra.mxu0 0
      %1802 = vmatprep.subr.bf16.mxu0 0
      %1803 = vmatpush2.bf16.msra.mxu0 0
      %1804 = vmatprep.subr.bf16.mxu0 0
      %1805 = vmatpush2.bf16.msra.mxu0 0
      %1806 = vmatprep.subr.bf16.mxu0 0
      %1807 = vmatpush2.bf16.msra.mxu0 0
      %1808 = vmatprep.subr.bf16.mxu0 0
      %1809 = vmatpush2.bf16.msra.mxu0 0
      %1810 = vmatprep.mubr.bf16.mxu0 0
      %1811 = vmatmul.mubr.bf16.gmra.mxu0 %v1770
      %v1812 = vpop.f32.mrf.mxu0
      %v1813 = vadd.f32 0.0, %v1812
      %v1814 = vpop.f32.mrf.mxu0
      %v1815 = vpop.f32.mrf.mxu0
      %v1816 = vadd.f32 0.0, %v1815
      %v1817 = vpop.f32.mrf.mxu0
      %1818 = vmatprep.mubr.bf16.mxu0 0
      %1819 = vmatmul.mubr.bf16.gmra.mxu0 %v1773
      %v1820 = vpop.f32.mrf.mxu0
      %v1821 = vadd.f32 0.0, %v1820
      %v1822 = vpop.f32.mrf.mxu0
      %v1823 = vpop.f32.mrf.mxu0
      %v1824 = vadd.f32 0.0, %v1823
      %v1825 = vpop.f32.mrf.mxu0
      %1826 = vdwg.mxu0
      %v1827 = vadd.f32 %v1764, %v1813
      %v1828 = vadd.f32 %v1765, %v1816
      %v1829 = vadd.f32 %v1766, %v1821
      %v1830 = vadd.f32 %v1767, %v1824
      %v1831 = vld [vmem:[%s4 + $0x10] sm:$0xf]
      %v1833 = vsel %vm1587, %v1561, 0
      %v1836 = vsel %vm1587, %v1562, 0
      %v1839 = vsel %vm1594, %v1831, 0
      %1841 = vmatprep.subr.bf16.mxu0 0
      %1842 = vmatpush1.bf16.msra.mxu0 0
      %1843 = vmatprep.subr.bf16.mxu0 0
      %1844 = vmatpush1.bf16.msra.mxu0 0
      %1845 = vmatprep.subr.bf16.mxu0 0
      %1846 = vmatpush1.bf16.msra.mxu0 0
      %1847 = vmatprep.subr.bf16.mxu0 0
      %1848 = vmatpush1.bf16.msra.mxu0 0
      %1849 = vmatprep.subr.bf16.mxu0 0
      %1850 = vmatpush1.bf16.msra.mxu0 0
      %1851 = vmatprep.subr.bf16.mxu0 0
      %1852 = vmatpush1.bf16.msra.mxu0 0
      %1853 = vmatprep.subr.bf16.mxu0 0
      %1854 = vmatpush1.bf16.msra.mxu0 0
      %1855 = vmatprep.subr.bf16.mxu0 0
      %1856 = vmatpush1.bf16.msra.mxu0 %v1839
      %1857 = vmatprep.subr.bf16.mxu0 0
      %1858 = vmatpush2.bf16.msra.mxu0 0
      %1859 = vmatprep.subr.bf16.mxu0 0
      %1860 = vmatpush2.bf16.msra.mxu0 0
      %1861 = vmatprep.subr.bf16.mxu0 0
      %1862 = vmatpush2.bf16.msra.mxu0 0
      %1863 = vmatprep.subr.bf16.mxu0 0
      %1864 = vmatpush2.bf16.msra.mxu0 0
      %1865 = vmatprep.subr.bf16.mxu0 0
      %1866 = vmatpush2.bf16.msra.mxu0 0
      %1867 = vmatprep.subr.bf16.mxu0 0
      %1868 = vmatpush2.bf16.msra.mxu0 0
      %1869 = vmatprep.subr.bf16.mxu0 0
      %1870 = vmatpush2.bf16.msra.mxu0 0
      %1871 = vmatprep.subr.bf16.mxu0 0
      %1872 = vmatpush2.bf16.msra.mxu0 0
      %1873 = vmatprep.mubr.bf16.mxu0 0
      %1874 = vmatmul.mubr.bf16.gmra.mxu0 %v1833
      %v1875 = vpop.f32.mrf.mxu0
      %v1876 = vadd.f32 0.0, %v1875
      %v1877 = vpop.f32.mrf.mxu0
      %v1878 = vpop.f32.mrf.mxu0
      %v1879 = vadd.f32 0.0, %v1878
      %v1880 = vpop.f32.mrf.mxu0
      %1881 = vmatprep.mubr.bf16.mxu0 0
      %1882 = vmatmul.mubr.bf16.gmra.mxu0 %v1836
      %v1883 = vpop.f32.mrf.mxu0
      %v1884 = vadd.f32 0.0, %v1883
      %v1885 = vpop.f32.mrf.mxu0
      %v1886 = vpop.f32.mrf.mxu0
      %v1887 = vadd.f32 0.0, %v1886
      %v1888 = vpop.f32.mrf.mxu0
      %1889 = vdwg.mxu0
      %v1890 = vadd.f32 %v1827, %v1876
      %v1891 = vadd.f32 %v1828, %v1879
      %v1892 = vadd.f32 %v1829, %v1884
      %v1893 = vadd.f32 %v1830, %v1887
      %v1894 = vld [vmem:[%s4 + $0x14] sm:$0xf]
      %v1896 = vsel %vm1587, %v1563, 0
      %v1899 = vsel %vm1587, %v1564, 0
      %v1902 = vsel %vm1594, %v1894, 0
      %1904 = vmatprep.subr.bf16.mxu0 0
      %1905 = vmatpush1.bf16.msra.mxu0 0
      %1906 = vmatprep.subr.bf16.mxu0 0
      %1907 = vmatpush1.bf16.msra.mxu0 0
      %1908 = vmatprep.subr.bf16.mxu0 0
      %1909 = vmatpush1.bf16.msra.mxu0 0
      %1910 = vmatprep.subr.bf16.mxu0 0
      %1911 = vmatpush1.bf16.msra.mxu0 0
      %1912 = vmatprep.subr.bf16.mxu0 0
      %1913 = vmatpush1.bf16.msra.mxu0 0
      %1914 = vmatprep.subr.bf16.mxu0 0
      %1915 = vmatpush1.bf16.msra.mxu0 0
      %1916 = vmatprep.subr.bf16.mxu0 0
      %1917 = vmatpush1.bf16.msra.mxu0 0
      %1918 = vmatprep.subr.bf16.mxu0 0
      %1919 = vmatpush1.bf16.msra.mxu0 %v1902
      %1920 = vmatprep.subr.bf16.mxu0 0
      %1921 = vmatpush2.bf16.msra.mxu0 0
      %1922 = vmatprep.subr.bf16.mxu0 0
      %1923 = vmatpush2.bf16.msra.mxu0 0
      %1924 = vmatprep.subr.bf16.mxu0 0
      %1925 = vmatpush2.bf16.msra.mxu0 0
      %1926 = vmatprep.subr.bf16.mxu0 0
      %1927 = vmatpush2.bf16.msra.mxu0 0
      %1928 = vmatprep.subr.bf16.mxu0 0
      %1929 = vmatpush2.bf16.msra.mxu0 0
      %1930 = vmatprep.subr.bf16.mxu0 0
      %1931 = vmatpush2.bf16.msra.mxu0 0
      %1932 = vmatprep.subr.bf16.mxu0 0
      %1933 = vmatpush2.bf16.msra.mxu0 0
      %1934 = vmatprep.subr.bf16.mxu0 0
      %1935 = vmatpush2.bf16.msra.mxu0 0
      %1936 = vmatprep.mubr.bf16.mxu0 0
      %1937 = vmatmul.mubr.bf16.gmra.mxu0 %v1896
      %v1938 = vpop.f32.mrf.mxu0
      %v1939 = vadd.f32 0.0, %v1938
      %v1940 = vpop.f32.mrf.mxu0
      %v1941 = vpop.f32.mrf.mxu0
      %v1942 = vadd.f32 0.0, %v1941
      %v1943 = vpop.f32.mrf.mxu0
      %1944 = vmatprep.mubr.bf16.mxu0 0
      %1945 = vmatmul.mubr.bf16.gmra.mxu0 %v1899
      %v1946 = vpop.f32.mrf.mxu0
      %v1947 = vadd.f32 0.0, %v1946
      %v1948 = vpop.f32.mrf.mxu0
      %v1949 = vpop.f32.mrf.mxu0
      %v1950 = vadd.f32 0.0, %v1949
      %v1951 = vpop.f32.mrf.mxu0
      %1952 = vdwg.mxu0
      %v1953 = vadd.f32 %v1890, %v1939
      %v1954 = vadd.f32 %v1891, %v1942
      %v1955 = vadd.f32 %v1892, %v1947
      %v1956 = vadd.f32 %v1893, %v1950
      %v1957 = vld [vmem:[%s4 + $0x18] sm:$0xf]
      %v1959 = vsel %vm1587, %v1565, 0
      %v1962 = vsel %vm1587, %v1566, 0
      %v1965 = vsel %vm1594, %v1957, 0
      %1967 = vmatprep.subr.bf16.mxu0 0
      %1968 = vmatpush1.bf16.msra.mxu0 0
      %1969 = vmatprep.subr.bf16.mxu0 0
      %1970 = vmatpush1.bf16.msra.mxu0 0
      %1971 = vmatprep.subr.bf16.mxu0 0
      %1972 = vmatpush1.bf16.msra.mxu0 0
      %1973 = vmatprep.subr.bf16.mxu0 0
      %1974 = vmatpush1.bf16.msra.mxu0 0
      %1975 = vmatprep.subr.bf16.mxu0 0
      %1976 = vmatpush1.bf16.msra.mxu0 0
      %1977 = vmatprep.subr.bf16.mxu0 0
      %1978 = vmatpush1.bf16.msra.mxu0 0
      %1979 = vmatprep.subr.bf16.mxu0 0
      %1980 = vmatpush1.bf16.msra.mxu0 0
      %1981 = vmatprep.subr.bf16.mxu0 0
      %1982 = vmatpush1.bf16.msra.mxu0 %v1965
      %1983 = vmatprep.subr.bf16.mxu0 0
      %1984 = vmatpush2.bf16.msra.mxu0 0
      %1985 = vmatprep.subr.bf16.mxu0 0
      %1986 = vmatpush2.bf16.msra.mxu0 0
      %1987 = vmatprep.subr.bf16.mxu0 0
      %1988 = vmatpush2.bf16.msra.mxu0 0
      %1989 = vmatprep.subr.bf16.mxu0 0
      %1990 = vmatpush2.bf16.msra.mxu0 0
      %1991 = vmatprep.subr.bf16.mxu0 0
      %1992 = vmatpush2.bf16.msra.mxu0 0
      %1993 = vmatprep.subr.bf16.mxu0 0
      %1994 = vmatpush2.bf16.msra.mxu0 0
      %1995 = vmatprep.subr.bf16.mxu0 0
      %1996 = vmatpush2.bf16.msra.mxu0 0
      %1997 = vmatprep.subr.bf16.mxu0 0
      %1998 = vmatpush2.bf16.msra.mxu0 0
      %1999 = vmatprep.mubr.bf16.mxu0 0
      %2000 = vmatmul.mubr.bf16.gmra.mxu0 %v1959
      %v2001 = vpop.f32.mrf.mxu0
      %v2002 = vadd.f32 0.0, %v2001
      %v2003 = vpop.f32.mrf.mxu0
      %v2004 = vpop.f32.mrf.mxu0
      %v2005 = vadd.f32 0.0, %v2004
      %v2006 = vpop.f32.mrf.mxu0
      %2007 = vmatprep.mubr.bf16.mxu0 0
      %2008 = vmatmul.mubr.bf16.gmra.mxu0 %v1962
      %v2009 = vpop.f32.mrf.mxu0
      %v2010 = vadd.f32 0.0, %v2009
      %v2011 = vpop.f32.mrf.mxu0
      %v2012 = vpop.f32.mrf.mxu0
      %v2013 = vadd.f32 0.0, %v2012
      %v2014 = vpop.f32.mrf.mxu0
      %2015 = vdwg.mxu0
      %v2016 = vadd.f32 %v1953, %v2002
      %v2017 = vadd.f32 %v1954, %v2005
      %v2018 = vadd.f32 %v1955, %v2010
      %v2019 = vadd.f32 %v1956, %v2013
      %v2020 = vld [vmem:[%s4 + $0x1c] sm:$0xf]
      %v2022 = vsel %vm1587, %v1567, 0
      %v2025 = vsel %vm1587, %v1568, 0
      %v2028 = vsel %vm1594, %v2020, 0
      %2030 = vmatprep.subr.bf16.mxu0 0
      %2031 = vmatpush1.bf16.msra.mxu0 0
      %2032 = vmatprep.subr.bf16.mxu0 0
      %2033 = vmatpush1.bf16.msra.mxu0 0
      %2034 = vmatprep.subr.bf16.mxu0 0
      %2035 = vmatpush1.bf16.msra.mxu0 0
      %2036 = vmatprep.subr.bf16.mxu0 0
      %2037 = vmatpush1.bf16.msra.mxu0 0
      %2038 = vmatprep.subr.bf16.mxu0 0
      %2039 = vmatpush1.bf16.msra.mxu0 0
      %2040 = vmatprep.subr.bf16.mxu0 0
      %2041 = vmatpush1.bf16.msra.mxu0 0
      %2042 = vmatprep.subr.bf16.mxu0 0
      %2043 = vmatpush1.bf16.msra.mxu0 0
      %2044 = vmatprep.subr.bf16.mxu0 0
      %2045 = vmatpush1.bf16.msra.mxu0 %v2028
      %2046 = vmatprep.subr.bf16.mxu0 0
      %2047 = vmatpush2.bf16.msra.mxu0 0
      %2048 = vmatprep.subr.bf16.mxu0 0
      %2049 = vmatpush2.bf16.msra.mxu0 0
      %2050 = vmatprep.subr.bf16.mxu0 0
      %2051 = vmatpush2.bf16.msra.mxu0 0
      %2052 = vmatprep.subr.bf16.mxu0 0
      %2053 = vmatpush2.bf16.msra.mxu0 0
      %2054 = vmatprep.subr.bf16.mxu0 0
      %2055 = vmatpush2.bf16.msra.mxu0 0
      %2056 = vmatprep.subr.bf16.mxu0 0
      %2057 = vmatpush2.bf16.msra.mxu0 0
      %2058 = vmatprep.subr.bf16.mxu0 0
      %2059 = vmatpush2.bf16.msra.mxu0 0
      %2060 = vmatprep.subr.bf16.mxu0 0
      %2061 = vmatpush2.bf16.msra.mxu0 0
      %2062 = vmatprep.mubr.bf16.mxu0 0
      %2063 = vmatmul.mubr.bf16.gmra.mxu0 %v2022
      %v2064 = vpop.f32.mrf.mxu0
      %v2065 = vadd.f32 0.0, %v2064
      %v2066 = vpop.f32.mrf.mxu0
      %v2067 = vpop.f32.mrf.mxu0
      %v2068 = vadd.f32 0.0, %v2067
      %v2069 = vpop.f32.mrf.mxu0
      %2070 = vmatprep.mubr.bf16.mxu0 0
      %2071 = vmatmul.mubr.bf16.gmra.mxu0 %v2025
      %v2072 = vpop.f32.mrf.mxu0
      %v2073 = vadd.f32 0.0, %v2072
      %v2074 = vpop.f32.mrf.mxu0
      %v2075 = vpop.f32.mrf.mxu0
      %v2076 = vadd.f32 0.0, %v2075
      %v2077 = vpop.f32.mrf.mxu0
      %2078 = vdwg.mxu0
      %v2079 = vadd.f32 %v2016, %v2065
      %v2080 = vadd.f32 %v2017, %v2068
      %v2081 = vadd.f32 %v2018, %v2073
      %v2082 = vadd.f32 %v2019, %v2076
      %v2083 = vld [vmem:[%s4 + $0x20] sm:$0xf]
      %v2085 = vsel %vm1587, %v1569, 0
      %v2088 = vsel %vm1587, %v1570, 0
      %v2091 = vsel %vm1594, %v2083, 0
      %2093 = vmatprep.subr.bf16.mxu0 0
      %2094 = vmatpush1.bf16.msra.mxu0 0
      %2095 = vmatprep.subr.bf16.mxu0 0
      %2096 = vmatpush1.bf16.msra.mxu0 0
      %2097 = vmatprep.subr.bf16.mxu0 0
      %2098 = vmatpush1.bf16.msra.mxu0 0
      %2099 = vmatprep.subr.bf16.mxu0 0
      %2100 = vmatpush1.bf16.msra.mxu0 0
      %2101 = vmatprep.subr.bf16.mxu0 0
      %2102 = vmatpush1.bf16.msra.mxu0 0
      %2103 = vmatprep.subr.bf16.mxu0 0
      %2104 = vmatpush1.bf16.msra.mxu0 0
      %2105 = vmatprep.subr.bf16.mxu0 0
      %2106 = vmatpush1.bf16.msra.mxu0 0
      %2107 = vmatprep.subr.bf16.mxu0 0
      %2108 = vmatpush1.bf16.msra.mxu0 %v2091
      %2109 = vmatprep.subr.bf16.mxu0 0
      %2110 = vmatpush2.bf16.msra.mxu0 0
      %2111 = vmatprep.subr.bf16.mxu0 0
      %2112 = vmatpush2.bf16.msra.mxu0 0
      %2113 = vmatprep.subr.bf16.mxu0 0
      %2114 = vmatpush2.bf16.msra.mxu0 0
      %2115 = vmatprep.subr.bf16.mxu0 0
      %2116 = vmatpush2.bf16.msra.mxu0 0
      %2117 = vmatprep.subr.bf16.mxu0 0
      %2118 = vmatpush2.bf16.msra.mxu0 0
      %2119 = vmatprep.subr.bf16.mxu0 0
      %2120 = vmatpush2.bf16.msra.mxu0 0
      %2121 = vmatprep.subr.bf16.mxu0 0
      %2122 = vmatpush2.bf16.msra.mxu0 0
      %2123 = vmatprep.subr.bf16.mxu0 0
      %2124 = vmatpush2.bf16.msra.mxu0 0
      %2125 = vmatprep.mubr.bf16.mxu0 0
      %2126 = vmatmul.mubr.bf16.gmra.mxu0 %v2085
      %v2127 = vpop.f32.mrf.mxu0
      %v2128 = vadd.f32 0.0, %v2127
      %v2129 = vpop.f32.mrf.mxu0
      %v2130 = vpop.f32.mrf.mxu0
      %v2131 = vadd.f32 0.0, %v2130
      %v2132 = vpop.f32.mrf.mxu0
      %2133 = vmatprep.mubr.bf16.mxu0 0
      %2134 = vmatmul.mubr.bf16.gmra.mxu0 %v2088
      %v2135 = vpop.f32.mrf.mxu0
      %v2136 = vadd.f32 0.0, %v2135
      %v2137 = vpop.f32.mrf.mxu0
      %v2138 = vpop.f32.mrf.mxu0
      %v2139 = vadd.f32 0.0, %v2138
      %v2140 = vpop.f32.mrf.mxu0
      %2141 = vdwg.mxu0
      %v2142 = vadd.f32 %v2079, %v2128
      %v2143 = vadd.f32 %v2080, %v2131
      %v2144 = vadd.f32 %v2081, %v2136
      %v2145 = vadd.f32 %v2082, %v2139
      %v2146 = vld [vmem:[%s4 + $0x24] sm:$0xf]
      %v2148 = vsel %vm1587, %v1571, 0
      %v2151 = vsel %vm1587, %v1572, 0
      %v2154 = vsel %vm1594, %v2146, 0
      %2156 = vmatprep.subr.bf16.mxu0 0
      %2157 = vmatpush1.bf16.msra.mxu0 0
      %2158 = vmatprep.subr.bf16.mxu0 0
      %2159 = vmatpush1.bf16.msra.mxu0 0
      %2160 = vmatprep.subr.bf16.mxu0 0
      %2161 = vmatpush1.bf16.msra.mxu0 0
      %2162 = vmatprep.subr.bf16.mxu0 0
      %2163 = vmatpush1.bf16.msra.mxu0 0
      %2164 = vmatprep.subr.bf16.mxu0 0
      %2165 = vmatpush1.bf16.msra.mxu0 0
      %2166 = vmatprep.subr.bf16.mxu0 0
      %2167 = vmatpush1.bf16.msra.mxu0 0
      %2168 = vmatprep.subr.bf16.mxu0 0
      %2169 = vmatpush1.bf16.msra.mxu0 0
      %2170 = vmatprep.subr.bf16.mxu0 0
      %2171 = vmatpush1.bf16.msra.mxu0 %v2154
      %2172 = vmatprep.subr.bf16.mxu0 0
      %2173 = vmatpush2.bf16.msra.mxu0 0
      %2174 = vmatprep.subr.bf16.mxu0 0
      %2175 = vmatpush2.bf16.msra.mxu0 0
      %2176 = vmatprep.subr.bf16.mxu0 0
      %2177 = vmatpush2.bf16.msra.mxu0 0
      %2178 = vmatprep.subr.bf16.mxu0 0
      %2179 = vmatpush2.bf16.msra.mxu0 0
      %2180 = vmatprep.subr.bf16.mxu0 0
      %2181 = vmatpush2.bf16.msra.mxu0 0
      %2182 = vmatprep.subr.bf16.mxu0 0
      %2183 = vmatpush2.bf16.msra.mxu0 0
      %2184 = vmatprep.subr.bf16.mxu0 0
      %2185 = vmatpush2.bf16.msra.mxu0 0
      %2186 = vmatprep.subr.bf16.mxu0 0
      %2187 = vmatpush2.bf16.msra.mxu0 0
      %2188 = vmatprep.mubr.bf16.mxu0 0
      %2189 = vmatmul.mubr.bf16.gmra.mxu0 %v2148
      %v2190 = vpop.f32.mrf.mxu0
      %v2191 = vadd.f32 0.0, %v2190
      %v2192 = vpop.f32.mrf.mxu0
      %v2193 = vpop.f32.mrf.mxu0
      %v2194 = vadd.f32 0.0, %v2193
      %v2195 = vpop.f32.mrf.mxu0
      %2196 = vmatprep.mubr.bf16.mxu0 0
      %2197 = vmatmul.mubr.bf16.gmra.mxu0 %v2151
      %v2198 = vpop.f32.mrf.mxu0
      %v2199 = vadd.f32 0.0, %v2198
      %v2200 = vpop.f32.mrf.mxu0
      %v2201 = vpop.f32.mrf.mxu0
      %v2202 = vadd.f32 0.0, %v2201
      %v2203 = vpop.f32.mrf.mxu0
      %2204 = vdwg.mxu0
      %v2205 = vadd.f32 %v2142, %v2191
      %v2206 = vadd.f32 %v2143, %v2194
      %v2207 = vadd.f32 %v2144, %v2199
      %v2208 = vadd.f32 %v2145, %v2202
      %v2209 = vld [vmem:[%s4 + $0x28] sm:$0xf]
      %v2211 = vsel %vm1587, %v1573, 0
      %v2214 = vsel %vm1587, %v1574, 0
      %v2217 = vsel %vm1594, %v2209, 0
      %2219 = vmatprep.subr.bf16.mxu0 0
      %2220 = vmatpush1.bf16.msra.mxu0 0
      %2221 = vmatprep.subr.bf16.mxu0 0
      %2222 = vmatpush1.bf16.msra.mxu0 0
      %2223 = vmatprep.subr.bf16.mxu0 0
      %2224 = vmatpush1.bf16.msra.mxu0 0
      %2225 = vmatprep.subr.bf16.mxu0 0
      %2226 = vmatpush1.bf16.msra.mxu0 0
      %2227 = vmatprep.subr.bf16.mxu0 0
      %2228 = vmatpush1.bf16.msra.mxu0 0
      %2229 = vmatprep.subr.bf16.mxu0 0
      %2230 = vmatpush1.bf16.msra.mxu0 0
      %2231 = vmatprep.subr.bf16.mxu0 0
      %2232 = vmatpush1.bf16.msra.mxu0 0
      %2233 = vmatprep.subr.bf16.mxu0 0
      %2234 = vmatpush1.bf16.msra.mxu0 %v2217
      %2235 = vmatprep.subr.bf16.mxu0 0
      %2236 = vmatpush2.bf16.msra.mxu0 0
      %2237 = vmatprep.subr.bf16.mxu0 0
      %2238 = vmatpush2.bf16.msra.mxu0 0
      %2239 = vmatprep.subr.bf16.mxu0 0
      %2240 = vmatpush2.bf16.msra.mxu0 0
      %2241 = vmatprep.subr.bf16.mxu0 0
      %2242 = vmatpush2.bf16.msra.mxu0 0
      %2243 = vmatprep.subr.bf16.mxu0 0
      %2244 = vmatpush2.bf16.msra.mxu0 0
      %2245 = vmatprep.subr.bf16.mxu0 0
      %2246 = vmatpush2.bf16.msra.mxu0 0
      %2247 = vmatprep.subr.bf16.mxu0 0
      %2248 = vmatpush2.bf16.msra.mxu0 0
      %2249 = vmatprep.subr.bf16.mxu0 0
      %2250 = vmatpush2.bf16.msra.mxu0 0
      %2251 = vmatprep.mubr.bf16.mxu0 0
      %2252 = vmatmul.mubr.bf16.gmra.mxu0 %v2211
      %v2253 = vpop.f32.mrf.mxu0
      %v2254 = vadd.f32 0.0, %v2253
      %v2255 = vpop.f32.mrf.mxu0
      %v2256 = vpop.f32.mrf.mxu0
      %v2257 = vadd.f32 0.0, %v2256
      %v2258 = vpop.f32.mrf.mxu0
      %2259 = vmatprep.mubr.bf16.mxu0 0
      %2260 = vmatmul.mubr.bf16.gmra.mxu0 %v2214
      %v2261 = vpop.f32.mrf.mxu0
      %v2262 = vadd.f32 0.0, %v2261
      %v2263 = vpop.f32.mrf.mxu0
      %v2264 = vpop.f32.mrf.mxu0
      %v2265 = vadd.f32 0.0, %v2264
      %v2266 = vpop.f32.mrf.mxu0
      %2267 = vdwg.mxu0
      %v2268 = vadd.f32 %v2205, %v2254
      %v2269 = vadd.f32 %v2206, %v2257
      %v2270 = vadd.f32 %v2207, %v2262
      %v2271 = vadd.f32 %v2208, %v2265
      %v2272 = vld [vmem:[%s4 + $0x2c] sm:$0xf]
      %v2274 = vsel %vm1587, %v1575, 0
      %v2277 = vsel %vm1587, %v1576, 0
      %v2280 = vsel %vm1594, %v2272, 0
      %2282 = vmatprep.subr.bf16.mxu0 0
      %2283 = vmatpush1.bf16.msra.mxu0 0
      %2284 = vmatprep.subr.bf16.mxu0 0
      %2285 = vmatpush1.bf16.msra.mxu0 0
      %2286 = vmatprep.subr.bf16.mxu0 0
      %2287 = vmatpush1.bf16.msra.mxu0 0
      %2288 = vmatprep.subr.bf16.mxu0 0
      %2289 = vmatpush1.bf16.msra.mxu0 0
      %2290 = vmatprep.subr.bf16.mxu0 0
      %2291 = vmatpush1.bf16.msra.mxu0 0
      %2292 = vmatprep.subr.bf16.mxu0 0
      %2293 = vmatpush1.bf16.msra.mxu0 0
      %2294 = vmatprep.subr.bf16.mxu0 0
      %2295 = vmatpush1.bf16.msra.mxu0 0
      %2296 = vmatprep.subr.bf16.mxu0 0
      %2297 = vmatpush1.bf16.msra.mxu0 %v2280
      %2298 = vmatprep.subr.bf16.mxu0 0
      %2299 = vmatpush2.bf16.msra.mxu0 0
      %2300 = vmatprep.subr.bf16.mxu0 0
      %2301 = vmatpush2.bf16.msra.mxu0 0
      %2302 = vmatprep.subr.bf16.mxu0 0
      %2303 = vmatpush2.bf16.msra.mxu0 0
      %2304 = vmatprep.subr.bf16.mxu0 0
      %2305 = vmatpush2.bf16.msra.mxu0 0
      %2306 = vmatprep.subr.bf16.mxu0 0
      %2307 = vmatpush2.bf16.msra.mxu0 0
      %2308 = vmatprep.subr.bf16.mxu0 0
      %2309 = vmatpush2.bf16.msra.mxu0 0
      %2310 = vmatprep.subr.bf16.mxu0 0
      %2311 = vmatpush2.bf16.msra.mxu0 0
      %2312 = vmatprep.subr.bf16.mxu0 0
      %2313 = vmatpush2.bf16.msra.mxu0 0
      %2314 = vmatprep.mubr.bf16.mxu0 0
      %2315 = vmatmul.mubr.bf16.gmra.mxu0 %v2274
      %v2316 = vpop.f32.mrf.mxu0
      %v2317 = vadd.f32 0.0, %v2316
      %v2318 = vpop.f32.mrf.mxu0
      %v2319 = vpop.f32.mrf.mxu0
      %v2320 = vadd.f32 0.0, %v2319
      %v2321 = vpop.f32.mrf.mxu0
      %2322 = vmatprep.mubr.bf16.mxu0 0
      %2323 = vmatmul.mubr.bf16.gmra.mxu0 %v2277
      %v2324 = vpop.f32.mrf.mxu0
      %v2325 = vadd.f32 0.0, %v2324
      %v2326 = vpop.f32.mrf.mxu0
      %v2327 = vpop.f32.mrf.mxu0
      %v2328 = vadd.f32 0.0, %v2327
      %v2329 = vpop.f32.mrf.mxu0
      %2330 = vdwg.mxu0
      %v2331 = vadd.f32 %v2268, %v2317
      %v2332 = vadd.f32 %v2269, %v2320
      %v2333 = vadd.f32 %v2270, %v2325
      %v2334 = vadd.f32 %v2271, %v2328
      %v2335 = vld [vmem:[%s4 + $0x30] sm:$0xf]
      %v2337 = vsel %vm1587, %v1577, 0
      %v2340 = vsel %vm1587, %v1578, 0
      %v2343 = vsel %vm1594, %v2335, 0
      %2345 = vmatprep.subr.bf16.mxu0 0
      %2346 = vmatpush1.bf16.msra.mxu0 0
      %2347 = vmatprep.subr.bf16.mxu0 0
      %2348 = vmatpush1.bf16.msra.mxu0 0
      %2349 = vmatprep.subr.bf16.mxu0 0
      %2350 = vmatpush1.bf16.msra.mxu0 0
      %2351 = vmatprep.subr.bf16.mxu0 0
      %2352 = vmatpush1.bf16.msra.mxu0 0
      %2353 = vmatprep.subr.bf16.mxu0 0
      %2354 = vmatpush1.bf16.msra.mxu0 0
      %2355 = vmatprep.subr.bf16.mxu0 0
      %2356 = vmatpush1.bf16.msra.mxu0 0
      %2357 = vmatprep.subr.bf16.mxu0 0
      %2358 = vmatpush1.bf16.msra.mxu0 0
      %2359 = vmatprep.subr.bf16.mxu0 0
      %2360 = vmatpush1.bf16.msra.mxu0 %v2343
      %2361 = vmatprep.subr.bf16.mxu0 0
      %2362 = vmatpush2.bf16.msra.mxu0 0
      %2363 = vmatprep.subr.bf16.mxu0 0
      %2364 = vmatpush2.bf16.msra.mxu0 0
      %2365 = vmatprep.subr.bf16.mxu0 0
      %2366 = vmatpush2.bf16.msra.mxu0 0
      %2367 = vmatprep.subr.bf16.mxu0 0
      %2368 = vmatpush2.bf16.msra.mxu0 0
      %2369 = vmatprep.subr.bf16.mxu0 0
      %2370 = vmatpush2.bf16.msra.mxu0 0
      %2371 = vmatprep.subr.bf16.mxu0 0
      %2372 = vmatpush2.bf16.msra.mxu0 0
      %2373 = vmatprep.subr.bf16.mxu0 0
      %2374 = vmatpush2.bf16.msra.mxu0 0
      %2375 = vmatprep.subr.bf16.mxu0 0
      %2376 = vmatpush2.bf16.msra.mxu0 0
      %2377 = vmatprep.mubr.bf16.mxu0 0
      %2378 = vmatmul.mubr.bf16.gmra.mxu0 %v2337
      %v2379 = vpop.f32.mrf.mxu0
      %v2380 = vadd.f32 0.0, %v2379
      %v2381 = vpop.f32.mrf.mxu0
      %v2382 = vpop.f32.mrf.mxu0
      %v2383 = vadd.f32 0.0, %v2382
      %v2384 = vpop.f32.mrf.mxu0
      %2385 = vmatprep.mubr.bf16.mxu0 0
      %2386 = vmatmul.mubr.bf16.gmra.mxu0 %v2340
      %v2387 = vpop.f32.mrf.mxu0
      %v2388 = vadd.f32 0.0, %v2387
      %v2389 = vpop.f32.mrf.mxu0
      %v2390 = vpop.f32.mrf.mxu0
      %v2391 = vadd.f32 0.0, %v2390
      %v2392 = vpop.f32.mrf.mxu0
      %2393 = vdwg.mxu0
      %v2394 = vadd.f32 %v2331, %v2380
      %v2395 = vadd.f32 %v2332, %v2383
      %v2396 = vadd.f32 %v2333, %v2388
      %v2397 = vadd.f32 %v2334, %v2391
      %v2398 = vld [vmem:[%s4 + $0x34] sm:$0xf]
      %v2400 = vsel %vm1587, %v1579, 0
      %v2403 = vsel %vm1587, %v1580, 0
      %v2406 = vsel %vm1594, %v2398, 0
      %2408 = vmatprep.subr.bf16.mxu0 0
      %2409 = vmatpush1.bf16.msra.mxu0 0
      %2410 = vmatprep.subr.bf16.mxu0 0
      %2411 = vmatpush1.bf16.msra.mxu0 0
      %2412 = vmatprep.subr.bf16.mxu0 0
      %2413 = vmatpush1.bf16.msra.mxu0 0
      %2414 = vmatprep.subr.bf16.mxu0 0
      %2415 = vmatpush1.bf16.msra.mxu0 0
      %2416 = vmatprep.subr.bf16.mxu0 0
      %2417 = vmatpush1.bf16.msra.mxu0 0
      %2418 = vmatprep.subr.bf16.mxu0 0
      %2419 = vmatpush1.bf16.msra.mxu0 0
      %2420 = vmatprep.subr.bf16.mxu0 0
      %2421 = vmatpush1.bf16.msra.mxu0 0
      %2422 = vmatprep.subr.bf16.mxu0 0
      %2423 = vmatpush1.bf16.msra.mxu0 %v2406
      %2424 = vmatprep.subr.bf16.mxu0 0
      %2425 = vmatpush2.bf16.msra.mxu0 0
      %2426 = vmatprep.subr.bf16.mxu0 0
      %2427 = vmatpush2.bf16.msra.mxu0 0
      %2428 = vmatprep.subr.bf16.mxu0 0
      %2429 = vmatpush2.bf16.msra.mxu0 0
      %2430 = vmatprep.subr.bf16.mxu0 0
      %2431 = vmatpush2.bf16.msra.mxu0 0
      %2432 = vmatprep.subr.bf16.mxu0 0
      %2433 = vmatpush2.bf16.msra.mxu0 0
      %2434 = vmatprep.subr.bf16.mxu0 0
      %2435 = vmatpush2.bf16.msra.mxu0 0
      %2436 = vmatprep.subr.bf16.mxu0 0
      %2437 = vmatpush2.bf16.msra.mxu0 0
      %2438 = vmatprep.subr.bf16.mxu0 0
      %2439 = vmatpush2.bf16.msra.mxu0 0
      %2440 = vmatprep.mubr.bf16.mxu0 0
      %2441 = vmatmul.mubr.bf16.gmra.mxu0 %v2400
      %v2442 = vpop.f32.mrf.mxu0
      %v2443 = vadd.f32 0.0, %v2442
      %v2444 = vpop.f32.mrf.mxu0
      %v2445 = vpop.f32.mrf.mxu0
      %v2446 = vadd.f32 0.0, %v2445
      %v2447 = vpop.f32.mrf.mxu0
      %2448 = vmatprep.mubr.bf16.mxu0 0
      %2449 = vmatmul.mubr.bf16.gmra.mxu0 %v2403
      %v2450 = vpop.f32.mrf.mxu0
      %v2451 = vadd.f32 0.0, %v2450
      %v2452 = vpop.f32.mrf.mxu0
      %v2453 = vpop.f32.mrf.mxu0
      %v2454 = vadd.f32 0.0, %v2453
      %v2455 = vpop.f32.mrf.mxu0
      %2456 = vdwg.mxu0
      %v2457 = vadd.f32 %v2394, %v2443
      %v2458 = vadd.f32 %v2395, %v2446
      %v2459 = vadd.f32 %v2396, %v2451
      %v2460 = vadd.f32 %v2397, %v2454
      %v2461 = vld [vmem:[%s4 + $0x38] sm:$0xf]
      %v2463 = vsel %vm1587, %v1581, 0
      %v2466 = vsel %vm1587, %v1582, 0
      %v2469 = vsel %vm1594, %v2461, 0
      %2471 = vmatprep.subr.bf16.mxu0 0
      %2472 = vmatpush1.bf16.msra.mxu0 0
      %2473 = vmatprep.subr.bf16.mxu0 0
      %2474 = vmatpush1.bf16.msra.mxu0 0
      %2475 = vmatprep.subr.bf16.mxu0 0
      %2476 = vmatpush1.bf16.msra.mxu0 0
      %2477 = vmatprep.subr.bf16.mxu0 0
      %2478 = vmatpush1.bf16.msra.mxu0 0
      %2479 = vmatprep.subr.bf16.mxu0 0
      %2480 = vmatpush1.bf16.msra.mxu0 0
      %2481 = vmatprep.subr.bf16.mxu0 0
      %2482 = vmatpush1.bf16.msra.mxu0 0
      %2483 = vmatprep.subr.bf16.mxu0 0
      %2484 = vmatpush1.bf16.msra.mxu0 0
      %2485 = vmatprep.subr.bf16.mxu0 0
      %2486 = vmatpush1.bf16.msra.mxu0 %v2469
      %2487 = vmatprep.subr.bf16.mxu0 0
      %2488 = vmatpush2.bf16.msra.mxu0 0
      %2489 = vmatprep.subr.bf16.mxu0 0
      %2490 = vmatpush2.bf16.msra.mxu0 0
      %2491 = vmatprep.subr.bf16.mxu0 0
      %2492 = vmatpush2.bf16.msra.mxu0 0
      %2493 = vmatprep.subr.bf16.mxu0 0
      %2494 = vmatpush2.bf16.msra.mxu0 0
      %2495 = vmatprep.subr.bf16.mxu0 0
      %2496 = vmatpush2.bf16.msra.mxu0 0
      %2497 = vmatprep.subr.bf16.mxu0 0
      %2498 = vmatpush2.bf16.msra.mxu0 0
      %2499 = vmatprep.subr.bf16.mxu0 0
      %2500 = vmatpush2.bf16.msra.mxu0 0
      %2501 = vmatprep.subr.bf16.mxu0 0
      %2502 = vmatpush2.bf16.msra.mxu0 0
      %2503 = vmatprep.mubr.bf16.mxu0 0
      %2504 = vmatmul.mubr.bf16.gmra.mxu0 %v2463
      %v2505 = vpop.f32.mrf.mxu0
      %v2506 = vadd.f32 0.0, %v2505
      %v2507 = vpop.f32.mrf.mxu0
      %v2508 = vpop.f32.mrf.mxu0
      %v2509 = vadd.f32 0.0, %v2508
      %v2510 = vpop.f32.mrf.mxu0
      %2511 = vmatprep.mubr.bf16.mxu0 0
      %2512 = vmatmul.mubr.bf16.gmra.mxu0 %v2466
      %v2513 = vpop.f32.mrf.mxu0
      %v2514 = vadd.f32 0.0, %v2513
      %v2515 = vpop.f32.mrf.mxu0
      %v2516 = vpop.f32.mrf.mxu0
      %v2517 = vadd.f32 0.0, %v2516
      %v2518 = vpop.f32.mrf.mxu0
      %2519 = vdwg.mxu0
      %v2520 = vadd.f32 %v2457, %v2506
      %v2521 = vadd.f32 %v2458, %v2509
      %v2522 = vadd.f32 %v2459, %v2514
      %v2523 = vadd.f32 %v2460, %v2517
      %v2524 = vld [vmem:[%s4 + $0x3c] sm:$0xf]
      %v2526 = vsel %vm1587, %v1583, 0
      %v2529 = vsel %vm1587, %v1584, 0
      %v2532 = vsel %vm1594, %v2524, 0
      %2534 = vmatprep.subr.bf16.mxu0 0
      %2535 = vmatpush1.bf16.msra.mxu0 0
      %2536 = vmatprep.subr.bf16.mxu0 0
      %2537 = vmatpush1.bf16.msra.mxu0 0
      %2538 = vmatprep.subr.bf16.mxu0 0
      %2539 = vmatpush1.bf16.msra.mxu0 0
      %2540 = vmatprep.subr.bf16.mxu0 0
      %2541 = vmatpush1.bf16.msra.mxu0 0
      %2542 = vmatprep.subr.bf16.mxu0 0
      %2543 = vmatpush1.bf16.msra.mxu0 0
      %2544 = vmatprep.subr.bf16.mxu0 0
      %2545 = vmatpush1.bf16.msra.mxu0 0
      %2546 = vmatprep.subr.bf16.mxu0 0
      %2547 = vmatpush1.bf16.msra.mxu0 0
      %2548 = vmatprep.subr.bf16.mxu0 0
      %2549 = vmatpush1.bf16.msra.mxu0 %v2532
      %2550 = vmatprep.subr.bf16.mxu0 0
      %2551 = vmatpush2.bf16.msra.mxu0 0
      %2552 = vmatprep.subr.bf16.mxu0 0
      %2553 = vmatpush2.bf16.msra.mxu0 0
      %2554 = vmatprep.subr.bf16.mxu0 0
      %2555 = vmatpush2.bf16.msra.mxu0 0
      %2556 = vmatprep.subr.bf16.mxu0 0
      %2557 = vmatpush2.bf16.msra.mxu0 0
      %2558 = vmatprep.subr.bf16.mxu0 0
      %2559 = vmatpush2.bf16.msra.mxu0 0
      %2560 = vmatprep.subr.bf16.mxu0 0
      %2561 = vmatpush2.bf16.msra.mxu0 0
      %2562 = vmatprep.subr.bf16.mxu0 0
      %2563 = vmatpush2.bf16.msra.mxu0 0
      %2564 = vmatprep.subr.bf16.mxu0 0
      %2565 = vmatpush2.bf16.msra.mxu0 0
      %2566 = vmatprep.mubr.bf16.mxu0 0
      %2567 = vmatmul.mubr.bf16.gmra.mxu0 %v2526
      %v2568 = vpop.f32.mrf.mxu0
      %v2569 = vadd.f32 0.0, %v2568
      %v2570 = vpop.f32.mrf.mxu0
      %v2571 = vpop.f32.mrf.mxu0
      %v2572 = vadd.f32 0.0, %v2571
      %v2573 = vpop.f32.mrf.mxu0
      %2574 = vmatprep.mubr.bf16.mxu0 0
      %2575 = vmatmul.mubr.bf16.gmra.mxu0 %v2529
      %v2576 = vpop.f32.mrf.mxu0
      %v2577 = vadd.f32 0.0, %v2576
      %v2578 = vpop.f32.mrf.mxu0
      %v2579 = vpop.f32.mrf.mxu0
      %v2580 = vadd.f32 0.0, %v2579
      %v2581 = vpop.f32.mrf.mxu0
      %2582 = vdwg.mxu0
      %v2583 = vadd.f32 %v2520, %v2569
      %v2584 = vadd.f32 %v2521, %v2572
      %v2585 = vadd.f32 %v2522, %v2577
      %v2586 = vadd.f32 %v2523, %v2580
      %v2587 = vld [vmem:[%s5] sm:$0x1]
      %v2589 = vlaneseq
      %v2590 = vshrl.u32 %v2589, 7
      %v2591 = vsub.s32 0, %v2590
      %v2592 = vrot.slane %v2587, %v2591
      %v2594 = vadd.f32 %v2583, %v2592
      %v2595 = vadd.f32 %v2584, %v2592
      %v2596 = vadd.f32 %v2585, %v2592
      %v2597 = vadd.f32 %v2586, %v2592
      %v2598 = vmax.f32 %v2594, 0.0
      %v2599 = vmax.f32 %v2595, 0.0
      %v2600 = vmax.f32 %v2596, 0.0
      %v2601 = vmax.f32 %v2597, 0.0
      %v2602 = vpack.c.bf16 %v2599, %v2598
      %v2603 = vpack.c.bf16 %v2601, %v2600
      %v2604 = vld [vmem:[%s6] sm:$0xf]
      %v2605 = vld [vmem:[%s6 + $0x4] sm:$0xf]
      %v2606 = vld [vmem:[%s6 + $0x8] sm:$0xf]
      %v2607 = vld [vmem:[%s6 + $0xc] sm:$0xf]
      %v2608 = vld [vmem:[%s6 + $0x10] sm:$0xf]
      %v2609 = vld [vmem:[%s6 + $0x14] sm:$0xf]
      %v2610 = vld [vmem:[%s6 + $0x18] sm:$0xf]
      %v2611 = vld [vmem:[%s6 + $0x1c] sm:$0xf]
      %v2612 = vld [vmem:[%s6 + $0x20] sm:$0xf]
      %v2613 = vld [vmem:[%s6 + $0x24] sm:$0xf]
      %v2614 = vld [vmem:[%s6 + $0x28] sm:$0xf]
      %v2615 = vld [vmem:[%s6 + $0x2c] sm:$0xf]
      %v2616 = vld [vmem:[%s6 + $0x30] sm:$0xf]
      %v2617 = vld [vmem:[%s6 + $0x34] sm:$0xf]
      %v2618 = vld [vmem:[%s6 + $0x38] sm:$0xf]
      %v2619 = vld [vmem:[%s6 + $0x3c] sm:$0xf]
      %v2620 = vld [vmem:[%s6 + $0x40] sm:$0xf]
      %v2621 = vld [vmem:[%s6 + $0x44] sm:$0xf]
      %v2640 = vunpack.c.l.b16 %v2604
      %v2641 = vunpack.c.l.b16 %v2605
      %v2642 = vunpack.c.l.b16 %v2606
      %v2643 = vunpack.c.l.b16 %v2607
      %v2644 = vunpack.c.l.b16 %v2608
      %v2645 = vunpack.c.l.b16 %v2609
      %v2646 = vunpack.c.l.b16 %v2610
      %v2647 = vunpack.c.l.b16 %v2611
      %v2648 = vunpack.c.l.b16 %v2612
      %v2649 = vunpack.c.l.b16 %v2613
      %v2650 = vunpack.c.l.b16 %v2614
      %v2651 = vunpack.c.l.b16 %v2615
      %v2652 = vunpack.c.l.b16 %v2616
      %v2653 = vunpack.c.l.b16 %v2617
      %v2654 = vunpack.c.l.b16 %v2618
      %v2655 = vunpack.c.l.b16 %v2619
      %v2656 = vunpack.c.l.b16 %v2620
      %v2657 = vunpack.c.l.b16 %v2621
      %v2658 = vpack.c.b16 %v2641, %v2640
      %v2659 = vpack.c.b16 %v2643, %v2642
      %v2660 = vpack.c.b16 %v2645, %v2644
      %v2661 = vpack.c.b16 %v2647, %v2646
      %v2662 = vpack.c.b16 %v2649, %v2648
      %v2663 = vpack.c.b16 %v2651, %v2650
      %v2664 = vpack.c.b16 %v2653, %v2652
      %v2665 = vpack.c.b16 %v2655, %v2654
      %v2666 = vpack.c.b16 %v2657, %v2656
      %vm2667 = vcmask 261120
      %v2669 = vsel %vm2667, %v2658, 0
      %v2672 = vsel %vm2667, %v2659, 0
      %v2675 = vsel %vm2667, %v2660, 0
      %v2678 = vsel %vm2667, %v2661, 0
      %v2681 = vsel %vm2667, %v2662, 0
      %v2684 = vsel %vm2667, %v2663, 0
      %v2687 = vsel %vm2667, %v2664, 0
      %v2690 = vsel %vm2667, %v2665, 0
      %v2693 = vsel %vm2667, %v2666, 0
      %2695 = vmatprep.subr.bf16.mxu0 0
      %2696 = vmatpush1.bf16.msra.mxu0 0
      %2697 = vmatprep.subr.bf16.mxu0 0
      %2698 = vmatpush1.bf16.msra.mxu0 0
      %2699 = vmatprep.subr.bf16.mxu0 0
      %2700 = vmatpush1.bf16.msra.mxu0 0
      %2701 = vmatprep.subr.bf16.mxu0 0
      %2702 = vmatpush1.bf16.msra.mxu0 0
      %2703 = vmatprep.subr.bf16.mxu0 0
      %2704 = vmatpush1.bf16.msra.mxu0 0
      %2705 = vmatprep.subr.bf16.mxu0 0
      %2706 = vmatpush1.bf16.msra.mxu0 0
      %2707 = vmatprep.subr.bf16.mxu0 0
      %2708 = vmatpush1.bf16.msra.mxu0 %v2603
      %2709 = vmatprep.subr.bf16.mxu0 0
      %2710 = vmatpush1.bf16.msra.mxu0 %v2602
      %2711 = vmatprep.subr.bf16.mxu0 0
      %2712 = vmatpush2.bf16.msra.mxu0 0
      %2713 = vmatprep.subr.bf16.mxu0 0
      %2714 = vmatpush2.bf16.msra.mxu0 0
      %2715 = vmatprep.subr.bf16.mxu0 0
      %2716 = vmatpush2.bf16.msra.mxu0 0
      %2717 = vmatprep.subr.bf16.mxu0 0
      %2718 = vmatpush2.bf16.msra.mxu0 0
      %2719 = vmatprep.subr.bf16.mxu0 0
      %2720 = vmatpush2.bf16.msra.mxu0 0
      %2721 = vmatprep.subr.bf16.mxu0 0
      %2722 = vmatpush2.bf16.msra.mxu0 0
      %2723 = vmatprep.subr.bf16.mxu0 0
      %2724 = vmatpush2.bf16.msra.mxu0 0
      %2725 = vmatprep.subr.bf16.mxu0 0
      %2726 = vmatpush2.bf16.msra.mxu0 0
      %2727 = vmatprep.mubr.bf16.mxu0 0
      %2728 = vmatmul.mubr.bf16.gmra.mxu0 %v2669
      %v2729 = vpop.f32.mrf.mxu0
      %v2730 = vadd.f32 0.0, %v2729
      %v2731 = vpop.f32.mrf.mxu0
      %v2732 = vpop.f32.mrf.mxu0
      %v2733 = vadd.f32 0.0, %v2732
      %v2734 = vpop.f32.mrf.mxu0
      %2735 = vmatprep.mubr.bf16.mxu0 0
      %2736 = vmatmul.mubr.bf16.gmra.mxu0 %v2672
      %v2737 = vpop.f32.mrf.mxu0
      %v2738 = vadd.f32 0.0, %v2737
      %v2739 = vpop.f32.mrf.mxu0
      %v2740 = vpop.f32.mrf.mxu0
      %v2741 = vadd.f32 0.0, %v2740
      %v2742 = vpop.f32.mrf.mxu0
      %2743 = vmatprep.mubr.bf16.mxu0 0
      %2744 = vmatmul.mubr.bf16.gmra.mxu0 %v2675
      %v2745 = vpop.f32.mrf.mxu0
      %v2746 = vadd.f32 0.0, %v2745
      %v2747 = vpop.f32.mrf.mxu0
      %v2748 = vpop.f32.mrf.mxu0
      %v2749 = vadd.f32 0.0, %v2748
      %v2750 = vpop.f32.mrf.mxu0
      %2751 = vmatprep.mubr.bf16.mxu0 0
      %2752 = vmatmul.mubr.bf16.gmra.mxu0 %v2678
      %v2753 = vpop.f32.mrf.mxu0
      %v2754 = vadd.f32 0.0, %v2753
      %v2755 = vpop.f32.mrf.mxu0
      %v2756 = vpop.f32.mrf.mxu0
      %v2757 = vadd.f32 0.0, %v2756
      %v2758 = vpop.f32.mrf.mxu0
      %2759 = vmatprep.mubr.bf16.mxu0 0
      %2760 = vmatmul.mubr.bf16.gmra.mxu0 %v2681
      %v2761 = vpop.f32.mrf.mxu0
      %v2762 = vadd.f32 0.0, %v2761
      %v2763 = vpop.f32.mrf.mxu0
      %v2764 = vpop.f32.mrf.mxu0
      %v2765 = vadd.f32 0.0, %v2764
      %v2766 = vpop.f32.mrf.mxu0
      %2767 = vmatprep.mubr.bf16.mxu0 0
      %2768 = vmatmul.mubr.bf16.gmra.mxu0 %v2684
      %v2769 = vpop.f32.mrf.mxu0
      %v2770 = vadd.f32 0.0, %v2769
      %v2771 = vpop.f32.mrf.mxu0
      %v2772 = vpop.f32.mrf.mxu0
      %v2773 = vadd.f32 0.0, %v2772
      %v2774 = vpop.f32.mrf.mxu0
      %2775 = vmatprep.mubr.bf16.mxu0 0
      %2776 = vmatmul.mubr.bf16.gmra.mxu0 %v2687
      %v2777 = vpop.f32.mrf.mxu0
      %v2778 = vadd.f32 0.0, %v2777
      %v2779 = vpop.f32.mrf.mxu0
      %v2780 = vpop.f32.mrf.mxu0
      %v2781 = vadd.f32 0.0, %v2780
      %v2782 = vpop.f32.mrf.mxu0
      %2783 = vmatprep.mubr.bf16.mxu0 0
      %2784 = vmatmul.mubr.bf16.gmra.mxu0 %v2690
      %v2785 = vpop.f32.mrf.mxu0
      %v2786 = vadd.f32 0.0, %v2785
      %v2787 = vpop.f32.mrf.mxu0
      %v2788 = vpop.f32.mrf.mxu0
      %v2789 = vadd.f32 0.0, %v2788
      %v2790 = vpop.f32.mrf.mxu0
      %2791 = vmatprep.mubr.bf16.mxu0 0
      %2792 = vmatmul.mubr.bf16.gmra.mxu0 %v2693
      %v2793 = vpop.f32.mrf.mxu0
      %v2794 = vadd.f32 0.0, %v2793
      %v2795 = vpop.f32.mrf.mxu0
      %v2796 = vpop.f32.mrf.mxu0
      %v2797 = vadd.f32 0.0, %v2796
      %v2798 = vpop.f32.mrf.mxu0
      %2799 = vdwg.mxu0
      %v2800 = vpack.c.bf16 %v2733, %v2730
      %v2801 = vpack.c.bf16 %v2741, %v2738
      %v2802 = vpack.c.bf16 %v2749, %v2746
      %v2803 = vpack.c.bf16 %v2757, %v2754
      %v2804 = vpack.c.bf16 %v2765, %v2762
      %v2805 = vpack.c.bf16 %v2773, %v2770
      %v2806 = vpack.c.bf16 %v2781, %v2778
      %v2807 = vpack.c.bf16 %v2789, %v2786
      %v2808 = vpack.c.bf16 %v2797, %v2794
      %v2809 = vld [vmem:[%s7] sm:$0xf]
      %v2810 = vld [vmem:[%s7 + $0x4] sm:$0xf]
      %v2811 = vld [vmem:[%s7 + $0x8] sm:$0xf]
      %v2812 = vld [vmem:[%s7 + $0xc] sm:$0xf]
      %v2815 = vunpack.c.l.b16 %v2811
      %v2816 = vunpack.c.l.b16 %v2812
      %v2817 = vpack.c.b16 %v2816, %v2815
      %v2820 = vsel %vm1167, %v2801, 0
      %2822 = vmatprep.subr.bf16.mxu0 0
      %2823 = vmatpush1.bf16.msra.mxu0 0
      %2824 = vmatprep.subr.bf16.mxu0 0
      %2825 = vmatpush1.bf16.msra.mxu0 0
      %2826 = vmatprep.subr.bf16.mxu0 0
      %2827 = vmatpush1.bf16.msra.mxu0 0
      %2828 = vmatprep.subr.bf16.mxu0 0
      %2829 = vmatpush1.bf16.msra.mxu0 0
      %2830 = vmatprep.subr.bf16.mxu0 0
      %2831 = vmatpush1.bf16.msra.mxu0 0
      %2832 = vmatprep.subr.bf16.mxu0 0
      %2833 = vmatpush1.bf16.msra.mxu0 0
      %2834 = vmatprep.subr.bf16.mxu0 0
      %2835 = vmatpush1.bf16.msra.mxu0 0
      %2836 = vmatprep.subr.bf16.mxu0 0
      %2837 = vmatpush1.bf16.msra.mxu0 %v2817
      %2838 = vmatprep.subr.bf16.mxu0 0
      %2839 = vmatpush2.bf16.msra.mxu0 0
      %2840 = vmatprep.subr.bf16.mxu0 0
      %2841 = vmatpush2.bf16.msra.mxu0 0
      %2842 = vmatprep.subr.bf16.mxu0 0
      %2843 = vmatpush2.bf16.msra.mxu0 0
      %2844 = vmatprep.subr.bf16.mxu0 0
      %2845 = vmatpush2.bf16.msra.mxu0 0
      %2846 = vmatprep.subr.bf16.mxu0 0
      %2847 = vmatpush2.bf16.msra.mxu0 0
      %2848 = vmatprep.subr.bf16.mxu0 0
      %2849 = vmatpush2.bf16.msra.mxu0 0
      %2850 = vmatprep.subr.bf16.mxu0 0
      %2851 = vmatpush2.bf16.msra.mxu0 0
      %2852 = vmatprep.subr.bf16.mxu0 0
      %2853 = vmatpush2.bf16.msra.mxu0 0
      %2854 = vmatprep.mubr.bf16.mxu0 0
      %2855 = vmatmul.mubr.bf16.gmra.mxu0 %v2820
      %v2856 = vpop.f32.mrf.mxu0
      %v2857 = vadd.f32 0.0, %v2856
      %v2858 = vpop.f32.mrf.mxu0
      %v2859 = vpop.f32.mrf.mxu0
      %v2860 = vadd.f32 0.0, %v2859
      %v2861 = vpop.f32.mrf.mxu0
      %2862 = vdwg.mxu0
      %v2865 = vunpack.c.l.b16 %v2809
      %v2866 = vunpack.c.l.b16 %v2810
      %v2867 = vpack.c.b16 %v2866, %v2865
      %v2870 = vsel %vm1167, %v2800, 0
      %2872 = vmatprep.subr.bf16.mxu0 0
      %2873 = vmatpush1.bf16.msra.mxu0 0
      %2874 = vmatprep.subr.bf16.mxu0 0
      %2875 = vmatpush1.bf16.msra.mxu0 0
      %2876 = vmatprep.subr.bf16.mxu0 0
      %2877 = vmatpush1.bf16.msra.mxu0 0
      %2878 = vmatprep.subr.bf16.mxu0 0
      %2879 = vmatpush1.bf16.msra.mxu0 0
      %2880 = vmatprep.subr.bf16.mxu0 0
      %2881 = vmatpush1.bf16.msra.mxu0 0
      %2882 = vmatprep.subr.bf16.mxu0 0
      %2883 = vmatpush1.bf16.msra.mxu0 0
      %2884 = vmatprep.subr.bf16.mxu0 0
      %2885 = vmatpush1.bf16.msra.mxu0 0
      %2886 = vmatprep.subr.bf16.mxu0 0
      %2887 = vmatpush1.bf16.msra.mxu0 %v2867
      %2888 = vmatprep.subr.bf16.mxu0 0
      %2889 = vmatpush2.bf16.msra.mxu0 0
      %2890 = vmatprep.subr.bf16.mxu0 0
      %2891 = vmatpush2.bf16.msra.mxu0 0
      %2892 = vmatprep.subr.bf16.mxu0 0
      %2893 = vmatpush2.bf16.msra.mxu0 0
      %2894 = vmatprep.subr.bf16.mxu0 0
      %2895 = vmatpush2.bf16.msra.mxu0 0
      %2896 = vmatprep.subr.bf16.mxu0 0
      %2897 = vmatpush2.bf16.msra.mxu0 0
      %2898 = vmatprep.subr.bf16.mxu0 0
      %2899 = vmatpush2.bf16.msra.mxu0 0
      %2900 = vmatprep.subr.bf16.mxu0 0
      %2901 = vmatpush2.bf16.msra.mxu0 0
      %2902 = vmatprep.subr.bf16.mxu0 0
      %2903 = vmatpush2.bf16.msra.mxu0 0
      %2904 = vmatprep.mubr.bf16.mxu0 0
      %2905 = vmatmul.mubr.bf16.gmra.mxu0 %v2870
      %v2906 = vpop.f32.mrf.mxu0
      %v2907 = vadd.f32 %v2857, %v2906
      %v2908 = vpop.f32.mrf.mxu0
      %v2909 = vpop.f32.mrf.mxu0
      %v2910 = vadd.f32 %v2860, %v2909
      %v2911 = vpop.f32.mrf.mxu0
      %2912 = vdwg.mxu0
      %v2913 = vld [vmem:[%s7 + $0x10] sm:$0xf]
      %v2914 = vld [vmem:[%s7 + $0x14] sm:$0xf]
      %v2917 = vunpack.c.l.b16 %v2913
      %v2918 = vunpack.c.l.b16 %v2914
      %v2919 = vpack.c.b16 %v2918, %v2917
      %v2922 = vsel %vm1167, %v2802, 0
      %2924 = vmatprep.subr.bf16.mxu0 0
      %2925 = vmatpush1.bf16.msra.mxu0 0
      %2926 = vmatprep.subr.bf16.mxu0 0
      %2927 = vmatpush1.bf16.msra.mxu0 0
      %2928 = vmatprep.subr.bf16.mxu0 0
      %2929 = vmatpush1.bf16.msra.mxu0 0
      %2930 = vmatprep.subr.bf16.mxu0 0
      %2931 = vmatpush1.bf16.msra.mxu0 0
      %2932 = vmatprep.subr.bf16.mxu0 0
      %2933 = vmatpush1.bf16.msra.mxu0 0
      %2934 = vmatprep.subr.bf16.mxu0 0
      %2935 = vmatpush1.bf16.msra.mxu0 0
      %2936 = vmatprep.subr.bf16.mxu0 0
      %2937 = vmatpush1.bf16.msra.mxu0 0
      %2938 = vmatprep.subr.bf16.mxu0 0
      %2939 = vmatpush1.bf16.msra.mxu0 %v2919
      %2940 = vmatprep.subr.bf16.mxu0 0
      %2941 = vmatpush2.bf16.msra.mxu0 0
      %2942 = vmatprep.subr.bf16.mxu0 0
      %2943 = vmatpush2.bf16.msra.mxu0 0
      %2944 = vmatprep.subr.bf16.mxu0 0
      %2945 = vmatpush2.bf16.msra.mxu0 0
      %2946 = vmatprep.subr.bf16.mxu0 0
      %2947 = vmatpush2.bf16.msra.mxu0 0
      %2948 = vmatprep.subr.bf16.mxu0 0
      %2949 = vmatpush2.bf16.msra.mxu0 0
      %2950 = vmatprep.subr.bf16.mxu0 0
      %2951 = vmatpush2.bf16.msra.mxu0 0
      %2952 = vmatprep.subr.bf16.mxu0 0
      %2953 = vmatpush2.bf16.msra.mxu0 0
      %2954 = vmatprep.subr.bf16.mxu0 0
      %2955 = vmatpush2.bf16.msra.mxu0 0
      %2956 = vmatprep.mubr.bf16.mxu0 0
      %2957 = vmatmul.mubr.bf16.gmra.mxu0 %v2922
      %v2958 = vpop.f32.mrf.mxu0
      %v2959 = vadd.f32 0.0, %v2958
      %v2960 = vpop.f32.mrf.mxu0
      %v2961 = vpop.f32.mrf.mxu0
      %v2962 = vadd.f32 0.0, %v2961
      %v2963 = vpop.f32.mrf.mxu0
      %2964 = vdwg.mxu0
      %v2965 = vadd.f32 %v2907, %v2959
      %v2966 = vadd.f32 %v2910, %v2962
      %v2967 = vld [vmem:[%s7 + $0x18] sm:$0xf]
      %v2968 = vld [vmem:[%s7 + $0x1c] sm:$0xf]
      %v2971 = vunpack.c.l.b16 %v2967
      %v2972 = vunpack.c.l.b16 %v2968
      %v2973 = vpack.c.b16 %v2972, %v2971
      %v2976 = vsel %vm1167, %v2803, 0
      %2978 = vmatprep.subr.bf16.mxu0 0
      %2979 = vmatpush1.bf16.msra.mxu0 0
      %2980 = vmatprep.subr.bf16.mxu0 0
      %2981 = vmatpush1.bf16.msra.mxu0 0
      %2982 = vmatprep.subr.bf16.mxu0 0
      %2983 = vmatpush1.bf16.msra.mxu0 0
      %2984 = vmatprep.subr.bf16.mxu0 0
      %2985 = vmatpush1.bf16.msra.mxu0 0
      %2986 = vmatprep.subr.bf16.mxu0 0
      %2987 = vmatpush1.bf16.msra.mxu0 0
      %2988 = vmatprep.subr.bf16.mxu0 0
      %2989 = vmatpush1.bf16.msra.mxu0 0
      %2990 = vmatprep.subr.bf16.mxu0 0
      %2991 = vmatpush1.bf16.msra.mxu0 0
      %2992 = vmatprep.subr.bf16.mxu0 0
      %2993 = vmatpush1.bf16.msra.mxu0 %v2973
      %2994 = vmatprep.subr.bf16.mxu0 0
      %2995 = vmatpush2.bf16.msra.mxu0 0
      %2996 = vmatprep.subr.bf16.mxu0 0
      %2997 = vmatpush2.bf16.msra.mxu0 0
      %2998 = vmatprep.subr.bf16.mxu0 0
      %2999 = vmatpush2.bf16.msra.mxu0 0
      %3000 = vmatprep.subr.bf16.mxu0 0
      %3001 = vmatpush2.bf16.msra.mxu0 0
      %3002 = vmatprep.subr.bf16.mxu0 0
      %3003 = vmatpush2.bf16.msra.mxu0 0
      %3004 = vmatprep.subr.bf16.mxu0 0
      %3005 = vmatpush2.bf16.msra.mxu0 0
      %3006 = vmatprep.subr.bf16.mxu0 0
      %3007 = vmatpush2.bf16.msra.mxu0 0
      %3008 = vmatprep.subr.bf16.mxu0 0
      %3009 = vmatpush2.bf16.msra.mxu0 0
      %3010 = vmatprep.mubr.bf16.mxu0 0
      %3011 = vmatmul.mubr.bf16.gmra.mxu0 %v2976
      %v3012 = vpop.f32.mrf.mxu0
      %v3013 = vadd.f32 0.0, %v3012
      %v3014 = vpop.f32.mrf.mxu0
      %v3015 = vpop.f32.mrf.mxu0
      %v3016 = vadd.f32 0.0, %v3015
      %v3017 = vpop.f32.mrf.mxu0
      %3018 = vdwg.mxu0
      %v3019 = vadd.f32 %v2965, %v3013
      %v3020 = vadd.f32 %v2966, %v3016
      %v3021 = vld [vmem:[%s7 + $0x20] sm:$0xf]
      %v3022 = vld [vmem:[%s7 + $0x24] sm:$0xf]
      %v3025 = vunpack.c.l.b16 %v3021
      %v3026 = vunpack.c.l.b16 %v3022
      %v3027 = vpack.c.b16 %v3026, %v3025
      %v3030 = vsel %vm1167, %v2804, 0
      %3032 = vmatprep.subr.bf16.mxu0 0
      %3033 = vmatpush1.bf16.msra.mxu0 0
      %3034 = vmatprep.subr.bf16.mxu0 0
      %3035 = vmatpush1.bf16.msra.mxu0 0
      %3036 = vmatprep.subr.bf16.mxu0 0
      %3037 = vmatpush1.bf16.msra.mxu0 0
      %3038 = vmatprep.subr.bf16.mxu0 0
      %3039 = vmatpush1.bf16.msra.mxu0 0
      %3040 = vmatprep.subr.bf16.mxu0 0
      %3041 = vmatpush1.bf16.msra.mxu0 0
      %3042 = vmatprep.subr.bf16.mxu0 0
      %3043 = vmatpush1.bf16.msra.mxu0 0
      %3044 = vmatprep.subr.bf16.mxu0 0
      %3045 = vmatpush1.bf16.msra.mxu0 0
      %3046 = vmatprep.subr.bf16.mxu0 0
      %3047 = vmatpush1.bf16.msra.mxu0 %v3027
      %3048 = vmatprep.subr.bf16.mxu0 0
      %3049 = vmatpush2.bf16.msra.mxu0 0
      %3050 = vmatprep.subr.bf16.mxu0 0
      %3051 = vmatpush2.bf16.msra.mxu0 0
      %3052 = vmatprep.subr.bf16.mxu0 0
      %3053 = vmatpush2.bf16.msra.mxu0 0
      %3054 = vmatprep.subr.bf16.mxu0 0
      %3055 = vmatpush2.bf16.msra.mxu0 0
      %3056 = vmatprep.subr.bf16.mxu0 0
      %3057 = vmatpush2.bf16.msra.mxu0 0
      %3058 = vmatprep.subr.bf16.mxu0 0
      %3059 = vmatpush2.bf16.msra.mxu0 0
      %3060 = vmatprep.subr.bf16.mxu0 0
      %3061 = vmatpush2.bf16.msra.mxu0 0
      %3062 = vmatprep.subr.bf16.mxu0 0
      %3063 = vmatpush2.bf16.msra.mxu0 0
      %3064 = vmatprep.mubr.bf16.mxu0 0
      %3065 = vmatmul.mubr.bf16.gmra.mxu0 %v3030
      %v3066 = vpop.f32.mrf.mxu0
      %v3067 = vadd.f32 0.0, %v3066
      %v3068 = vpop.f32.mrf.mxu0
      %v3069 = vpop.f32.mrf.mxu0
      %v3070 = vadd.f32 0.0, %v3069
      %v3071 = vpop.f32.mrf.mxu0
      %3072 = vdwg.mxu0
      %v3073 = vadd.f32 %v3019, %v3067
      %v3074 = vadd.f32 %v3020, %v3070
      %v3075 = vld [vmem:[%s7 + $0x28] sm:$0xf]
      %v3076 = vld [vmem:[%s7 + $0x2c] sm:$0xf]
      %v3079 = vunpack.c.l.b16 %v3075
      %v3080 = vunpack.c.l.b16 %v3076
      %v3081 = vpack.c.b16 %v3080, %v3079
      %v3084 = vsel %vm1167, %v2805, 0
      %3086 = vmatprep.subr.bf16.mxu0 0
      %3087 = vmatpush1.bf16.msra.mxu0 0
      %3088 = vmatprep.subr.bf16.mxu0 0
      %3089 = vmatpush1.bf16.msra.mxu0 0
      %3090 = vmatprep.subr.bf16.mxu0 0
      %3091 = vmatpush1.bf16.msra.mxu0 0
      %3092 = vmatprep.subr.bf16.mxu0 0
      %3093 = vmatpush1.bf16.msra.mxu0 0
      %3094 = vmatprep.subr.bf16.mxu0 0
      %3095 = vmatpush1.bf16.msra.mxu0 0
      %3096 = vmatprep.subr.bf16.mxu0 0
      %3097 = vmatpush1.bf16.msra.mxu0 0
      %3098 = vmatprep.subr.bf16.mxu0 0
      %3099 = vmatpush1.bf16.msra.mxu0 0
      %3100 = vmatprep.subr.bf16.mxu0 0
      %3101 = vmatpush1.bf16.msra.mxu0 %v3081
      %3102 = vmatprep.subr.bf16.mxu0 0
      %3103 = vmatpush2.bf16.msra.mxu0 0
      %3104 = vmatprep.subr.bf16.mxu0 0
      %3105 = vmatpush2.bf16.msra.mxu0 0
      %3106 = vmatprep.subr.bf16.mxu0 0
      %3107 = vmatpush2.bf16.msra.mxu0 0
      %3108 = vmatprep.subr.bf16.mxu0 0
      %3109 = vmatpush2.bf16.msra.mxu0 0
      %3110 = vmatprep.subr.bf16.mxu0 0
      %3111 = vmatpush2.bf16.msra.mxu0 0
      %3112 = vmatprep.subr.bf16.mxu0 0
      %3113 = vmatpush2.bf16.msra.mxu0 0
      %3114 = vmatprep.subr.bf16.mxu0 0
      %3115 = vmatpush2.bf16.msra.mxu0 0
      %3116 = vmatprep.subr.bf16.mxu0 0
      %3117 = vmatpush2.bf16.msra.mxu0 0
      %3118 = vmatprep.mubr.bf16.mxu0 0
      %3119 = vmatmul.mubr.bf16.gmra.mxu0 %v3084
      %v3120 = vpop.f32.mrf.mxu0
      %v3121 = vadd.f32 0.0, %v3120
      %v3122 = vpop.f32.mrf.mxu0
      %v3123 = vpop.f32.mrf.mxu0
      %v3124 = vadd.f32 0.0, %v3123
      %v3125 = vpop.f32.mrf.mxu0
      %3126 = vdwg.mxu0
      %v3127 = vadd.f32 %v3073, %v3121
      %v3128 = vadd.f32 %v3074, %v3124
      %v3129 = vld [vmem:[%s7 + $0x30] sm:$0xf]
      %v3130 = vld [vmem:[%s7 + $0x34] sm:$0xf]
      %v3133 = vunpack.c.l.b16 %v3129
      %v3134 = vunpack.c.l.b16 %v3130
      %v3135 = vpack.c.b16 %v3134, %v3133
      %v3138 = vsel %vm1167, %v2806, 0
      %3140 = vmatprep.subr.bf16.mxu0 0
      %3141 = vmatpush1.bf16.msra.mxu0 0
      %3142 = vmatprep.subr.bf16.mxu0 0
      %3143 = vmatpush1.bf16.msra.mxu0 0
      %3144 = vmatprep.subr.bf16.mxu0 0
      %3145 = vmatpush1.bf16.msra.mxu0 0
      %3146 = vmatprep.subr.bf16.mxu0 0
      %3147 = vmatpush1.bf16.msra.mxu0 0
      %3148 = vmatprep.subr.bf16.mxu0 0
      %3149 = vmatpush1.bf16.msra.mxu0 0
      %3150 = vmatprep.subr.bf16.mxu0 0
      %3151 = vmatpush1.bf16.msra.mxu0 0
      %3152 = vmatprep.subr.bf16.mxu0 0
      %3153 = vmatpush1.bf16.msra.mxu0 0
      %3154 = vmatprep.subr.bf16.mxu0 0
      %3155 = vmatpush1.bf16.msra.mxu0 %v3135
      %3156 = vmatprep.subr.bf16.mxu0 0
      %3157 = vmatpush2.bf16.msra.mxu0 0
      %3158 = vmatprep.subr.bf16.mxu0 0
      %3159 = vmatpush2.bf16.msra.mxu0 0
      %3160 = vmatprep.subr.bf16.mxu0 0
      %3161 = vmatpush2.bf16.msra.mxu0 0
      %3162 = vmatprep.subr.bf16.mxu0 0
      %3163 = vmatpush2.bf16.msra.mxu0 0
      %3164 = vmatprep.subr.bf16.mxu0 0
      %3165 = vmatpush2.bf16.msra.mxu0 0
      %3166 = vmatprep.subr.bf16.mxu0 0
      %3167 = vmatpush2.bf16.msra.mxu0 0
      %3168 = vmatprep.subr.bf16.mxu0 0
      %3169 = vmatpush2.bf16.msra.mxu0 0
      %3170 = vmatprep.subr.bf16.mxu0 0
      %3171 = vmatpush2.bf16.msra.mxu0 0
      %3172 = vmatprep.mubr.bf16.mxu0 0
      %3173 = vmatmul.mubr.bf16.gmra.mxu0 %v3138
      %v3174 = vpop.f32.mrf.mxu0
      %v3175 = vadd.f32 0.0, %v3174
      %v3176 = vpop.f32.mrf.mxu0
      %v3177 = vpop.f32.mrf.mxu0
      %v3178 = vadd.f32 0.0, %v3177
      %v3179 = vpop.f32.mrf.mxu0
      %3180 = vdwg.mxu0
      %v3181 = vadd.f32 %v3127, %v3175
      %v3182 = vadd.f32 %v3128, %v3178
      %v3183 = vld [vmem:[%s7 + $0x38] sm:$0xf]
      %v3184 = vld [vmem:[%s7 + $0x3c] sm:$0xf]
      %v3187 = vunpack.c.l.b16 %v3183
      %v3188 = vunpack.c.l.b16 %v3184
      %v3189 = vpack.c.b16 %v3188, %v3187
      %v3192 = vsel %vm1167, %v2807, 0
      %3194 = vmatprep.subr.bf16.mxu0 0
      %3195 = vmatpush1.bf16.msra.mxu0 0
      %3196 = vmatprep.subr.bf16.mxu0 0
      %3197 = vmatpush1.bf16.msra.mxu0 0
      %3198 = vmatprep.subr.bf16.mxu0 0
      %3199 = vmatpush1.bf16.msra.mxu0 0
      %3200 = vmatprep.subr.bf16.mxu0 0
      %3201 = vmatpush1.bf16.msra.mxu0 0
      %3202 = vmatprep.subr.bf16.mxu0 0
      %3203 = vmatpush1.bf16.msra.mxu0 0
      %3204 = vmatprep.subr.bf16.mxu0 0
      %3205 = vmatpush1.bf16.msra.mxu0 0
      %3206 = vmatprep.subr.bf16.mxu0 0
      %3207 = vmatpush1.bf16.msra.mxu0 0
      %3208 = vmatprep.subr.bf16.mxu0 0
      %3209 = vmatpush1.bf16.msra.mxu0 %v3189
      %3210 = vmatprep.subr.bf16.mxu0 0
      %3211 = vmatpush2.bf16.msra.mxu0 0
      %3212 = vmatprep.subr.bf16.mxu0 0
      %3213 = vmatpush2.bf16.msra.mxu0 0
      %3214 = vmatprep.subr.bf16.mxu0 0
      %3215 = vmatpush2.bf16.msra.mxu0 0
      %3216 = vmatprep.subr.bf16.mxu0 0
      %3217 = vmatpush2.bf16.msra.mxu0 0
      %3218 = vmatprep.subr.bf16.mxu0 0
      %3219 = vmatpush2.bf16.msra.mxu0 0
      %3220 = vmatprep.subr.bf16.mxu0 0
      %3221 = vmatpush2.bf16.msra.mxu0 0
      %3222 = vmatprep.subr.bf16.mxu0 0
      %3223 = vmatpush2.bf16.msra.mxu0 0
      %3224 = vmatprep.subr.bf16.mxu0 0
      %3225 = vmatpush2.bf16.msra.mxu0 0
      %3226 = vmatprep.mubr.bf16.mxu0 0
      %3227 = vmatmul.mubr.bf16.gmra.mxu0 %v3192
      %v3228 = vpop.f32.mrf.mxu0
      %v3229 = vadd.f32 0.0, %v3228
      %v3230 = vpop.f32.mrf.mxu0
      %v3231 = vpop.f32.mrf.mxu0
      %v3232 = vadd.f32 0.0, %v3231
      %v3233 = vpop.f32.mrf.mxu0
      %3234 = vdwg.mxu0
      %v3235 = vadd.f32 %v3181, %v3229
      %v3236 = vadd.f32 %v3182, %v3232
      %v3237 = vld [vmem:[%s7 + $0x40] sm:$0xf]
      %v3238 = vld [vmem:[%s7 + $0x44] sm:$0xf]
      %v3241 = vunpack.c.l.b16 %v3237
      %v3242 = vunpack.c.l.b16 %v3238
      %v3243 = vpack.c.b16 %v3242, %v3241
      %v3246 = vsel %vm1167, %v2808, 0
      %3248 = vmatprep.subr.bf16.mxu0 0
      %3249 = vmatpush1.bf16.msra.mxu0 0
      %3250 = vmatprep.subr.bf16.mxu0 0
      %3251 = vmatpush1.bf16.msra.mxu0 0
      %3252 = vmatprep.subr.bf16.mxu0 0
      %3253 = vmatpush1.bf16.msra.mxu0 0
      %3254 = vmatprep.subr.bf16.mxu0 0
      %3255 = vmatpush1.bf16.msra.mxu0 0
      %3256 = vmatprep.subr.bf16.mxu0 0
      %3257 = vmatpush1.bf16.msra.mxu0 0
      %3258 = vmatprep.subr.bf16.mxu0 0
      %3259 = vmatpush1.bf16.msra.mxu0 0
      %3260 = vmatprep.subr.bf16.mxu0 0
      %3261 = vmatpush1.bf16.msra.mxu0 0
      %3262 = vmatprep.subr.bf16.mxu0 0
      %3263 = vmatpush1.bf16.msra.mxu0 %v3243
      %3264 = vmatprep.subr.bf16.mxu0 0
      %3265 = vmatpush2.bf16.msra.mxu0 0
      %3266 = vmatprep.subr.bf16.mxu0 0
      %3267 = vmatpush2.bf16.msra.mxu0 0
      %3268 = vmatprep.subr.bf16.mxu0 0
      %3269 = vmatpush2.bf16.msra.mxu0 0
      %3270 = vmatprep.subr.bf16.mxu0 0
      %3271 = vmatpush2.bf16.msra.mxu0 0
      %3272 = vmatprep.subr.bf16.mxu0 0
      %3273 = vmatpush2.bf16.msra.mxu0 0
      %3274 = vmatprep.subr.bf16.mxu0 0
      %3275 = vmatpush2.bf16.msra.mxu0 0
      %3276 = vmatprep.subr.bf16.mxu0 0
      %3277 = vmatpush2.bf16.msra.mxu0 0
      %3278 = vmatprep.subr.bf16.mxu0 0
      %3279 = vmatpush2.bf16.msra.mxu0 0
      %3280 = vmatprep.mubr.bf16.mxu0 0
      %3281 = vmatmul.mubr.bf16.gmra.mxu0 %v3246
      %v3282 = vpop.f32.mrf.mxu0
      %v3283 = vadd.f32 0.0, %v3282
      %v3284 = vpop.f32.mrf.mxu0
      %v3285 = vpop.f32.mrf.mxu0
      %v3286 = vadd.f32 0.0, %v3285
      %v3287 = vpop.f32.mrf.mxu0
      %3288 = vdwg.mxu0
      %v3289 = vadd.f32 %v3235, %v3283
      %v3290 = vadd.f32 %v3236, %v3286
      %v3291 = vld [vmem:[%s8] sm:$0x1]
      %v3293 = vlaneseq
      %v3294 = vshrl.u32 %v3293, 7
      %v3295 = vsub.s32 0, %v3294
      %v3296 = vrot.slane %v3291, %v3295
      %v3298 = vadd.f32 %v3289, %v3296
      %v3299 = vadd.f32 %v3290, %v3296
      %v3300 = vmax.f32 %v3298, 0.0
      %v3301 = vmax.f32 %v3299, 0.0
      %v3302 = vpack.c.bf16 %v3301, %v3300
      %v3303 = vld [vmem:[%s9] sm:$0xf]
      %v3304 = vld [vmem:[%s9 + $0x4] sm:$0xf]
      %v3305 = vld [vmem:[%s9 + $0x8] sm:$0xf]
      %v3306 = vld [vmem:[%s9 + $0xc] sm:$0xf]
      %v3308 = vshrl.u32 %v3302, 16
      %v3312 = vunpack.c.l.b16 %v3305
      %v3313 = vunpack.c.l.b16 %v3306
      %v3314 = vpack.c.b16 %v3313, %v3312
      %v3317 = vsel %vm1167, %v3308, 0
      %3319 = vmatprep.subr.bf16.mxu0 0
      %3320 = vmatpush1.bf16.msra.mxu0 0
      %3321 = vmatprep.subr.bf16.mxu0 0
      %3322 = vmatpush1.bf16.msra.mxu0 0
      %3323 = vmatprep.subr.bf16.mxu0 0
      %3324 = vmatpush1.bf16.msra.mxu0 0
      %3325 = vmatprep.subr.bf16.mxu0 0
      %3326 = vmatpush1.bf16.msra.mxu0 0
      %3327 = vmatprep.subr.bf16.mxu0 0
      %3328 = vmatpush1.bf16.msra.mxu0 0
      %3329 = vmatprep.subr.bf16.mxu0 0
      %3330 = vmatpush1.bf16.msra.mxu0 0
      %3331 = vmatprep.subr.bf16.mxu0 0
      %3332 = vmatpush1.bf16.msra.mxu0 0
      %3333 = vmatprep.subr.bf16.mxu0 0
      %3334 = vmatpush1.bf16.msra.mxu0 %v3314
      %3335 = vmatprep.subr.bf16.mxu0 0
      %3336 = vmatpush2.bf16.msra.mxu0 0
      %3337 = vmatprep.subr.bf16.mxu0 0
      %3338 = vmatpush2.bf16.msra.mxu0 0
      %3339 = vmatprep.subr.bf16.mxu0 0
      %3340 = vmatpush2.bf16.msra.mxu0 0
      %3341 = vmatprep.subr.bf16.mxu0 0
      %3342 = vmatpush2.bf16.msra.mxu0 0
      %3343 = vmatprep.subr.bf16.mxu0 0
      %3344 = vmatpush2.bf16.msra.mxu0 0
      %3345 = vmatprep.subr.bf16.mxu0 0
      %3346 = vmatpush2.bf16.msra.mxu0 0
      %3347 = vmatprep.subr.bf16.mxu0 0
      %3348 = vmatpush2.bf16.msra.mxu0 0
      %3349 = vmatprep.subr.bf16.mxu0 0
      %3350 = vmatpush2.bf16.msra.mxu0 0
      %3351 = vmatprep.mubr.bf16.mxu0 0
      %3352 = vmatmul.mubr.bf16.gmra.mxu0 %v3317
      %v3353 = vpop.f32.mrf.mxu0
      %v3354 = vadd.f32 0.0, %v3353
      %v3355 = vpop.f32.mrf.mxu0
      %v3356 = vpop.f32.mrf.mxu0
      %v3357 = vpop.f32.mrf.mxu0
      %3358 = vdwg.mxu0
      %v3361 = vunpack.c.l.b16 %v3303
      %v3362 = vunpack.c.l.b16 %v3304
      %v3363 = vpack.c.b16 %v3362, %v3361
      %v3365 = vsel %vm1167, %v3302, 0
      %3367 = vmatprep.subr.bf16.mxu0 0
      %3368 = vmatpush1.bf16.msra.mxu0 0
      %3369 = vmatprep.subr.bf16.mxu0 0
      %3370 = vmatpush1.bf16.msra.mxu0 0
      %3371 = vmatprep.subr.bf16.mxu0 0
      %3372 = vmatpush1.bf16.msra.mxu0 0
      %3373 = vmatprep.subr.bf16.mxu0 0
      %3374 = vmatpush1.bf16.msra.mxu0 0
      %3375 = vmatprep.subr.bf16.mxu0 0
      %3376 = vmatpush1.bf16.msra.mxu0 0
      %3377 = vmatprep.subr.bf16.mxu0 0
      %3378 = vmatpush1.bf16.msra.mxu0 0
      %3379 = vmatprep.subr.bf16.mxu0 0
      %3380 = vmatpush1.bf16.msra.mxu0 0
      %3381 = vmatprep.subr.bf16.mxu0 0
      %3382 = vmatpush1.bf16.msra.mxu0 %v3363
      %3383 = vmatprep.subr.bf16.mxu0 0
      %3384 = vmatpush2.bf16.msra.mxu0 0
      %3385 = vmatprep.subr.bf16.mxu0 0
      %3386 = vmatpush2.bf16.msra.mxu0 0
      %3387 = vmatprep.subr.bf16.mxu0 0
      %3388 = vmatpush2.bf16.msra.mxu0 0
      %3389 = vmatprep.subr.bf16.mxu0 0
      %3390 = vmatpush2.bf16.msra.mxu0 0
      %3391 = vmatprep.subr.bf16.mxu0 0
      %3392 = vmatpush2.bf16.msra.mxu0 0
      %3393 = vmatprep.subr.bf16.mxu0 0
      %3394 = vmatpush2.bf16.msra.mxu0 0
      %3395 = vmatprep.subr.bf16.mxu0 0
      %3396 = vmatpush2.bf16.msra.mxu0 0
      %3397 = vmatprep.subr.bf16.mxu0 0
      %3398 = vmatpush2.bf16.msra.mxu0 0
      %3399 = vmatprep.mubr.bf16.mxu0 0
      %3400 = vmatmul.mubr.bf16.gmra.mxu0 %v3365
      %v3401 = vpop.f32.mrf.mxu0
      %v3402 = vadd.f32 %v3354, %v3401
      %v3403 = vpop.f32.mrf.mxu0
      %v3404 = vpop.f32.mrf.mxu0
      %v3405 = vpop.f32.mrf.mxu0
      %3406 = vdwg.mxu0
      %v3407 = vld [vmem:[%s9 + $0x10] sm:$0xf]
      %v3408 = vld [vmem:[%s9 + $0x14] sm:$0xf]
      %v3410 = vrot.slane %v3302, 1
      %v3413 = vunpack.c.l.b16 %v3407
      %v3414 = vunpack.c.l.b16 %v3408
      %v3415 = vpack.c.b16 %v3414, %v3413
      %v3418 = vsel %vm1167, %v3410, 0
      %3420 = vmatprep.subr.bf16.mxu0 0
      %3421 = vmatpush1.bf16.msra.mxu0 0
      %3422 = vmatprep.subr.bf16.mxu0 0
      %3423 = vmatpush1.bf16.msra.mxu0 0
      %3424 = vmatprep.subr.bf16.mxu0 0
      %3425 = vmatpush1.bf16.msra.mxu0 0
      %3426 = vmatprep.subr.bf16.mxu0 0
      %3427 = vmatpush1.bf16.msra.mxu0 0
      %3428 = vmatprep.subr.bf16.mxu0 0
      %3429 = vmatpush1.bf16.msra.mxu0 0
      %3430 = vmatprep.subr.bf16.mxu0 0
      %3431 = vmatpush1.bf16.msra.mxu0 0
      %3432 = vmatprep.subr.bf16.mxu0 0
      %3433 = vmatpush1.bf16.msra.mxu0 0
      %3434 = vmatprep.subr.bf16.mxu0 0
      %3435 = vmatpush1.bf16.msra.mxu0 %v3415
      %3436 = vmatprep.subr.bf16.mxu0 0
      %3437 = vmatpush2.bf16.msra.mxu0 0
      %3438 = vmatprep.subr.bf16.mxu0 0
      %3439 = vmatpush2.bf16.msra.mxu0 0
      %3440 = vmatprep.subr.bf16.mxu0 0
      %3441 = vmatpush2.bf16.msra.mxu0 0
      %3442 = vmatprep.subr.bf16.mxu0 0
      %3443 = vmatpush2.bf16.msra.mxu0 0
      %3444 = vmatprep.subr.bf16.mxu0 0
      %3445 = vmatpush2.bf16.msra.mxu0 0
      %3446 = vmatprep.subr.bf16.mxu0 0
      %3447 = vmatpush2.bf16.msra.mxu0 0
      %3448 = vmatprep.subr.bf16.mxu0 0
      %3449 = vmatpush2.bf16.msra.mxu0 0
      %3450 = vmatprep.subr.bf16.mxu0 0
      %3451 = vmatpush2.bf16.msra.mxu0 0
      %3452 = vmatprep.mubr.bf16.mxu0 0
      %3453 = vmatmul.mubr.bf16.gmra.mxu0 %v3418
      %v3454 = vpop.f32.mrf.mxu0
      %v3455 = vadd.f32 0.0, %v3454
      %v3456 = vpop.f32.mrf.mxu0
      %v3457 = vpop.f32.mrf.mxu0
      %v3458 = vpop.f32.mrf.mxu0
      %3459 = vdwg.mxu0
      %v3460 = vadd.f32 %v3402, %v3455
      %v3461 = vld [vmem:[%s9 + $0x18] sm:$0xf]
      %v3462 = vld [vmem:[%s9 + $0x1c] sm:$0xf]
      %v3463 = vrot.slane %v3308, 1
      %v3466 = vunpack.c.l.b16 %v3461
      %v3467 = vunpack.c.l.b16 %v3462
      %v3468 = vpack.c.b16 %v3467, %v3466
      %v3471 = vsel %vm1167, %v3463, 0
      %3473 = vmatprep.subr.bf16.mxu0 0
      %3474 = vmatpush1.bf16.msra.mxu0 0
      %3475 = vmatprep.subr.bf16.mxu0 0
      %3476 = vmatpush1.bf16.msra.mxu0 0
      %3477 = vmatprep.subr.bf16.mxu0 0
      %3478 = vmatpush1.bf16.msra.mxu0 0
      %3479 = vmatprep.subr.bf16.mxu0 0
      %3480 = vmatpush1.bf16.msra.mxu0 0
      %3481 = vmatprep.subr.bf16.mxu0 0
      %3482 = vmatpush1.bf16.msra.mxu0 0
      %3483 = vmatprep.subr.bf16.mxu0 0
      %3484 = vmatpush1.bf16.msra.mxu0 0
      %3485 = vmatprep.subr.bf16.mxu0 0
      %3486 = vmatpush1.bf16.msra.mxu0 0
      %3487 = vmatprep.subr.bf16.mxu0 0
      %3488 = vmatpush1.bf16.msra.mxu0 %v3468
      %3489 = vmatprep.subr.bf16.mxu0 0
      %3490 = vmatpush2.bf16.msra.mxu0 0
      %3491 = vmatprep.subr.bf16.mxu0 0
      %3492 = vmatpush2.bf16.msra.mxu0 0
      %3493 = vmatprep.subr.bf16.mxu0 0
      %3494 = vmatpush2.bf16.msra.mxu0 0
      %3495 = vmatprep.subr.bf16.mxu0 0
      %3496 = vmatpush2.bf16.msra.mxu0 0
      %3497 = vmatprep.subr.bf16.mxu0 0
      %3498 = vmatpush2.bf16.msra.mxu0 0
      %3499 = vmatprep.subr.bf16.mxu0 0
      %3500 = vmatpush2.bf16.msra.mxu0 0
      %3501 = vmatprep.subr.bf16.mxu0 0
      %3502 = vmatpush2.bf16.msra.mxu0 0
      %3503 = vmatprep.subr.bf16.mxu0 0
      %3504 = vmatpush2.bf16.msra.mxu0 0
      %3505 = vmatprep.mubr.bf16.mxu0 0
      %3506 = vmatmul.mubr.bf16.gmra.mxu0 %v3471
      %v3507 = vpop.f32.mrf.mxu0
      %v3508 = vadd.f32 0.0, %v3507
      %v3509 = vpop.f32.mrf.mxu0
      %v3510 = vpop.f32.mrf.mxu0
      %v3511 = vpop.f32.mrf.mxu0
      %3512 = vdwg.mxu0
      %v3513 = vadd.f32 %v3460, %v3508
      %v3514 = vld [vmem:[%s9 + $0x20] sm:$0xf]
      %v3515 = vld [vmem:[%s9 + $0x24] sm:$0xf]
      %v3516 = vrot.slane %v3302, 2
      %v3519 = vunpack.c.l.b16 %v3514
      %v3520 = vunpack.c.l.b16 %v3515
      %v3521 = vpack.c.b16 %v3520, %v3519
      %v3524 = vsel %vm1167, %v3516, 0
      %3526 = vmatprep.subr.bf16.mxu0 0
      %3527 = vmatpush1.bf16.msra.mxu0 0
      %3528 = vmatprep.subr.bf16.mxu0 0
      %3529 = vmatpush1.bf16.msra.mxu0 0
      %3530 = vmatprep.subr.bf16.mxu0 0
      %3531 = vmatpush1.bf16.msra.mxu0 0
      %3532 = vmatprep.subr.bf16.mxu0 0
      %3533 = vmatpush1.bf16.msra.mxu0 0
      %3534 = vmatprep.subr.bf16.mxu0 0
      %3535 = vmatpush1.bf16.msra.mxu0 0
      %3536 = vmatprep.subr.bf16.mxu0 0
      %3537 = vmatpush1.bf16.msra.mxu0 0
      %3538 = vmatprep.subr.bf16.mxu0 0
      %3539 = vmatpush1.bf16.msra.mxu0 0
      %3540 = vmatprep.subr.bf16.mxu0 0
      %3541 = vmatpush1.bf16.msra.mxu0 %v3521
      %3542 = vmatprep.subr.bf16.mxu0 0
      %3543 = vmatpush2.bf16.msra.mxu0 0
      %3544 = vmatprep.subr.bf16.mxu0 0
      %3545 = vmatpush2.bf16.msra.mxu0 0
      %3546 = vmatprep.subr.bf16.mxu0 0
      %3547 = vmatpush2.bf16.msra.mxu0 0
      %3548 = vmatprep.subr.bf16.mxu0 0
      %3549 = vmatpush2.bf16.msra.mxu0 0
      %3550 = vmatprep.subr.bf16.mxu0 0
      %3551 = vmatpush2.bf16.msra.mxu0 0
      %3552 = vmatprep.subr.bf16.mxu0 0
      %3553 = vmatpush2.bf16.msra.mxu0 0
      %3554 = vmatprep.subr.bf16.mxu0 0
      %3555 = vmatpush2.bf16.msra.mxu0 0
      %3556 = vmatprep.subr.bf16.mxu0 0
      %3557 = vmatpush2.bf16.msra.mxu0 0
      %3558 = vmatprep.mubr.bf16.mxu0 0
      %3559 = vmatmul.mubr.bf16.gmra.mxu0 %v3524
      %v3560 = vpop.f32.mrf.mxu0
      %v3561 = vadd.f32 0.0, %v3560
      %v3562 = vpop.f32.mrf.mxu0
      %v3563 = vpop.f32.mrf.mxu0
      %v3564 = vpop.f32.mrf.mxu0
      %3565 = vdwg.mxu0
      %v3566 = vadd.f32 %v3513, %v3561
      %v3567 = vld [vmem:[%s9 + $0x28] sm:$0xf]
      %v3568 = vld [vmem:[%s9 + $0x2c] sm:$0xf]
      %v3569 = vrot.slane %v3308, 2
      %v3572 = vunpack.c.l.b16 %v3567
      %v3573 = vunpack.c.l.b16 %v3568
      %v3574 = vpack.c.b16 %v3573, %v3572
      %v3577 = vsel %vm1167, %v3569, 0
      %3579 = vmatprep.subr.bf16.mxu0 0
      %3580 = vmatpush1.bf16.msra.mxu0 0
      %3581 = vmatprep.subr.bf16.mxu0 0
      %3582 = vmatpush1.bf16.msra.mxu0 0
      %3583 = vmatprep.subr.bf16.mxu0 0
      %3584 = vmatpush1.bf16.msra.mxu0 0
      %3585 = vmatprep.subr.bf16.mxu0 0
      %3586 = vmatpush1.bf16.msra.mxu0 0
      %3587 = vmatprep.subr.bf16.mxu0 0
      %3588 = vmatpush1.bf16.msra.mxu0 0
      %3589 = vmatprep.subr.bf16.mxu0 0
      %3590 = vmatpush1.bf16.msra.mxu0 0
      %3591 = vmatprep.subr.bf16.mxu0 0
      %3592 = vmatpush1.bf16.msra.mxu0 0
      %3593 = vmatprep.subr.bf16.mxu0 0
      %3594 = vmatpush1.bf16.msra.mxu0 %v3574
      %3595 = vmatprep.subr.bf16.mxu0 0
      %3596 = vmatpush2.bf16.msra.mxu0 0
      %3597 = vmatprep.subr.bf16.mxu0 0
      %3598 = vmatpush2.bf16.msra.mxu0 0
      %3599 = vmatprep.subr.bf16.mxu0 0
      %3600 = vmatpush2.bf16.msra.mxu0 0
      %3601 = vmatprep.subr.bf16.mxu0 0
      %3602 = vmatpush2.bf16.msra.mxu0 0
      %3603 = vmatprep.subr.bf16.mxu0 0
      %3604 = vmatpush2.bf16.msra.mxu0 0
      %3605 = vmatprep.subr.bf16.mxu0 0
      %3606 = vmatpush2.bf16.msra.mxu0 0
      %3607 = vmatprep.subr.bf16.mxu0 0
      %3608 = vmatpush2.bf16.msra.mxu0 0
      %3609 = vmatprep.subr.bf16.mxu0 0
      %3610 = vmatpush2.bf16.msra.mxu0 0
      %3611 = vmatprep.mubr.bf16.mxu0 0
      %3612 = vmatmul.mubr.bf16.gmra.mxu0 %v3577
      %v3613 = vpop.f32.mrf.mxu0
      %v3614 = vadd.f32 0.0, %v3613
      %v3615 = vpop.f32.mrf.mxu0
      %v3616 = vpop.f32.mrf.mxu0
      %v3617 = vpop.f32.mrf.mxu0
      %3618 = vdwg.mxu0
      %v3619 = vadd.f32 %v3566, %v3614
      %v3620 = vld [vmem:[%s9 + $0x30] sm:$0xf]
      %v3621 = vld [vmem:[%s9 + $0x34] sm:$0xf]
      %v3622 = vrot.slane %v3302, 3
      %v3625 = vunpack.c.l.b16 %v3620
      %v3626 = vunpack.c.l.b16 %v3621
      %v3627 = vpack.c.b16 %v3626, %v3625
      %v3630 = vsel %vm1167, %v3622, 0
      %3632 = vmatprep.subr.bf16.mxu0 0
      %3633 = vmatpush1.bf16.msra.mxu0 0
      %3634 = vmatprep.subr.bf16.mxu0 0
      %3635 = vmatpush1.bf16.msra.mxu0 0
      %3636 = vmatprep.subr.bf16.mxu0 0
      %3637 = vmatpush1.bf16.msra.mxu0 0
      %3638 = vmatprep.subr.bf16.mxu0 0
      %3639 = vmatpush1.bf16.msra.mxu0 0
      %3640 = vmatprep.subr.bf16.mxu0 0
      %3641 = vmatpush1.bf16.msra.mxu0 0
      %3642 = vmatprep.subr.bf16.mxu0 0
      %3643 = vmatpush1.bf16.msra.mxu0 0
      %3644 = vmatprep.subr.bf16.mxu0 0
      %3645 = vmatpush1.bf16.msra.mxu0 0
      %3646 = vmatprep.subr.bf16.mxu0 0
      %3647 = vmatpush1.bf16.msra.mxu0 %v3627
      %3648 = vmatprep.subr.bf16.mxu0 0
      %3649 = vmatpush2.bf16.msra.mxu0 0
      %3650 = vmatprep.subr.bf16.mxu0 0
      %3651 = vmatpush2.bf16.msra.mxu0 0
      %3652 = vmatprep.subr.bf16.mxu0 0
      %3653 = vmatpush2.bf16.msra.mxu0 0
      %3654 = vmatprep.subr.bf16.mxu0 0
      %3655 = vmatpush2.bf16.msra.mxu0 0
      %3656 = vmatprep.subr.bf16.mxu0 0
      %3657 = vmatpush2.bf16.msra.mxu0 0
      %3658 = vmatprep.subr.bf16.mxu0 0
      %3659 = vmatpush2.bf16.msra.mxu0 0
      %3660 = vmatprep.subr.bf16.mxu0 0
      %3661 = vmatpush2.bf16.msra.mxu0 0
      %3662 = vmatprep.subr.bf16.mxu0 0
      %3663 = vmatpush2.bf16.msra.mxu0 0
      %3664 = vmatprep.mubr.bf16.mxu0 0
      %3665 = vmatmul.mubr.bf16.gmra.mxu0 %v3630
      %v3666 = vpop.f32.mrf.mxu0
      %v3667 = vadd.f32 0.0, %v3666
      %v3668 = vpop.f32.mrf.mxu0
      %v3669 = vpop.f32.mrf.mxu0
      %v3670 = vpop.f32.mrf.mxu0
      %3671 = vdwg.mxu0
      %v3672 = vadd.f32 %v3619, %v3667
      %v3673 = vld [vmem:[%s9 + $0x38] sm:$0xf]
      %v3674 = vld [vmem:[%s9 + $0x3c] sm:$0xf]
      %v3675 = vrot.slane %v3308, 3
      %v3678 = vunpack.c.l.b16 %v3673
      %v3679 = vunpack.c.l.b16 %v3674
      %v3680 = vpack.c.b16 %v3679, %v3678
      %v3683 = vsel %vm1167, %v3675, 0
      %3685 = vmatprep.subr.bf16.mxu0 0
      %3686 = vmatpush1.bf16.msra.mxu0 0
      %3687 = vmatprep.subr.bf16.mxu0 0
      %3688 = vmatpush1.bf16.msra.mxu0 0
      %3689 = vmatprep.subr.bf16.mxu0 0
      %3690 = vmatpush1.bf16.msra.mxu0 0
      %3691 = vmatprep.subr.bf16.mxu0 0
      %3692 = vmatpush1.bf16.msra.mxu0 0
      %3693 = vmatprep.subr.bf16.mxu0 0
      %3694 = vmatpush1.bf16.msra.mxu0 0
      %3695 = vmatprep.subr.bf16.mxu0 0
      %3696 = vmatpush1.bf16.msra.mxu0 0
      %3697 = vmatprep.subr.bf16.mxu0 0
      %3698 = vmatpush1.bf16.msra.mxu0 0
      %3699 = vmatprep.subr.bf16.mxu0 0
      %3700 = vmatpush1.bf16.msra.mxu0 %v3680
      %3701 = vmatprep.subr.bf16.mxu0 0
      %3702 = vmatpush2.bf16.msra.mxu0 0
      %3703 = vmatprep.subr.bf16.mxu0 0
      %3704 = vmatpush2.bf16.msra.mxu0 0
      %3705 = vmatprep.subr.bf16.mxu0 0
      %3706 = vmatpush2.bf16.msra.mxu0 0
      %3707 = vmatprep.subr.bf16.mxu0 0
      %3708 = vmatpush2.bf16.msra.mxu0 0
      %3709 = vmatprep.subr.bf16.mxu0 0
      %3710 = vmatpush2.bf16.msra.mxu0 0
      %3711 = vmatprep.subr.bf16.mxu0 0
      %3712 = vmatpush2.bf16.msra.mxu0 0
      %3713 = vmatprep.subr.bf16.mxu0 0
      %3714 = vmatpush2.bf16.msra.mxu0 0
      %3715 = vmatprep.subr.bf16.mxu0 0
      %3716 = vmatpush2.bf16.msra.mxu0 0
      %3717 = vmatprep.mubr.bf16.mxu0 0
      %3718 = vmatmul.mubr.bf16.gmra.mxu0 %v3683
      %v3719 = vpop.f32.mrf.mxu0
      %v3720 = vadd.f32 0.0, %v3719
      %v3721 = vpop.f32.mrf.mxu0
      %v3722 = vpop.f32.mrf.mxu0
      %v3723 = vpop.f32.mrf.mxu0
      %3724 = vdwg.mxu0
      %v3725 = vadd.f32 %v3672, %v3720
      %v3726 = vld [vmem:[%s9 + $0x40] sm:$0xf]
      %v3727 = vld [vmem:[%s9 + $0x44] sm:$0xf]
      %v3728 = vrot.slane %v3302, 4
      %v3731 = vunpack.c.l.b16 %v3726
      %v3732 = vunpack.c.l.b16 %v3727
      %v3733 = vpack.c.b16 %v3732, %v3731
      %v3736 = vsel %vm1167, %v3728, 0
      %3738 = vmatprep.subr.bf16.mxu0 0
      %3739 = vmatpush1.bf16.msra.mxu0 0
      %3740 = vmatprep.subr.bf16.mxu0 0
      %3741 = vmatpush1.bf16.msra.mxu0 0
      %3742 = vmatprep.subr.bf16.mxu0 0
      %3743 = vmatpush1.bf16.msra.mxu0 0
      %3744 = vmatprep.subr.bf16.mxu0 0
      %3745 = vmatpush1.bf16.msra.mxu0 0
      %3746 = vmatprep.subr.bf16.mxu0 0
      %3747 = vmatpush1.bf16.msra.mxu0 0
      %3748 = vmatprep.subr.bf16.mxu0 0
      %3749 = vmatpush1.bf16.msra.mxu0 0
      %3750 = vmatprep.subr.bf16.mxu0 0
      %3751 = vmatpush1.bf16.msra.mxu0 0
      %3752 = vmatprep.subr.bf16.mxu0 0
      %3753 = vmatpush1.bf16.msra.mxu0 %v3733
      %3754 = vmatprep.subr.bf16.mxu0 0
      %3755 = vmatpush2.bf16.msra.mxu0 0
      %3756 = vmatprep.subr.bf16.mxu0 0
      %3757 = vmatpush2.bf16.msra.mxu0 0
      %3758 = vmatprep.subr.bf16.mxu0 0
      %3759 = vmatpush2.bf16.msra.mxu0 0
      %3760 = vmatprep.subr.bf16.mxu0 0
      %3761 = vmatpush2.bf16.msra.mxu0 0
      %3762 = vmatprep.subr.bf16.mxu0 0
      %3763 = vmatpush2.bf16.msra.mxu0 0
      %3764 = vmatprep.subr.bf16.mxu0 0
      %3765 = vmatpush2.bf16.msra.mxu0 0
      %3766 = vmatprep.subr.bf16.mxu0 0
      %3767 = vmatpush2.bf16.msra.mxu0 0
      %3768 = vmatprep.subr.bf16.mxu0 0
      %3769 = vmatpush2.bf16.msra.mxu0 0
      %3770 = vmatprep.mubr.bf16.mxu0 0
      %3771 = vmatmul.mubr.bf16.gmra.mxu0 %v3736
      %v3772 = vpop.f32.mrf.mxu0
      %v3773 = vadd.f32 0.0, %v3772
      %v3774 = vpop.f32.mrf.mxu0
      %v3775 = vpop.f32.mrf.mxu0
      %v3776 = vpop.f32.mrf.mxu0
      %3777 = vdwg.mxu0
      %v3778 = vadd.f32 %v3725, %v3773
      %v3779 = vld [vmem:[%s10] sm:$0x1]
      %v3780 = vadd.f32 %v3778, %v3779
      %v3781 = vmax.f32 %v3780, 0.0
      %v3782 = vpack.c.bf16 %v3781, %v3781
      %v3783 = vld [vmem:[%s11] sm:$0xff]
      %v3784 = vld [vmem:[%s11 + $0x8] sm:$0xf]
      %v3785 = vld [vmem:[%s11 + $0xc] sm:$0xff]
      %v3786 = vld [vmem:[%s11 + $0x14] sm:$0xf]
      %v3787 = vld [vmem:[%s11 + $0x18] sm:$0xff]
      %v3788 = vld [vmem:[%s11 + $0x20] sm:$0xf]
      %v3789 = vld [vmem:[%s11 + $0x24] sm:$0xff]
      %v3790 = vld [vmem:[%s11 + $0x2c] sm:$0xf]
      %v3791 = vld [vmem:[%s11 + $0x30] sm:$0xff]
      %v3792 = vld [vmem:[%s11 + $0x38] sm:$0xf]
      %v3793 = vld [vmem:[%s11 + $0x3c] sm:$0xff]
      %v3794 = vld [vmem:[%s11 + $0x44] sm:$0xf]
      %v3795 = vld [vmem:[%s11 + $0x48] sm:$0xff]
      %v3796 = vld [vmem:[%s11 + $0x50] sm:$0xf]
      %v3797 = vld [vmem:[%s11 + $0x54] sm:$0xff]
      %v3798 = vld [vmem:[%s11 + $0x5c] sm:$0xf]
      %v3799 = vld [vmem:[%s12] sm:$0x7]
      %v3816 = vunpack.c.l.b16 %v3783
      %v3817 = vunpack.c.h.b16 %v3783
      %v3818 = vunpack.c.l.b16 %v3784
      %v3819 = vunpack.c.l.b16 %v3785
      %v3820 = vunpack.c.h.b16 %v3785
      %v3821 = vunpack.c.l.b16 %v3786
      %v3822 = vunpack.c.l.b16 %v3787
      %v3823 = vunpack.c.h.b16 %v3787
      %v3824 = vunpack.c.l.b16 %v3788
      %v3825 = vunpack.c.l.b16 %v3789
      %v3826 = vunpack.c.h.b16 %v3789
      %v3827 = vunpack.c.l.b16 %v3790
      %v3828 = vunpack.c.l.b16 %v3791
      %v3829 = vunpack.c.h.b16 %v3791
      %v3830 = vunpack.c.l.b16 %v3792
      %v3831 = vunpack.c.l.b16 %v3793
      %v3832 = vunpack.c.h.b16 %v3793
      %v3833 = vunpack.c.l.b16 %v3794
      %v3834 = vunpack.c.l.b16 %v3795
      %v3835 = vunpack.c.h.b16 %v3795
      %v3836 = vunpack.c.l.b16 %v3796
      %v3837 = vunpack.c.l.b16 %v3797
      %v3838 = vunpack.c.h.b16 %v3797
      %v3839 = vunpack.c.l.b16 %v3798
      %v3840 = vpack.c.b16 %v3819, %v3816
      %v3841 = vpack.c.b16 %v3820, %v3817
      %v3842 = vpack.c.b16 %v3821, %v3818
      %v3843 = vpack.c.b16 %v3825, %v3822
      %v3844 = vpack.c.b16 %v3826, %v3823
      %v3845 = vpack.c.b16 %v3827, %v3824
      %v3846 = vpack.c.b16 %v3831, %v3828
      %v3847 = vpack.c.b16 %v3832, %v3829
      %v3848 = vpack.c.b16 %v3833, %v3830
      %v3849 = vpack.c.b16 %v3837, %v3834
      %v3850 = vpack.c.b16 %v3838, %v3835
      %v3851 = vpack.c.b16 %v3839, %v3836
      %v3865 = vlaneseq
      %v3866 = vshrl.u32 %v3865, 7
      %v3867 = vsub.s32 0, %v3866
      %v3868 = vrot.slane %v3799, %v3867
      %v3869 = vlaneseq
      %v3870 = vshrl.u32 %v3869, 7
      %v3871 = vsub.s32 1, %v3870
      %v3872 = vrot.slane %v3799, %v3871
      %v3873 = vlaneseq
      %v3874 = vshrl.u32 %v3873, 7
      %v3875 = vsub.s32 2, %v3874
      %v3876 = vrot.slane %v3799, %v3875
      %vm3880 = vcmask 523264
      %v3882 = vsel %vm3880, %v3782, 0
      %3884 = vmatprep.subr.bf16.mxu0 0
      %3885 = vmatpush1.bf16.msra.mxu0 0
      %3886 = vmatprep.subr.bf16.mxu0 0
      %3887 = vmatpush1.bf16.msra.mxu0 0
      %3888 = vmatprep.subr.bf16.mxu0 0
      %3889 = vmatpush1.bf16.msra.mxu0 0
      %3890 = vmatprep.subr.bf16.mxu0 0
      %3891 = vmatpush1.bf16.msra.mxu0 0
      %3892 = vmatprep.subr.bf16.mxu0 %v3850
      %3893 = vmatpush1.bf16.msra.mxu0 %v3849
      %3894 = vmatprep.subr.bf16.mxu0 %v3847
      %3895 = vmatpush1.bf16.msra.mxu0 %v3846
      %3896 = vmatprep.subr.bf16.mxu0 %v3844
      %3897 = vmatpush1.bf16.msra.mxu0 %v3843
      %3898 = vmatprep.subr.bf16.mxu0 %v3841
      %3899 = vmatpush1.bf16.msra.mxu0 %v3840
      %3900 = vmatprep.subr.bf16.mxu0 0
      %3901 = vmatpush2.bf16.msra.mxu0 0
      %3902 = vmatprep.subr.bf16.mxu0 0
      %3903 = vmatpush2.bf16.msra.mxu0 0
      %3904 = vmatprep.subr.bf16.mxu0 0
      %3905 = vmatpush2.bf16.msra.mxu0 0
      %3906 = vmatprep.subr.bf16.mxu0 0
      %3907 = vmatpush2.bf16.msra.mxu0 0
      %3908 = vmatprep.subr.bf16.mxu0 0
      %3909 = vmatpush2.bf16.msra.mxu0 0
      %3910 = vmatprep.subr.bf16.mxu0 0
      %3911 = vmatpush2.bf16.msra.mxu0 0
      %3912 = vmatprep.subr.bf16.mxu0 0
      %3913 = vmatpush2.bf16.msra.mxu0 0
      %3914 = vmatprep.subr.bf16.mxu0 0
      %3915 = vmatpush2.bf16.msra.mxu0 0
      %3916 = vmatprep.mubr.bf16.mxu0 0
      %3917 = vmatmul.mubr.bf16.gmra.mxu0 %v3882
      %v3918 = vpop.f32.mrf.mxu0
      %v3919 = vadd.f32 %v3868, %v3918
      %v3920 = vpop.f32.mrf.mxu0
      %v3921 = vadd.f32 %v3872, %v3920
      %v3922 = vpop.f32.mrf.mxu0
      %v3923 = vpop.f32.mrf.mxu0
      %3924 = vdwg.mxu0
      %3925 = vmatprep.subr.bf16.mxu0 0
      %3926 = vmatpush1.bf16.msra.mxu0 0
      %3927 = vmatprep.subr.bf16.mxu0 0
      %3928 = vmatpush1.bf16.msra.mxu0 0
      %3929 = vmatprep.subr.bf16.mxu0 0
      %3930 = vmatpush1.bf16.msra.mxu0 0
      %3931 = vmatprep.subr.bf16.mxu0 0
      %3932 = vmatpush1.bf16.msra.mxu0 0
      %3933 = vmatprep.subr.bf16.mxu0 0
      %3934 = vmatpush1.bf16.msra.mxu0 %v3851
      %3935 = vmatprep.subr.bf16.mxu0 0
      %3936 = vmatpush1.bf16.msra.mxu0 %v3848
      %3937 = vmatprep.subr.bf16.mxu0 0
      %3938 = vmatpush1.bf16.msra.mxu0 %v3845
      %3939 = vmatprep.subr.bf16.mxu0 0
      %3940 = vmatpush1.bf16.msra.mxu0 %v3842
      %3941 = vmatprep.subr.bf16.mxu0 0
      %3942 = vmatpush2.bf16.msra.mxu0 0
      %3943 = vmatprep.subr.bf16.mxu0 0
      %3944 = vmatpush2.bf16.msra.mxu0 0
      %3945 = vmatprep.subr.bf16.mxu0 0
      %3946 = vmatpush2.bf16.msra.mxu0 0
      %3947 = vmatprep.subr.bf16.mxu0 0
      %3948 = vmatpush2.bf16.msra.mxu0 0
      %3949 = vmatprep.subr.bf16.mxu0 0
      %3950 = vmatpush2.bf16.msra.mxu0 0
      %3951 = vmatprep.subr.bf16.mxu0 0
      %3952 = vmatpush2.bf16.msra.mxu0 0
      %3953 = vmatprep.subr.bf16.mxu0 0
      %3954 = vmatpush2.bf16.msra.mxu0 0
      %3955 = vmatprep.subr.bf16.mxu0 0
      %3956 = vmatpush2.bf16.msra.mxu0 0
      %3957 = vmatprep.mubr.bf16.mxu0 0
      %3958 = vmatmul.mubr.bf16.gmra.mxu0 %v3882
      %v3959 = vpop.f32.mrf.mxu0
      %v3960 = vadd.f32 %v3876, %v3959
      %v3961 = vpop.f32.mrf.mxu0
      %v3962 = vpop.f32.mrf.mxu0
      %v3963 = vpop.f32.mrf.mxu0
      %3964 = vdwg.mxu0
      %3966 = vrot.lane.b32.xlu0 %v3960, 64
      %v3967 = vpop.permute.xlu0 %3966
      %v3969 = vsub.f32 %v3960, %v3967
      %v3970 = vadd.f32 %v3919, %v3969
      %vm3971 = vcmask 516096
      %v3972 = vsel %vm3971, %v3970, -inf
      %3973 = vmax.xlane.f32.xlu0 %v3972
      %v3974 = vpop.xlane.xlu0 %3973
      %v3975 = vsub.f32 %v3970, %v3974
      %v3976 = vmul.f32 %v3975, 1.442695
      %v3977 = vpow.pop %v3976
      %v3978 = vsel %vm3971, %v3977, 0.0
      %3979 = vadd.xlane.f32.xlu0 %v3978
      %v3980 = vpop.xlane.xlu0 %3979
      %v3981 = vrcp.pop %v3980
      %v3982 = vmul.f32 %v3977, %v3981
      %3984 = vrot.lane.b32.xlu0 %v3969, 64
      %v3985 = vpop.permute.xlu0 %3984
      %v3987 = vadd.f32 %v3919, %v3985
      %vm3988 = vcmask 1040896
      %v3989 = vsel %vm3988, %v3987, -inf
      %3990 = vmax.xlane.f32.xlu0 %v3989
      %v3991 = vpop.xlane.xlu0 %3990
      %v3992 = vsub.f32 %v3987, %v3991
      %v3993 = vmul.f32 %v3992, 1.442695
      %v3994 = vpow.pop %v3993
      %3996 = vrot.lane.b32.xlu0 %v3994, 64
      %v3997 = vpop.permute.xlu0 %3996
      %v3999 = vsel %vm3971, %v3997, 0.0
      %4000 = vadd.xlane.f32.xlu0 %v3999
      %v4001 = vpop.xlane.xlu0 %4000
      %v4002 = vrcp.pop %v4001
      %v4003 = vmul.f32 %v3994, %v4002
      %v4004 = vadd.f32 %v3921, %v3969
      %v4005 = vsel %vm3971, %v4004, -inf
      %4006 = vmax.xlane.f32.xlu0 %v4005
      %v4007 = vpop.xlane.xlu0 %4006
      %v4008 = vsub.f32 %v4004, %v4007
      %v4009 = vmul.f32 %v4008, 1.442695
      %v4010 = vpow.pop %v4009
      %v4011 = vsel %vm3971, %v4010, 0.0
      %4012 = vadd.xlane.f32.xlu0 %v4011
      %v4013 = vpop.xlane.xlu0 %4012
      %v4014 = vrcp.pop %v4013
      %v4015 = vmul.f32 %v4010, %v4014
      %v4016 = vadd.f32 %v3921, %v3985
      %v4017 = vsel %vm3988, %v4016, -inf
      %4018 = vmax.xlane.f32.xlu0 %v4017
      %v4019 = vpop.xlane.xlu0 %4018
      %v4020 = vsub.f32 %v4016, %v4019
      %v4021 = vmul.f32 %v4020, 1.442695
      %v4022 = vpow.pop %v4021
      %4024 = vrot.lane.b32.xlu0 %v4022, 64
      %v4025 = vpop.permute.xlu0 %4024
      %v4027 = vsel %vm3971, %v4025, 0.0
      %4028 = vadd.xlane.f32.xlu0 %v4027
      %v4029 = vpop.xlane.xlu0 %4028
      %v4030 = vrcp.pop %v4029
      %v4031 = vmul.f32 %v4022, %v4030
      %v4032 = vsel %vm3880, %v3982, %v4003
      %v4033 = vsel %vm3880, %v4015, %v4031
      %v4036 = vcombine.low %v4032, %v4033
      %v4038 = vunpack.c.l.s4 1966171168
      %v4039 = vunpack.c.0.s8 %v4038
      %v4040 = vlaneseq
      %v4041 = vshrl.u32 %v4040, 7
      %v4042 = vsub.s32 %v4039, %v4041
      %v4043 = vrot.slane %v4036, %v4042
      %v4045 = vunpack.c.l.s4 1966171168
      %v4046 = vunpack.c.0.s8 %v4045
      %v4047 = vlaneseq
      %v4048 = vshrl.u32 %v4047, 7
      %v4049 = vsub.s32 %v4046, %v4048
      %v4050 = vrot.slane %v4043, %v4049
      %v4052 = vlaneseq
      %vm4053 = vcmp.ge.s32.totalorder %v4052, 0
      %vm4054 = vcmp.lt.s32.totalorder %v4052, 256
      %vm4055 = vmand %vm4053, %vm4054
      %4056 = vst.msk [vmem:[%s438] sm:$0x3] %vm4055, %v4050
      %p4057 = scmp.lt.s32.totalorder %s24, 1
      %s4058 = scalar_select %p4057, %s24, 1
      %s4059 = smul.addr %s4058, 2
      %s4060 = scalar_lea.vmem %s13, %s4059
      // Predicated region
      $region73: #{qnetwork_forward.1} parent=71 // pred_check
        %p4061 = pneg %p320
      $region74: #{qnetwork_forward.1} parent=71 // pred_check_branch
        %4063 = sbr.rel (%p4061) target = $region76
      $region75: #{qnetwork_forward.1} parent=71 // pred_region
        _
      $region76: #{qnetwork_forward.1} parent=71 // pred_fallthru
        _
    $region72: #{qnetwork_forward.1} parent=5 // pred_fallthru
      _
    %p4064 = scmp.le.s32.totalorder 2, %s19
    // Predicated region
    $region77: #{qnetwork_forward.1} parent=5 // pred_check
      %p4065 = pneg %p4064
    $region78: #{qnetwork_forward.1} parent=5 // pred_check_branch
      %4067 = sbr.rel (%p4065) target = $region80
    $region79: #{qnetwork_forward.1} parent=5 // pred_region
      %s4068 = ssub.s32 %s19, 2
      // Predicated region
      $region81: #{qnetwork_forward.1} parent=79 // pred_check
        %p4069 = pneg %p326
      $region82: #{qnetwork_forward.1} parent=79 // pred_check_branch
        %4071 = sbr.rel (%p4069) target = $region84
      $region83: #{qnetwork_forward.1} parent=79 // pred_region
        %p4072 = scmp.lt.s32.totalorder %s25, 1
        %s4073 = scalar_select %p4072, %s25, 1
        %s4074 = smul.addr %s4073, 2
        %s4075 = scalar_lea.vmem %s13, %s4074
      $region84: #{qnetwork_forward.1} parent=79 // pred_fallthru
        _
    $region80: #{qnetwork_forward.1} parent=5 // pred_fallthru
      _
  $region6: #{qnetwork_forward.1} parent=0 // loop_footer
    %s23 = sadd.s32 1, %s19
  $region7: #{qnetwork_forward.1} parent=0 // loop_footer_branch
    %18 = sbr.rel target = $region3
  $region8: #{qnetwork_forward.1} parent=0 // loop_exit
    _

</llo_original>
